<compile_context>
chip_gen: v7x
topology: tpu7x:2x2x1
jax: 0.10.0
libtpu: 0.0.40
codegen_flags: <defaults>
</compile_context>

<pallas_src>
import functools

import numpy as np
import jax
import jax.numpy as jnp
from jax.experimental import pallas as pl
from jax.experimental.pallas import tpu as pltpu

POOL = 4      # AdaptiveAvgPool target size used by PoolAttn
GROUPS = 32   # hard-coded "32" in the PyTorch forward: x.view(B, H*W, 32, -1)
EPS = 1e-5    # nn.GroupNorm default eps


# --------------------------------------------------------------------------
# Static adaptive-average-pool helpers (exact PyTorch bin formula).
# --------------------------------------------------------------------------
def adaptive_bins(n_in, n_out):
    """[(start, end)] for each output bin of an adaptive average pool."""
    return tuple(((j * n_in) // n_out, -((-(j + 1) * n_in) // n_out))
                 for j in range(n_out))


def adaptive_pool_matrix_np(n_in, n_out):
    p = np.zeros((n_in, n_out), dtype=np.float32)
    for j, (s, e) in enumerate(adaptive_bins(n_in, n_out)):
        p[s:e, j] = 1.0 / (e - s)
    return p


def build_embed_branch_mats(dim, groups, pool):
    """Fold the embed-dim poolings into two constant (D, pool*D) matrices.

    With xf[n, d] = x_nhwc[n, d], d = g*C + c (C = D // groups):
      A  = xf @ WH  ->  A[n,  j*D + d] = squeeze_dh[n, g, j]  (broadcast over c)
      Bm = xf @ WW  ->  Bm[n, j*D + d] = squeeze_dw[n, j, c]  (broadcast over g)
    so  x3[n, d] = sum_j A[n, j*D + d] * Bm[n, j*D + d].
    """
    C = dim // groups
    pd = adaptive_pool_matrix_np(C, pool)          # (C, pool)
    pg = adaptive_pool_matrix_np(groups, pool)     # (G, pool)
    wh = np.zeros((dim, pool, dim), np.float32)
    ww = np.zeros((dim, pool, dim), np.float32)
    for j in range(pool):
        for g in range(groups):
            for c in range(C):
                d = g * C + c
                wh[g * C:(g + 1) * C, j, d] = pd[:, j]
                ww[c::C, j, d] = pg[:, j]
    return (jnp.asarray(wh.reshape(dim, pool * dim)),
            jnp.asarray(ww.reshape(dim, pool * dim)))


# --------------------------------------------------------------------------
# Fused kernel: pooled attention + 3 depthwise convs + GroupNorm (NHWC).
# --------------------------------------------------------------------------
def _pool_attn_kernel(x_ref, wh_ref, ww_ref,
                      w0_ref, b0_ref, w1_ref, b1_ref, w2_ref, b2_ref,
                      gamma_ref, beta_ref, o_ref, pad_ref,
                      *, hbins, wbins, eps):
    Bt, H, W, D = x_ref.shape
    t = x_ref[...]                                        # (Bt, H, W, D) f32

    # ---- patch branch: x1[h,w,d] = sum_k mean_{w in bin_k} * mean_{h in bin_k}
    x1 = None
    for k in range(POOL):
        ws, we = wbins[k]
        hs, he = hbins[k]
        sh = jnp.sum(t[:, :, ws:we, :], axis=2, keepdims=True) * (1.0 / (we - ws))
        sw = jnp.sum(t[:, hs:he, :, :], axis=1, keepdims=True) * (1.0 / (he - hs))
        term = sh * sw                                    # (Bt, H, W, D)
        x1 = term if x1 is None else x1 + term

    # ---- embed-dim branch: two lane-dense MXU matmuls + 4 full-lane FMAs ----
    xf = t.reshape(Bt * H * W, D)
    a = jnp.dot(xf, wh_ref[...], preferred_element_type=jnp.float32)   # (BtN, 4D)
    bm = jnp.dot(xf, ww_ref[...], preferred_element_type=jnp.float32)  # (BtN, 4D)
    x3f = None
    for j in range(POOL):
        term = a[:, j * D:(j + 1) * D] * bm[:, j * D:(j + 1) * D]
        x3f = term if x3f is None else x3f + term
    x3 = x3f.reshape(Bt, H, W, D)

    # ---- depthwise 3x3 convs via a zero-padded VMEM scratch -----------------
    pad_ref[...] = jnp.zeros_like(pad_ref)   # border stays zero for all 3 convs

    def dwconv(src, w_ref, b_ref):
        pad_ref[:, 1:H + 1, 1:W + 1, :] = src
        acc = None
        for a_ in range(3):
            for b_ in range(3):
                term = pad_ref[:, a_:a_ + H, b_:b_ + W, :] * w_ref[3 * a_ + b_, :]
                acc = term if acc is None else acc + term
        return acc + b_ref[0, :]

    s = dwconv(x1, w0_ref, b0_ref) + dwconv(x3, w1_ref, b1_ref)

    # ---- GroupNorm(1 group): one-pass per-sample statistics -----------------
    def reduce_hwd(v):
        r = jnp.sum(v, axis=3, keepdims=True)
        r = jnp.sum(r, axis=2, keepdims=True)
        return jnp.sum(r, axis=1, keepdims=True)          # (Bt, 1, 1, 1)

    inv_n = 1.0 / float(H * W * D)
    mean = reduce_hwd(s) * inv_n
    var = reduce_hwd(s * s) * inv_n - mean * mean
    y = (s - mean) * jax.lax.rsqrt(var + eps)
    y = y * gamma_ref[0, :] + beta_ref[0, :]

    o_ref[...] = dwconv(y, w2_ref, b2_ref)


# --------------------------------------------------------------------------
# Wrapper
# --------------------------------------------------------------------------
def _pick_batch_tile(B):
    # Block batches per grid step to amortize the ~0.35us fixed step cost, but
    # keep >= 2 parallel grid steps so both v7x TensorCores get work.
    for bt in (8, 4, 2):
        if B % bt == 0 and B // bt >= 2:
            return bt
    return 1


def pool_attn_forward(x, kp):
    B, D, H, W = x.shape
    f32 = jnp.float32

    # Single NCHW -> NHWC transpose (XLA layout plumbing, done once).
    x_nhwc = jnp.transpose(x, (0, 2, 3, 1)).astype(f32)   # (B, H, W, D)

    wh, ww = build_embed_branch_mats(D, GROUPS, POOL)
    hbins = adaptive_bins(H, POOL)
    wbins = adaptive_bins(W, POOL)

    bt = _pick_batch_tile(B)
    grid = (B // bt,)

    kernel = functools.partial(_pool_attn_kernel,
                               hbins=hbins, wbins=wbins, eps=EPS)

    out_nhwc = pl.pallas_call(
        kernel,
        out_shape=jax.ShapeDtypeStruct((B, H, W, D), f32),
        grid=grid,
        in_specs=[
            pl.BlockSpec((bt, H, W, D), lambda b: (b, 0, 0, 0)),
            pl.BlockSpec((D, POOL * D), lambda b: (0, 0)),
            pl.BlockSpec((D, POOL * D), lambda b: (0, 0)),
            pl.BlockSpec((9, D), lambda b: (0, 0)),
            pl.BlockSpec((1, D), lambda b: (0, 0)),
            pl.BlockSpec((9, D), lambda b: (0, 0)),
            pl.BlockSpec((1, D), lambda b: (0, 0)),
            pl.BlockSpec((9, D), lambda b: (0, 0)),
            pl.BlockSpec((1, D), lambda b: (0, 0)),
            pl.BlockSpec((1, D), lambda b: (0, 0)),
            pl.BlockSpec((1, D), lambda b: (0, 0)),
        ],
        out_specs=pl.BlockSpec((bt, H, W, D), lambda b: (b, 0, 0, 0)),
        scratch_shapes=[pltpu.VMEM((bt, H + 2, W + 2, D), f32)],
        compiler_params=pltpu.CompilerParams(
            dimension_semantics=("parallel",)),
    )(x_nhwc, wh, ww,
      kp["w0"], kp["b0"], kp["w1"], kp["b1"], kp["w2"], kp["b2"],
      kp["gamma"], kp["beta"])

    return jnp.transpose(out_nhwc, (0, 3, 1, 2))          # back to NCHW


pool_attn_forward = jax.jit(pool_attn_forward)


# --------------------------------------------------------------------------
# Deterministic parameter init (synthetic; shapes follow PoolAttn.__init__)
# --------------------------------------------------------------------------
def init_params(key, dim):
    ks = jax.random.split(key, 8)
    return {
        "w0": 0.2 * jax.random.normal(ks[0], (dim, 1, 3, 3), jnp.float32),
        "b0": 0.1 * jax.random.normal(ks[1], (dim,), jnp.float32),
        "w1": 0.2 * jax.random.normal(ks[2], (dim, 1, 3, 3), jnp.float32),
        "b1": 0.1 * jax.random.normal(ks[3], (dim,), jnp.float32),
        "w2": 0.2 * jax.random.normal(ks[4], (dim, 1, 3, 3), jnp.float32),
        "b2": 0.1 * jax.random.normal(ks[5], (dim,), jnp.float32),
        "gamma": 1.0 + 0.1 * jax.random.normal(ks[6], (dim,), jnp.float32),
        "beta": 0.1 * jax.random.normal(ks[7], (dim,), jnp.float32),
    }


def to_kernel_params(p):
    dim = p["b0"].shape[0]

    def conv_w(w):  # (D,1,3,3) -> (9, D), tap index = 3*a + b
        return jnp.transpose(w.reshape(dim, 9), (1, 0))

    return {
        "w0": conv_w(p["w0"]), "b0": p["b0"].reshape(1, dim),
        "w1": conv_w(p["w1"]), "b1": p["b1"].reshape(1, dim),
        "w2": conv_w(p["w2"]), "b2": p["b2"].reshape(1, dim),
        "gamma": p["gamma"].reshape(1, dim),
        "beta": p["beta"].reshape(1, dim),
    }


# --------------------------------------------------------------------------
# Pure-JAX reference (mirrors the PyTorch forward exactly)
# --------------------------------------------------------------------------
def reference_forward(x, p):
    B, D, H, W = x.shape
    C = D // GROUPS
    hp = jax.lax.Precision.HIGHEST

    def dwconv(t, w, b):
        y = jax.lax.conv_general_dilated(
            t, w, window_strides=(1, 1), padding=((1, 1), (1, 1)),
            dimension_numbers=("NCHW", "OIHW", "NCHW"),
            feature_group_count=D, precision=hp)
        return y + b.reshape(1, D, 1, 1)

    pw = jnp.asarray(adaptive_pool_matrix_np(W, POOL))
    ph = jnp.asarray(adaptive_pool_matrix_np(H, POOL))
    pd = jnp.asarray(adaptive_pool_matrix_np(C, POOL))
    pg = jnp.asarray(adaptive_pool_matrix_np(GROUPS, POOL))

    sq_h = jnp.einsum("bdhw,wk->bdhk", x, pw, precision=hp)
    sq_w = jnp.einsum("bdhw,hk->bdkw", x, ph, precision=hp)
    x1 = dwconv(jnp.einsum("bdhk,bdkw->bdhw", sq_h, sq_w, precision=hp),
                p["w0"], p["b0"])

    x0 = jnp.transpose(x.reshape(B, D, H * W), (0, 2, 1)).reshape(B, H * W, GROUPS, C)
    sq_dh = jnp.einsum("bngc,cj->bngj", x0, pd, precision=hp)
    sq_dw = jnp.einsum("bngc,gj->bnjc", x0, pg, precision=hp)
    x2 = jnp.einsum("bngj,bnjc->bngc", sq_dh, sq_dw, precision=hp)
    x3 = jnp.transpose(x2.reshape(B, H * W, D), (0, 2, 1)).reshape(B, D, H, W)
    x3 = dwconv(x3, p["w1"], p["b1"])

    s = x1 + x3
    mean = jnp.mean(s, axis=(1, 2, 3), keepdims=True)
    var = jnp.mean(jnp.square(s - mean), axis=(1, 2, 3), keepdims=True)
    y = (s - mean) / jnp.sqrt(var + EPS)
    y = y * p["gamma"].reshape(1, D, 1, 1) + p["beta"].reshape(1, D, 1, 1)
    return dwconv(y, p["w2"], p["b2"])


if __name__ == "__main__":
    B, D, H, W = 2, 128, 8, 8   # D must be a multiple of 32 (forward uses .view(..., 32, -1))
    key = jax.random.PRNGKey(0)
    kx, kparam = jax.random.split(key)
    x = jax.random.normal(kx, (B, D, H, W), dtype=jnp.float32)

    params = init_params(kparam, D)
    kp = to_kernel_params(params)

    out = jax.block_until_ready(pool_attn_forward(x, kp))
    assert out.shape == (B, D, H, W)
    assert out.dtype == jnp.float32

    ref = jax.block_until_ready(reference_forward(x, params))
    err = float(jnp.max(jnp.abs(out - ref)))
    assert err < 5e-2, f"mismatch vs reference: max abs err = {err}"

    print("KERNEL_OK")
</pallas_src>

<mosaic_0001>
module attributes {stable_mosaic.version = 11 : i64} {
  func.func @_pool_attn_kernel(%arg0: i32, %arg1: memref<1x8x8x128xf32, #tpu.memory_space<vmem>>, %arg2: memref<128x512xf32, #tpu.memory_space<vmem>>, %arg3: memref<128x512xf32, #tpu.memory_space<vmem>>, %arg4: memref<9x128xf32, #tpu.memory_space<vmem>>, %arg5: memref<1x128xf32, #tpu.memory_space<vmem>>, %arg6: memref<9x128xf32, #tpu.memory_space<vmem>>, %arg7: memref<1x128xf32, #tpu.memory_space<vmem>>, %arg8: memref<9x128xf32, #tpu.memory_space<vmem>>, %arg9: memref<1x128xf32, #tpu.memory_space<vmem>>, %arg10: memref<1x128xf32, #tpu.memory_space<vmem>>, %arg11: memref<1x128xf32, #tpu.memory_space<vmem>>, %arg12: memref<1x8x8x128xf32, #tpu.memory_space<vmem>>, %arg13: memref<1x10x10x128xf32, #tpu.memory_space<vmem>>) attributes {dimension_semantics = [#tpu.dimension_semantics<parallel>], iteration_bounds = array<i64: 2>, scalar_prefetch = 0 : i64, scratch_operands = 1 : i64, tpu.core_type = #tpu.core_type<tc>, window_params = [{transform_indices = @transform_0, window_bounds = array<i64: 1, 8, 8, 128>}, {pipeline_mode = #tpu.pipeline_mode<synchronous>, transform_indices = @transform_1, window_bounds = array<i64: 128, 512>}, {pipeline_mode = #tpu.pipeline_mode<synchronous>, transform_indices = @transform_2, window_bounds = array<i64: 128, 512>}, {pipeline_mode = #tpu.pipeline_mode<synchronous>, transform_indices = @transform_3, window_bounds = array<i64: 9, 128>}, {pipeline_mode = #tpu.pipeline_mode<synchronous>, transform_indices = @transform_4, window_bounds = array<i64: 1, 128>}, {pipeline_mode = #tpu.pipeline_mode<synchronous>, transform_indices = @transform_5, window_bounds = array<i64: 9, 128>}, {pipeline_mode = #tpu.pipeline_mode<synchronous>, transform_indices = @transform_6, window_bounds = array<i64: 1, 128>}, {pipeline_mode = #tpu.pipeline_mode<synchronous>, transform_indices = @transform_7, window_bounds = array<i64: 9, 128>}, {pipeline_mode = #tpu.pipeline_mode<synchronous>, transform_indices = @transform_8, window_bounds = array<i64: 1, 128>}, {pipeline_mode = #tpu.pipeline_mode<synchronous>, transform_indices = @transform_9, window_bounds = array<i64: 1, 128>}, {pipeline_mode = #tpu.pipeline_mode<synchronous>, transform_indices = @transform_10, window_bounds = array<i64: 1, 128>}, {transform_indices = @transform_11, window_bounds = array<i64: 1, 8, 8, 128>}]} {
    %c0 = arith.constant 0 : index
    %c0_0 = arith.constant 0 : index
    %c0_1 = arith.constant 0 : index
    %c0_2 = arith.constant 0 : index
    %0 = vector.load %arg1[%c0, %c0_0, %c0_1, %c0_2] : memref<1x8x8x128xf32, #tpu.memory_space<vmem>>, vector<1x8x8x128xf32>
    %1 = vector.extract_strided_slice %0 {offsets = [0, 0, 0, 0], sizes = [1, 8, 2, 128], strides = [1, 1, 1, 1]} : vector<1x8x8x128xf32> to vector<1x8x2x128xf32>
    %cst = arith.constant dense<0.000000e+00> : vector<1x8x128xf32>
    %2 = vector.multi_reduction <add>, %1, %cst [2] : vector<1x8x2x128xf32> to vector<1x8x128xf32>
    %3 = vector.shape_cast %2 : vector<1x8x128xf32> to vector<1x8x1x128xf32>
    %cst_3 = arith.constant 5.000000e-01 : f32
    %4 = vector.broadcast %cst_3 : f32 to vector<1x8x1x128xf32>
    %5 = arith.mulf %3, %4 : vector<1x8x1x128xf32>
    %6 = vector.extract_strided_slice %0 {offsets = [0, 0, 0, 0], sizes = [1, 2, 8, 128], strides = [1, 1, 1, 1]} : vector<1x8x8x128xf32> to vector<1x2x8x128xf32>
    %cst_4 = arith.constant dense<0.000000e+00> : vector<1x8x128xf32>
    %7 = vector.multi_reduction <add>, %6, %cst_4 [1] : vector<1x2x8x128xf32> to vector<1x8x128xf32>
    %8 = vector.shape_cast %7 : vector<1x8x128xf32> to vector<1x1x8x128xf32>
    %cst_5 = arith.constant 5.000000e-01 : f32
    %9 = vector.broadcast %cst_5 : f32 to vector<1x1x8x128xf32>
    %10 = arith.mulf %8, %9 : vector<1x1x8x128xf32>
    %11 = vector.broadcast %5 : vector<1x8x1x128xf32> to vector<1x8x8x128xf32>
    %12 = vector.broadcast %10 : vector<1x1x8x128xf32> to vector<1x8x8x128xf32>
    %13 = arith.mulf %11, %12 : vector<1x8x8x128xf32>
    %14 = vector.extract_strided_slice %0 {offsets = [0, 0, 2, 0], sizes = [1, 8, 2, 128], strides = [1, 1, 1, 1]} : vector<1x8x8x128xf32> to vector<1x8x2x128xf32>
    %cst_6 = arith.constant dense<0.000000e+00> : vector<1x8x128xf32>
    %15 = vector.multi_reduction <add>, %14, %cst_6 [2] : vector<1x8x2x128xf32> to vector<1x8x128xf32>
    %16 = vector.shape_cast %15 : vector<1x8x128xf32> to vector<1x8x1x128xf32>
    %cst_7 = arith.constant 5.000000e-01 : f32
    %17 = vector.broadcast %cst_7 : f32 to vector<1x8x1x128xf32>
    %18 = arith.mulf %16, %17 : vector<1x8x1x128xf32>
    %19 = vector.extract_strided_slice %0 {offsets = [0, 2, 0, 0], sizes = [1, 2, 8, 128], strides = [1, 1, 1, 1]} : vector<1x8x8x128xf32> to vector<1x2x8x128xf32>
    %cst_8 = arith.constant dense<0.000000e+00> : vector<1x8x128xf32>
    %20 = vector.multi_reduction <add>, %19, %cst_8 [1] : vector<1x2x8x128xf32> to vector<1x8x128xf32>
    %21 = vector.shape_cast %20 : vector<1x8x128xf32> to vector<1x1x8x128xf32>
    %cst_9 = arith.constant 5.000000e-01 : f32
    %22 = vector.broadcast %cst_9 : f32 to vector<1x1x8x128xf32>
    %23 = arith.mulf %21, %22 : vector<1x1x8x128xf32>
    %24 = vector.broadcast %18 : vector<1x8x1x128xf32> to vector<1x8x8x128xf32>
    %25 = vector.broadcast %23 : vector<1x1x8x128xf32> to vector<1x8x8x128xf32>
    %26 = arith.mulf %24, %25 : vector<1x8x8x128xf32>
    %27 = arith.addf %13, %26 : vector<1x8x8x128xf32>
    %28 = vector.extract_strided_slice %0 {offsets = [0, 0, 4, 0], sizes = [1, 8, 2, 128], strides = [1, 1, 1, 1]} : vector<1x8x8x128xf32> to vector<1x8x2x128xf32>
    %cst_10 = arith.constant dense<0.000000e+00> : vector<1x8x128xf32>
    %29 = vector.multi_reduction <add>, %28, %cst_10 [2] : vector<1x8x2x128xf32> to vector<1x8x128xf32>
    %30 = vector.shape_cast %29 : vector<1x8x128xf32> to vector<1x8x1x128xf32>
    %cst_11 = arith.constant 5.000000e-01 : f32
    %31 = vector.broadcast %cst_11 : f32 to vector<1x8x1x128xf32>
    %32 = arith.mulf %30, %31 : vector<1x8x1x128xf32>
    %33 = vector.extract_strided_slice %0 {offsets = [0, 4, 0, 0], sizes = [1, 2, 8, 128], strides = [1, 1, 1, 1]} : vector<1x8x8x128xf32> to vector<1x2x8x128xf32>
    %cst_12 = arith.constant dense<0.000000e+00> : vector<1x8x128xf32>
    %34 = vector.multi_reduction <add>, %33, %cst_12 [1] : vector<1x2x8x128xf32> to vector<1x8x128xf32>
    %35 = vector.shape_cast %34 : vector<1x8x128xf32> to vector<1x1x8x128xf32>
    %cst_13 = arith.constant 5.000000e-01 : f32
    %36 = vector.broadcast %cst_13 : f32 to vector<1x1x8x128xf32>
    %37 = arith.mulf %35, %36 : vector<1x1x8x128xf32>
    %38 = vector.broadcast %32 : vector<1x8x1x128xf32> to vector<1x8x8x128xf32>
    %39 = vector.broadcast %37 : vector<1x1x8x128xf32> to vector<1x8x8x128xf32>
    %40 = arith.mulf %38, %39 : vector<1x8x8x128xf32>
    %41 = arith.addf %27, %40 : vector<1x8x8x128xf32>
    %42 = vector.extract_strided_slice %0 {offsets = [0, 0, 6, 0], sizes = [1, 8, 2, 128], strides = [1, 1, 1, 1]} : vector<1x8x8x128xf32> to vector<1x8x2x128xf32>
    %cst_14 = arith.constant dense<0.000000e+00> : vector<1x8x128xf32>
    %43 = vector.multi_reduction <add>, %42, %cst_14 [2] : vector<1x8x2x128xf32> to vector<1x8x128xf32>
    %44 = vector.shape_cast %43 : vector<1x8x128xf32> to vector<1x8x1x128xf32>
    %cst_15 = arith.constant 5.000000e-01 : f32
    %45 = vector.broadcast %cst_15 : f32 to vector<1x8x1x128xf32>
    %46 = arith.mulf %44, %45 : vector<1x8x1x128xf32>
    %47 = vector.extract_strided_slice %0 {offsets = [0, 6, 0, 0], sizes = [1, 2, 8, 128], strides = [1, 1, 1, 1]} : vector<1x8x8x128xf32> to vector<1x2x8x128xf32>
    %cst_16 = arith.constant dense<0.000000e+00> : vector<1x8x128xf32>
    %48 = vector.multi_reduction <add>, %47, %cst_16 [1] : vector<1x2x8x128xf32> to vector<1x8x128xf32>
    %49 = vector.shape_cast %48 : vector<1x8x128xf32> to vector<1x1x8x128xf32>
    %cst_17 = arith.constant 5.000000e-01 : f32
    %50 = vector.broadcast %cst_17 : f32 to vector<1x1x8x128xf32>
    %51 = arith.mulf %49, %50 : vector<1x1x8x128xf32>
    %52 = vector.broadcast %46 : vector<1x8x1x128xf32> to vector<1x8x8x128xf32>
    %53 = vector.broadcast %51 : vector<1x1x8x128xf32> to vector<1x8x8x128xf32>
    %54 = arith.mulf %52, %53 : vector<1x8x8x128xf32>
    %55 = arith.addf %41, %54 : vector<1x8x8x128xf32>
    %56 = vector.shape_cast %0 : vector<1x8x8x128xf32> to vector<64x128xf32>
    %c0_18 = arith.constant 0 : index
    %c0_19 = arith.constant 0 : index
    %57 = vector.load %arg2[%c0_18, %c0_19] : memref<128x512xf32, #tpu.memory_space<vmem>>, vector<128x512xf32>
    %cst_20 = arith.constant dense<0.000000e+00> : vector<64x512xf32>
    %58 = tpu.matmul %56, %57, %cst_20 {dimension_numbers = #tpu.dot_dimension_numbers<[1], [0], [0], [1], [0, 0, 1, 1], [], []>} : vector<64x128xf32>, vector<128x512xf32>, vector<64x512xf32> -> vector<64x512xf32>
    %c0_21 = arith.constant 0 : index
    %c0_22 = arith.constant 0 : index
    %59 = vector.load %arg3[%c0_21, %c0_22] : memref<128x512xf32, #tpu.memory_space<vmem>>, vector<128x512xf32>
    %cst_23 = arith.constant dense<0.000000e+00> : vector<64x512xf32>
    %60 = tpu.matmul %56, %59, %cst_23 {dimension_numbers = #tpu.dot_dimension_numbers<[1], [0], [0], [1], [0, 0, 1, 1], [], []>} : vector<64x128xf32>, vector<128x512xf32>, vector<64x512xf32> -> vector<64x512xf32>
    %61 = vector.extract_strided_slice %58 {offsets = [0, 0], sizes = [64, 128], strides = [1, 1]} : vector<64x512xf32> to vector<64x128xf32>
    %62 = vector.extract_strided_slice %60 {offsets = [0, 0], sizes = [64, 128], strides = [1, 1]} : vector<64x512xf32> to vector<64x128xf32>
    %63 = arith.mulf %61, %62 : vector<64x128xf32>
    %64 = vector.extract_strided_slice %58 {offsets = [0, 128], sizes = [64, 128], strides = [1, 1]} : vector<64x512xf32> to vector<64x128xf32>
    %65 = vector.extract_strided_slice %60 {offsets = [0, 128], sizes = [64, 128], strides = [1, 1]} : vector<64x512xf32> to vector<64x128xf32>
    %66 = arith.mulf %64, %65 : vector<64x128xf32>
    %67 = arith.addf %63, %66 : vector<64x128xf32>
    %68 = vector.extract_strided_slice %58 {offsets = [0, 256], sizes = [64, 128], strides = [1, 1]} : vector<64x512xf32> to vector<64x128xf32>
    %69 = vector.extract_strided_slice %60 {offsets = [0, 256], sizes = [64, 128], strides = [1, 1]} : vector<64x512xf32> to vector<64x128xf32>
    %70 = arith.mulf %68, %69 : vector<64x128xf32>
    %71 = arith.addf %67, %70 : vector<64x128xf32>
    %72 = vector.extract_strided_slice %58 {offsets = [0, 384], sizes = [64, 128], strides = [1, 1]} : vector<64x512xf32> to vector<64x128xf32>
    %73 = vector.extract_strided_slice %60 {offsets = [0, 384], sizes = [64, 128], strides = [1, 1]} : vector<64x512xf32> to vector<64x128xf32>
    %74 = arith.mulf %72, %73 : vector<64x128xf32>
    %75 = arith.addf %71, %74 : vector<64x128xf32>
    %76 = vector.shape_cast %75 : vector<64x128xf32> to vector<1x8x8x128xf32>
    %cst_24 = arith.constant 0.000000e+00 : f32
    %77 = vector.broadcast %cst_24 : f32 to vector<1x10x10x128xf32>
    %c0_25 = arith.constant 0 : index
    %c0_26 = arith.constant 0 : index
    %c0_27 = arith.constant 0 : index
    %c0_28 = arith.constant 0 : index
    %78 = vector.load %arg13[%c0_25, %c0_26, %c0_27, %c0_28] : memref<1x10x10x128xf32, #tpu.memory_space<vmem>>, vector<1x10x10x128xf32>
    tpu.vector_store %arg13[%c0_25, %c0_26, %c0_27, %c0_28], %77 {strides = array<i32>} : memref<1x10x10x128xf32, #tpu.memory_space<vmem>>, vector<1x10x10x128xf32>,
    %c0_29 = arith.constant 0 : index
    %c1 = arith.constant 1 : index
    %c1_30 = arith.constant 1 : index
    %c0_31 = arith.constant 0 : index
    %79 = vector.load %arg13[%c0_29, %c1, %c1_30, %c0_31] : memref<1x10x10x128xf32, #tpu.memory_space<vmem>>, vector<1x8x8x128xf32>
    tpu.vector_store %arg13[%c0_29, %c1, %c1_30, %c0_31], %55 {strides = array<i32>} : memref<1x10x10x128xf32, #tpu.memory_space<vmem>>, vector<1x8x8x128xf32>,
    %c0_32 = arith.constant 0 : index
    %c0_33 = arith.constant 0 : index
    %c0_34 = arith.constant 0 : index
    %c0_35 = arith.constant 0 : index
    %80 = vector.load %arg13[%c0_32, %c0_33, %c0_34, %c0_35] : memref<1x10x10x128xf32, #tpu.memory_space<vmem>>, vector<1x8x8x128xf32>
    %c0_36 = arith.constant 0 : index
    %c0_37 = arith.constant 0 : index
    %81 = vector.load %arg4[%c0_36, %c0_37] : memref<9x128xf32, #tpu.memory_space<vmem>>, vector<1x128xf32>
    %82 = vector.shape_cast %81 : vector<1x128xf32> to vector<128xf32>
    %83 = vector.shape_cast %82 : vector<128xf32> to vector<1x1x1x128xf32>
    %84 = vector.broadcast %83 : vector<1x1x1x128xf32> to vector<1x8x8x128xf32>
    %85 = arith.mulf %80, %84 : vector<1x8x8x128xf32>
    %c0_38 = arith.constant 0 : index
    %c0_39 = arith.constant 0 : index
    %c1_40 = arith.constant 1 : index
    %c0_41 = arith.constant 0 : index
    %86 = vector.load %arg13[%c0_38, %c0_39, %c1_40, %c0_41] : memref<1x10x10x128xf32, #tpu.memory_space<vmem>>, vector<1x8x8x128xf32>
    %c1_42 = arith.constant 1 : index
    %c0_43 = arith.constant 0 : index
    %87 = vector.load %arg4[%c1_42, %c0_43] : memref<9x128xf32, #tpu.memory_space<vmem>>, vector<1x128xf32>
    %88 = vector.shape_cast %87 : vector<1x128xf32> to vector<128xf32>
    %89 = vector.shape_cast %88 : vector<128xf32> to vector<1x1x1x128xf32>
    %90 = vector.broadcast %89 : vector<1x1x1x128xf32> to vector<1x8x8x128xf32>
    %91 = arith.mulf %86, %90 : vector<1x8x8x128xf32>
    %92 = arith.addf %85, %91 : vector<1x8x8x128xf32>
    %c0_44 = arith.constant 0 : index
    %c0_45 = arith.constant 0 : index
    %c2 = arith.constant 2 : index
    %c0_46 = arith.constant 0 : index
    %93 = vector.load %arg13[%c0_44, %c0_45, %c2, %c0_46] : memref<1x10x10x128xf32, #tpu.memory_space<vmem>>, vector<1x8x8x128xf32>
    %c2_47 = arith.constant 2 : index
    %c0_48 = arith.constant 0 : index
    %94 = vector.load %arg4[%c2_47, %c0_48] : memref<9x128xf32, #tpu.memory_space<vmem>>, vector<1x128xf32>
    %95 = vector.shape_cast %94 : vector<1x128xf32> to vector<128xf32>
    %96 = vector.shape_cast %95 : vector<128xf32> to vector<1x1x1x128xf32>
    %97 = vector.broadcast %96 : vector<1x1x1x128xf32> to vector<1x8x8x128xf32>
    %98 = arith.mulf %93, %97 : vector<1x8x8x128xf32>
    %99 = arith.addf %92, %98 : vector<1x8x8x128xf32>
    %c0_49 = arith.constant 0 : index
    %c1_50 = arith.constant 1 : index
    %c0_51 = arith.constant 0 : index
    %c0_52 = arith.constant 0 : index
    %100 = vector.load %arg13[%c0_49, %c1_50, %c0_51, %c0_52] : memref<1x10x10x128xf32, #tpu.memory_space<vmem>>, vector<1x8x8x128xf32>
    %c3 = arith.constant 3 : index
    %c0_53 = arith.constant 0 : index
    %101 = vector.load %arg4[%c3, %c0_53] : memref<9x128xf32, #tpu.memory_space<vmem>>, vector<1x128xf32>
    %102 = vector.shape_cast %101 : vector<1x128xf32> to vector<128xf32>
    %103 = vector.shape_cast %102 : vector<128xf32> to vector<1x1x1x128xf32>
    %104 = vector.broadcast %103 : vector<1x1x1x128xf32> to vector<1x8x8x128xf32>
    %105 = arith.mulf %100, %104 : vector<1x8x8x128xf32>
    %106 = arith.addf %99, %105 : vector<1x8x8x128xf32>
    %c0_54 = arith.constant 0 : index
    %c1_55 = arith.constant 1 : index
    %c1_56 = arith.constant 1 : index
    %c0_57 = arith.constant 0 : index
    %107 = vector.load %arg13[%c0_54, %c1_55, %c1_56, %c0_57] : memref<1x10x10x128xf32, #tpu.memory_space<vmem>>, vector<1x8x8x128xf32>
    %c4 = arith.constant 4 : index
    %c0_58 = arith.constant 0 : index
    %108 = vector.load %arg4[%c4, %c0_58] : memref<9x128xf32, #tpu.memory_space<vmem>>, vector<1x128xf32>
    %109 = vector.shape_cast %108 : vector<1x128xf32> to vector<128xf32>
    %110 = vector.shape_cast %109 : vector<128xf32> to vector<1x1x1x128xf32>
    %111 = vector.broadcast %110 : vector<1x1x1x128xf32> to vector<1x8x8x128xf32>
    %112 = arith.mulf %107, %111 : vector<1x8x8x128xf32>
    %113 = arith.addf %106, %112 : vector<1x8x8x128xf32>
    %c0_59 = arith.constant 0 : index
    %c1_60 = arith.constant 1 : index
    %c2_61 = arith.constant 2 : index
    %c0_62 = arith.constant 0 : index
    %114 = vector.load %arg13[%c0_59, %c1_60, %c2_61, %c0_62] : memref<1x10x10x128xf32, #tpu.memory_space<vmem>>, vector<1x8x8x128xf32>
    %c5 = arith.constant 5 : index
    %c0_63 = arith.constant 0 : index
    %115 = vector.load %arg4[%c5, %c0_63] : memref<9x128xf32, #tpu.memory_space<vmem>>, vector<1x128xf32>
    %116 = vector.shape_cast %115 : vector<1x128xf32> to vector<128xf32>
    %117 = vector.shape_cast %116 : vector<128xf32> to vector<1x1x1x128xf32>
    %118 = vector.broadcast %117 : vector<1x1x1x128xf32> to vector<1x8x8x128xf32>
    %119 = arith.mulf %114, %118 : vector<1x8x8x128xf32>
    %120 = arith.addf %113, %119 : vector<1x8x8x128xf32>
    %c0_64 = arith.constant 0 : index
    %c2_65 = arith.constant 2 : index
    %c0_66 = arith.constant 0 : index
    %c0_67 = arith.constant 0 : index
    %121 = vector.load %arg13[%c0_64, %c2_65, %c0_66, %c0_67] : memref<1x10x10x128xf32, #tpu.memory_space<vmem>>, vector<1x8x8x128xf32>
    %c6 = arith.constant 6 : index
    %c0_68 = arith.constant 0 : index
    %122 = vector.load %arg4[%c6, %c0_68] : memref<9x128xf32, #tpu.memory_space<vmem>>, vector<1x128xf32>
    %123 = vector.shape_cast %122 : vector<1x128xf32> to vector<128xf32>
    %124 = vector.shape_cast %123 : vector<128xf32> to vector<1x1x1x128xf32>
    %125 = vector.broadcast %124 : vector<1x1x1x128xf32> to vector<1x8x8x128xf32>
    %126 = arith.mulf %121, %125 : vector<1x8x8x128xf32>
    %127 = arith.addf %120, %126 : vector<1x8x8x128xf32>
    %c0_69 = arith.constant 0 : index
    %c2_70 = arith.constant 2 : index
    %c1_71 = arith.constant 1 : index
    %c0_72 = arith.constant 0 : index
    %128 = vector.load %arg13[%c0_69, %c2_70, %c1_71, %c0_72] : memref<1x10x10x128xf32, #tpu.memory_space<vmem>>, vector<1x8x8x128xf32>
    %c7 = arith.constant 7 : index
    %c0_73 = arith.constant 0 : index
    %129 = vector.load %arg4[%c7, %c0_73] : memref<9x128xf32, #tpu.memory_space<vmem>>, vector<1x128xf32>
    %130 = vector.shape_cast %129 : vector<1x128xf32> to vector<128xf32>
    %131 = vector.shape_cast %130 : vector<128xf32> to vector<1x1x1x128xf32>
    %132 = vector.broadcast %131 : vector<1x1x1x128xf32> to vector<1x8x8x128xf32>
    %133 = arith.mulf %128, %132 : vector<1x8x8x128xf32>
    %134 = arith.addf %127, %133 : vector<1x8x8x128xf32>
    %c0_74 = arith.constant 0 : index
    %c2_75 = arith.constant 2 : index
    %c2_76 = arith.constant 2 : index
    %c0_77 = arith.constant 0 : index
    %135 = vector.load %arg13[%c0_74, %c2_75, %c2_76, %c0_77] : memref<1x10x10x128xf32, #tpu.memory_space<vmem>>, vector<1x8x8x128xf32>
    %c8 = arith.constant 8 : index
    %c0_78 = arith.constant 0 : index
    %136 = vector.load %arg4[%c8, %c0_78] : memref<9x128xf32, #tpu.memory_space<vmem>>, vector<1x128xf32>
    %137 = vector.shape_cast %136 : vector<1x128xf32> to vector<128xf32>
    %138 = vector.shape_cast %137 : vector<128xf32> to vector<1x1x1x128xf32>
    %139 = vector.broadcast %138 : vector<1x1x1x128xf32> to vector<1x8x8x128xf32>
    %140 = arith.mulf %135, %139 : vector<1x8x8x128xf32>
    %141 = arith.addf %134, %140 : vector<1x8x8x128xf32>
    %c0_79 = arith.constant 0 : index
    %c0_80 = arith.constant 0 : index
    %142 = vector.load %arg5[%c0_79, %c0_80] : memref<1x128xf32, #tpu.memory_space<vmem>>, vector<1x128xf32>
    %143 = vector.shape_cast %142 : vector<1x128xf32> to vector<128xf32>
    %144 = vector.shape_cast %143 : vector<128xf32> to vector<1x1x1x128xf32>
    %145 = vector.broadcast %144 : vector<1x1x1x128xf32> to vector<1x8x8x128xf32>
    %146 = arith.addf %141, %145 : vector<1x8x8x128xf32>
    %c0_81 = arith.constant 0 : index
    %c1_82 = arith.constant 1 : index
    %c1_83 = arith.constant 1 : index
    %c0_84 = arith.constant 0 : index
    %147 = vector.load %arg13[%c0_81, %c1_82, %c1_83, %c0_84] : memref<1x10x10x128xf32, #tpu.memory_space<vmem>>, vector<1x8x8x128xf32>
    tpu.vector_store %arg13[%c0_81, %c1_82, %c1_83, %c0_84], %76 {strides = array<i32>} : memref<1x10x10x128xf32, #tpu.memory_space<vmem>>, vector<1x8x8x128xf32>,
    %c0_85 = arith.constant 0 : index
    %c0_86 = arith.constant 0 : index
    %c0_87 = arith.constant 0 : index
    %c0_88 = arith.constant 0 : index
    %148 = vector.load %arg13[%c0_85, %c0_86, %c0_87, %c0_88] : memref<1x10x10x128xf32, #tpu.memory_space<vmem>>, vector<1x8x8x128xf32>
    %c0_89 = arith.constant 0 : index
    %c0_90 = arith.constant 0 : index
    %149 = vector.load %arg6[%c0_89, %c0_90] : memref<9x128xf32, #tpu.memory_space<vmem>>, vector<1x128xf32>
    %150 = vector.shape_cast %149 : vector<1x128xf32> to vector<128xf32>
    %151 = vector.shape_cast %150 : vector<128xf32> to vector<1x1x1x128xf32>
    %152 = vector.broadcast %151 : vector<1x1x1x128xf32> to vector<1x8x8x128xf32>
    %153 = arith.mulf %148, %152 : vector<1x8x8x128xf32>
    %c0_91 = arith.constant 0 : index
    %c0_92 = arith.constant 0 : index
    %c1_93 = arith.constant 1 : index
    %c0_94 = arith.constant 0 : index
    %154 = vector.load %arg13[%c0_91, %c0_92, %c1_93, %c0_94] : memref<1x10x10x128xf32, #tpu.memory_space<vmem>>, vector<1x8x8x128xf32>
    %c1_95 = arith.constant 1 : index
    %c0_96 = arith.constant 0 : index
    %155 = vector.load %arg6[%c1_95, %c0_96] : memref<9x128xf32, #tpu.memory_space<vmem>>, vector<1x128xf32>
    %156 = vector.shape_cast %155 : vector<1x128xf32> to vector<128xf32>
    %157 = vector.shape_cast %156 : vector<128xf32> to vector<1x1x1x128xf32>
    %158 = vector.broadcast %157 : vector<1x1x1x128xf32> to vector<1x8x8x128xf32>
    %159 = arith.mulf %154, %158 : vector<1x8x8x128xf32>
    %160 = arith.addf %153, %159 : vector<1x8x8x128xf32>
    %c0_97 = arith.constant 0 : index
    %c0_98 = arith.constant 0 : index
    %c2_99 = arith.constant 2 : index
    %c0_100 = arith.constant 0 : index
    %161 = vector.load %arg13[%c0_97, %c0_98, %c2_99, %c0_100] : memref<1x10x10x128xf32, #tpu.memory_space<vmem>>, vector<1x8x8x128xf32>
    %c2_101 = arith.constant 2 : index
    %c0_102 = arith.constant 0 : index
    %162 = vector.load %arg6[%c2_101, %c0_102] : memref<9x128xf32, #tpu.memory_space<vmem>>, vector<1x128xf32>
    %163 = vector.shape_cast %162 : vector<1x128xf32> to vector<128xf32>
    %164 = vector.shape_cast %163 : vector<128xf32> to vector<1x1x1x128xf32>
    %165 = vector.broadcast %164 : vector<1x1x1x128xf32> to vector<1x8x8x128xf32>
    %166 = arith.mulf %161, %165 : vector<1x8x8x128xf32>
    %167 = arith.addf %160, %166 : vector<1x8x8x128xf32>
    %c0_103 = arith.constant 0 : index
    %c1_104 = arith.constant 1 : index
    %c0_105 = arith.constant 0 : index
    %c0_106 = arith.constant 0 : index
    %168 = vector.load %arg13[%c0_103, %c1_104, %c0_105, %c0_106] : memref<1x10x10x128xf32, #tpu.memory_space<vmem>>, vector<1x8x8x128xf32>
    %c3_107 = arith.constant 3 : index
    %c0_108 = arith.constant 0 : index
    %169 = vector.load %arg6[%c3_107, %c0_108] : memref<9x128xf32, #tpu.memory_space<vmem>>, vector<1x128xf32>
    %170 = vector.shape_cast %169 : vector<1x128xf32> to vector<128xf32>
    %171 = vector.shape_cast %170 : vector<128xf32> to vector<1x1x1x128xf32>
    %172 = vector.broadcast %171 : vector<1x1x1x128xf32> to vector<1x8x8x128xf32>
    %173 = arith.mulf %168, %172 : vector<1x8x8x128xf32>
    %174 = arith.addf %167, %173 : vector<1x8x8x128xf32>
    %c0_109 = arith.constant 0 : index
    %c1_110 = arith.constant 1 : index
    %c1_111 = arith.constant 1 : index
    %c0_112 = arith.constant 0 : index
    %175 = vector.load %arg13[%c0_109, %c1_110, %c1_111, %c0_112] : memref<1x10x10x128xf32, #tpu.memory_space<vmem>>, vector<1x8x8x128xf32>
    %c4_113 = arith.constant 4 : index
    %c0_114 = arith.constant 0 : index
    %176 = vector.load %arg6[%c4_113, %c0_114] : memref<9x128xf32, #tpu.memory_space<vmem>>, vector<1x128xf32>
    %177 = vector.shape_cast %176 : vector<1x128xf32> to vector<128xf32>
    %178 = vector.shape_cast %177 : vector<128xf32> to vector<1x1x1x128xf32>
    %179 = vector.broadcast %178 : vector<1x1x1x128xf32> to vector<1x8x8x128xf32>
    %180 = arith.mulf %175, %179 : vector<1x8x8x128xf32>
    %181 = arith.addf %174, %180 : vector<1x8x8x128xf32>
    %c0_115 = arith.constant 0 : index
    %c1_116 = arith.constant 1 : index
    %c2_117 = arith.constant 2 : index
    %c0_118 = arith.constant 0 : index
    %182 = vector.load %arg13[%c0_115, %c1_116, %c2_117, %c0_118] : memref<1x10x10x128xf32, #tpu.memory_space<vmem>>, vector<1x8x8x128xf32>
    %c5_119 = arith.constant 5 : index
    %c0_120 = arith.constant 0 : index
    %183 = vector.load %arg6[%c5_119, %c0_120] : memref<9x128xf32, #tpu.memory_space<vmem>>, vector<1x128xf32>
    %184 = vector.shape_cast %183 : vector<1x128xf32> to vector<128xf32>
    %185 = vector.shape_cast %184 : vector<128xf32> to vector<1x1x1x128xf32>
    %186 = vector.broadcast %185 : vector<1x1x1x128xf32> to vector<1x8x8x128xf32>
    %187 = arith.mulf %182, %186 : vector<1x8x8x128xf32>
    %188 = arith.addf %181, %187 : vector<1x8x8x128xf32>
    %c0_121 = arith.constant 0 : index
    %c2_122 = arith.constant 2 : index
    %c0_123 = arith.constant 0 : index
    %c0_124 = arith.constant 0 : index
    %189 = vector.load %arg13[%c0_121, %c2_122, %c0_123, %c0_124] : memref<1x10x10x128xf32, #tpu.memory_space<vmem>>, vector<1x8x8x128xf32>
    %c6_125 = arith.constant 6 : index
    %c0_126 = arith.constant 0 : index
    %190 = vector.load %arg6[%c6_125, %c0_126] : memref<9x128xf32, #tpu.memory_space<vmem>>, vector<1x128xf32>
    %191 = vector.shape_cast %190 : vector<1x128xf32> to vector<128xf32>
    %192 = vector.shape_cast %191 : vector<128xf32> to vector<1x1x1x128xf32>
    %193 = vector.broadcast %192 : vector<1x1x1x128xf32> to vector<1x8x8x128xf32>
    %194 = arith.mulf %189, %193 : vector<1x8x8x128xf32>
    %195 = arith.addf %188, %194 : vector<1x8x8x128xf32>
    %c0_127 = arith.constant 0 : index
    %c2_128 = arith.constant 2 : index
    %c1_129 = arith.constant 1 : index
    %c0_130 = arith.constant 0 : index
    %196 = vector.load %arg13[%c0_127, %c2_128, %c1_129, %c0_130] : memref<1x10x10x128xf32, #tpu.memory_space<vmem>>, vector<1x8x8x128xf32>
    %c7_131 = arith.constant 7 : index
    %c0_132 = arith.constant 0 : index
    %197 = vector.load %arg6[%c7_131, %c0_132] : memref<9x128xf32, #tpu.memory_space<vmem>>, vector<1x128xf32>
    %198 = vector.shape_cast %197 : vector<1x128xf32> to vector<128xf32>
    %199 = vector.shape_cast %198 : vector<128xf32> to vector<1x1x1x128xf32>
    %200 = vector.broadcast %199 : vector<1x1x1x128xf32> to vector<1x8x8x128xf32>
    %201 = arith.mulf %196, %200 : vector<1x8x8x128xf32>
    %202 = arith.addf %195, %201 : vector<1x8x8x128xf32>
    %c0_133 = arith.constant 0 : index
    %c2_134 = arith.constant 2 : index
    %c2_135 = arith.constant 2 : index
    %c0_136 = arith.constant 0 : index
    %203 = vector.load %arg13[%c0_133, %c2_134, %c2_135, %c0_136] : memref<1x10x10x128xf32, #tpu.memory_space<vmem>>, vector<1x8x8x128xf32>
    %c8_137 = arith.constant 8 : index
    %c0_138 = arith.constant 0 : index
    %204 = vector.load %arg6[%c8_137, %c0_138] : memref<9x128xf32, #tpu.memory_space<vmem>>, vector<1x128xf32>
    %205 = vector.shape_cast %204 : vector<1x128xf32> to vector<128xf32>
    %206 = vector.shape_cast %205 : vector<128xf32> to vector<1x1x1x128xf32>
    %207 = vector.broadcast %206 : vector<1x1x1x128xf32> to vector<1x8x8x128xf32>
    %208 = arith.mulf %203, %207 : vector<1x8x8x128xf32>
    %209 = arith.addf %202, %208 : vector<1x8x8x128xf32>
    %c0_139 = arith.constant 0 : index
    %c0_140 = arith.constant 0 : index
    %210 = vector.load %arg7[%c0_139, %c0_140] : memref<1x128xf32, #tpu.memory_space<vmem>>, vector<1x128xf32>
    %211 = vector.shape_cast %210 : vector<1x128xf32> to vector<128xf32>
    %212 = vector.shape_cast %211 : vector<128xf32> to vector<1x1x1x128xf32>
    %213 = vector.broadcast %212 : vector<1x1x1x128xf32> to vector<1x8x8x128xf32>
    %214 = arith.addf %209, %213 : vector<1x8x8x128xf32>
    %215 = arith.addf %146, %214 : vector<1x8x8x128xf32>
    %cst_141 = arith.constant dense<0.000000e+00> : vector<1x8x8xf32>
    %216 = vector.multi_reduction <add>, %215, %cst_141 [3] : vector<1x8x8x128xf32> to vector<1x8x8xf32>
    %217 = vector.shape_cast %216 : vector<1x8x8xf32> to vector<1x8x8x1xf32>
    %cst_142 = arith.constant dense<0.000000e+00> : vector<1x8x1xf32>
    %218 = vector.multi_reduction <add>, %217, %cst_142 [2] : vector<1x8x8x1xf32> to vector<1x8x1xf32>
    %219 = vector.shape_cast %218 : vector<1x8x1xf32> to vector<1x8x1x1xf32>
    %cst_143 = arith.constant dense<0.000000e+00> : vector<1x1x1xf32>
    %220 = vector.multi_reduction <add>, %219, %cst_143 [1] : vector<1x8x1x1xf32> to vector<1x1x1xf32>
    %221 = vector.shape_cast %220 : vector<1x1x1xf32> to vector<1x1x1x1xf32>
    %cst_144 = arith.constant 1.22070313E-4 : f32
    %222 = vector.broadcast %cst_144 : f32 to vector<1x1x1x1xf32>
    %223 = arith.mulf %221, %222 : vector<1x1x1x1xf32>
    %224 = arith.mulf %215, %215 : vector<1x8x8x128xf32>
    %cst_145 = arith.constant dense<0.000000e+00> : vector<1x8x8xf32>
    %225 = vector.multi_reduction <add>, %224, %cst_145 [3] : vector<1x8x8x128xf32> to vector<1x8x8xf32>
    %226 = vector.shape_cast %225 : vector<1x8x8xf32> to vector<1x8x8x1xf32>
    %cst_146 = arith.constant dense<0.000000e+00> : vector<1x8x1xf32>
    %227 = vector.multi_reduction <add>, %226, %cst_146 [2] : vector<1x8x8x1xf32> to vector<1x8x1xf32>
    %228 = vector.shape_cast %227 : vector<1x8x1xf32> to vector<1x8x1x1xf32>
    %cst_147 = arith.constant dense<0.000000e+00> : vector<1x1x1xf32>
    %229 = vector.multi_reduction <add>, %228, %cst_147 [1] : vector<1x8x1x1xf32> to vector<1x1x1xf32>
    %230 = vector.shape_cast %229 : vector<1x1x1xf32> to vector<1x1x1x1xf32>
    %cst_148 = arith.constant 1.22070313E-4 : f32
    %231 = vector.broadcast %cst_148 : f32 to vector<1x1x1x1xf32>
    %232 = arith.mulf %230, %231 : vector<1x1x1x1xf32>
    %233 = arith.mulf %223, %223 : vector<1x1x1x1xf32>
    %234 = arith.subf %232, %233 : vector<1x1x1x1xf32>
    %235 = vector.broadcast %223 : vector<1x1x1x1xf32> to vector<1x8x8x128xf32>
    %236 = arith.subf %215, %235 : vector<1x8x8x128xf32>
    %cst_149 = arith.constant 9.99999974E-6 : f32
    %237 = vector.broadcast %cst_149 : f32 to vector<1x1x1x1xf32>
    %238 = arith.addf %234, %237 : vector<1x1x1x1xf32>
    %239 = math.rsqrt %238 : vector<1x1x1x1xf32>
    %240 = vector.broadcast %239 : vector<1x1x1x1xf32> to vector<1x8x8x128xf32>
    %241 = arith.mulf %236, %240 : vector<1x8x8x128xf32>
    %c0_150 = arith.constant 0 : index
    %c0_151 = arith.constant 0 : index
    %242 = vector.load %arg10[%c0_150, %c0_151] : memref<1x128xf32, #tpu.memory_space<vmem>>, vector<1x128xf32>
    %243 = vector.shape_cast %242 : vector<1x128xf32> to vector<128xf32>
    %244 = vector.shape_cast %243 : vector<128xf32> to vector<1x1x1x128xf32>
    %245 = vector.broadcast %244 : vector<1x1x1x128xf32> to vector<1x8x8x128xf32>
    %246 = arith.mulf %241, %245 : vector<1x8x8x128xf32>
    %c0_152 = arith.constant 0 : index
    %c0_153 = arith.constant 0 : index
    %247 = vector.load %arg11[%c0_152, %c0_153] : memref<1x128xf32, #tpu.memory_space<vmem>>, vector<1x128xf32>
    %248 = vector.shape_cast %247 : vector<1x128xf32> to vector<128xf32>
    %249 = vector.shape_cast %248 : vector<128xf32> to vector<1x1x1x128xf32>
    %250 = vector.broadcast %249 : vector<1x1x1x128xf32> to vector<1x8x8x128xf32>
    %251 = arith.addf %246, %250 : vector<1x8x8x128xf32>
    %c0_154 = arith.constant 0 : index
    %c1_155 = arith.constant 1 : index
    %c1_156 = arith.constant 1 : index
    %c0_157 = arith.constant 0 : index
    %252 = vector.load %arg13[%c0_154, %c1_155, %c1_156, %c0_157] : memref<1x10x10x128xf32, #tpu.memory_space<vmem>>, vector<1x8x8x128xf32>
    tpu.vector_store %arg13[%c0_154, %c1_155, %c1_156, %c0_157], %251 {strides = array<i32>} : memref<1x10x10x128xf32, #tpu.memory_space<vmem>>, vector<1x8x8x128xf32>,
    %c0_158 = arith.constant 0 : index
    %c0_159 = arith.constant 0 : index
    %c0_160 = arith.constant 0 : index
    %c0_161 = arith.constant 0 : index
    %253 = vector.load %arg13[%c0_158, %c0_159, %c0_160, %c0_161] : memref<1x10x10x128xf32, #tpu.memory_space<vmem>>, vector<1x8x8x128xf32>
    %c0_162 = arith.constant 0 : index
    %c0_163 = arith.constant 0 : index
    %254 = vector.load %arg8[%c0_162, %c0_163] : memref<9x128xf32, #tpu.memory_space<vmem>>, vector<1x128xf32>
    %255 = vector.shape_cast %254 : vector<1x128xf32> to vector<128xf32>
    %256 = vector.shape_cast %255 : vector<128xf32> to vector<1x1x1x128xf32>
    %257 = vector.broadcast %256 : vector<1x1x1x128xf32> to vector<1x8x8x128xf32>
    %258 = arith.mulf %253, %257 : vector<1x8x8x128xf32>
    %c0_164 = arith.constant 0 : index
    %c0_165 = arith.constant 0 : index
    %c1_166 = arith.constant 1 : index
    %c0_167 = arith.constant 0 : index
    %259 = vector.load %arg13[%c0_164, %c0_165, %c1_166, %c0_167] : memref<1x10x10x128xf32, #tpu.memory_space<vmem>>, vector<1x8x8x128xf32>
    %c1_168 = arith.constant 1 : index
    %c0_169 = arith.constant 0 : index
    %260 = vector.load %arg8[%c1_168, %c0_169] : memref<9x128xf32, #tpu.memory_space<vmem>>, vector<1x128xf32>
    %261 = vector.shape_cast %260 : vector<1x128xf32> to vector<128xf32>
    %262 = vector.shape_cast %261 : vector<128xf32> to vector<1x1x1x128xf32>
    %263 = vector.broadcast %262 : vector<1x1x1x128xf32> to vector<1x8x8x128xf32>
    %264 = arith.mulf %259, %263 : vector<1x8x8x128xf32>
    %265 = arith.addf %258, %264 : vector<1x8x8x128xf32>
    %c0_170 = arith.constant 0 : index
    %c0_171 = arith.constant 0 : index
    %c2_172 = arith.constant 2 : index
    %c0_173 = arith.constant 0 : index
    %266 = vector.load %arg13[%c0_170, %c0_171, %c2_172, %c0_173] : memref<1x10x10x128xf32, #tpu.memory_space<vmem>>, vector<1x8x8x128xf32>
    %c2_174 = arith.constant 2 : index
    %c0_175 = arith.constant 0 : index
    %267 = vector.load %arg8[%c2_174, %c0_175] : memref<9x128xf32, #tpu.memory_space<vmem>>, vector<1x128xf32>
    %268 = vector.shape_cast %267 : vector<1x128xf32> to vector<128xf32>
    %269 = vector.shape_cast %268 : vector<128xf32> to vector<1x1x1x128xf32>
    %270 = vector.broadcast %269 : vector<1x1x1x128xf32> to vector<1x8x8x128xf32>
    %271 = arith.mulf %266, %270 : vector<1x8x8x128xf32>
    %272 = arith.addf %265, %271 : vector<1x8x8x128xf32>
    %c0_176 = arith.constant 0 : index
    %c1_177 = arith.constant 1 : index
    %c0_178 = arith.constant 0 : index
    %c0_179 = arith.constant 0 : index
    %273 = vector.load %arg13[%c0_176, %c1_177, %c0_178, %c0_179] : memref<1x10x10x128xf32, #tpu.memory_space<vmem>>, vector<1x8x8x128xf32>
    %c3_180 = arith.constant 3 : index
    %c0_181 = arith.constant 0 : index
    %274 = vector.load %arg8[%c3_180, %c0_181] : memref<9x128xf32, #tpu.memory_space<vmem>>, vector<1x128xf32>
    %275 = vector.shape_cast %274 : vector<1x128xf32> to vector<128xf32>
    %276 = vector.shape_cast %275 : vector<128xf32> to vector<1x1x1x128xf32>
    %277 = vector.broadcast %276 : vector<1x1x1x128xf32> to vector<1x8x8x128xf32>
    %278 = arith.mulf %273, %277 : vector<1x8x8x128xf32>
    %279 = arith.addf %272, %278 : vector<1x8x8x128xf32>
    %c0_182 = arith.constant 0 : index
    %c1_183 = arith.constant 1 : index
    %c1_184 = arith.constant 1 : index
    %c0_185 = arith.constant 0 : index
    %280 = vector.load %arg13[%c0_182, %c1_183, %c1_184, %c0_185] : memref<1x10x10x128xf32, #tpu.memory_space<vmem>>, vector<1x8x8x128xf32>
    %c4_186 = arith.constant 4 : index
    %c0_187 = arith.constant 0 : index
    %281 = vector.load %arg8[%c4_186, %c0_187] : memref<9x128xf32, #tpu.memory_space<vmem>>, vector<1x128xf32>
    %282 = vector.shape_cast %281 : vector<1x128xf32> to vector<128xf32>
    %283 = vector.shape_cast %282 : vector<128xf32> to vector<1x1x1x128xf32>
    %284 = vector.broadcast %283 : vector<1x1x1x128xf32> to vector<1x8x8x128xf32>
    %285 = arith.mulf %280, %284 : vector<1x8x8x128xf32>
    %286 = arith.addf %279, %285 : vector<1x8x8x128xf32>
    %c0_188 = arith.constant 0 : index
    %c1_189 = arith.constant 1 : index
    %c2_190 = arith.constant 2 : index
    %c0_191 = arith.constant 0 : index
    %287 = vector.load %arg13[%c0_188, %c1_189, %c2_190, %c0_191] : memref<1x10x10x128xf32, #tpu.memory_space<vmem>>, vector<1x8x8x128xf32>
    %c5_192 = arith.constant 5 : index
    %c0_193 = arith.constant 0 : index
    %288 = vector.load %arg8[%c5_192, %c0_193] : memref<9x128xf32, #tpu.memory_space<vmem>>, vector<1x128xf32>
    %289 = vector.shape_cast %288 : vector<1x128xf32> to vector<128xf32>
    %290 = vector.shape_cast %289 : vector<128xf32> to vector<1x1x1x128xf32>
    %291 = vector.broadcast %290 : vector<1x1x1x128xf32> to vector<1x8x8x128xf32>
    %292 = arith.mulf %287, %291 : vector<1x8x8x128xf32>
    %293 = arith.addf %286, %292 : vector<1x8x8x128xf32>
    %c0_194 = arith.constant 0 : index
    %c2_195 = arith.constant 2 : index
    %c0_196 = arith.constant 0 : index
    %c0_197 = arith.constant 0 : index
    %294 = vector.load %arg13[%c0_194, %c2_195, %c0_196, %c0_197] : memref<1x10x10x128xf32, #tpu.memory_space<vmem>>, vector<1x8x8x128xf32>
    %c6_198 = arith.constant 6 : index
    %c0_199 = arith.constant 0 : index
    %295 = vector.load %arg8[%c6_198, %c0_199] : memref<9x128xf32, #tpu.memory_space<vmem>>, vector<1x128xf32>
    %296 = vector.shape_cast %295 : vector<1x128xf32> to vector<128xf32>
    %297 = vector.shape_cast %296 : vector<128xf32> to vector<1x1x1x128xf32>
    %298 = vector.broadcast %297 : vector<1x1x1x128xf32> to vector<1x8x8x128xf32>
    %299 = arith.mulf %294, %298 : vector<1x8x8x128xf32>
    %300 = arith.addf %293, %299 : vector<1x8x8x128xf32>
    %c0_200 = arith.constant 0 : index
    %c2_201 = arith.constant 2 : index
    %c1_202 = arith.constant 1 : index
    %c0_203 = arith.constant 0 : index
    %301 = vector.load %arg13[%c0_200, %c2_201, %c1_202, %c0_203] : memref<1x10x10x128xf32, #tpu.memory_space<vmem>>, vector<1x8x8x128xf32>
    %c7_204 = arith.constant 7 : index
    %c0_205 = arith.constant 0 : index
    %302 = vector.load %arg8[%c7_204, %c0_205] : memref<9x128xf32, #tpu.memory_space<vmem>>, vector<1x128xf32>
    %303 = vector.shape_cast %302 : vector<1x128xf32> to vector<128xf32>
    %304 = vector.shape_cast %303 : vector<128xf32> to vector<1x1x1x128xf32>
    %305 = vector.broadcast %304 : vector<1x1x1x128xf32> to vector<1x8x8x128xf32>
    %306 = arith.mulf %301, %305 : vector<1x8x8x128xf32>
    %307 = arith.addf %300, %306 : vector<1x8x8x128xf32>
    %c0_206 = arith.constant 0 : index
    %c2_207 = arith.constant 2 : index
    %c2_208 = arith.constant 2 : index
    %c0_209 = arith.constant 0 : index
    %308 = vector.load %arg13[%c0_206, %c2_207, %c2_208, %c0_209] : memref<1x10x10x128xf32, #tpu.memory_space<vmem>>, vector<1x8x8x128xf32>
    %c8_210 = arith.constant 8 : index
    %c0_211 = arith.constant 0 : index
    %309 = vector.load %arg8[%c8_210, %c0_211] : memref<9x128xf32, #tpu.memory_space<vmem>>, vector<1x128xf32>
    %310 = vector.shape_cast %309 : vector<1x128xf32> to vector<128xf32>
    %311 = vector.shape_cast %310 : vector<128xf32> to vector<1x1x1x128xf32>
    %312 = vector.broadcast %311 : vector<1x1x1x128xf32> to vector<1x8x8x128xf32>
    %313 = arith.mulf %308, %312 : vector<1x8x8x128xf32>
    %314 = arith.addf %307, %313 : vector<1x8x8x128xf32>
    %c0_212 = arith.constant 0 : index
    %c0_213 = arith.constant 0 : index
    %315 = vector.load %arg9[%c0_212, %c0_213] : memref<1x128xf32, #tpu.memory_space<vmem>>, vector<1x128xf32>
    %316 = vector.shape_cast %315 : vector<1x128xf32> to vector<128xf32>
    %317 = vector.shape_cast %316 : vector<128xf32> to vector<1x1x1x128xf32>
    %318 = vector.broadcast %317 : vector<1x1x1x128xf32> to vector<1x8x8x128xf32>
    %319 = arith.addf %314, %318 : vector<1x8x8x128xf32>
    %c0_214 = arith.constant 0 : index
    %c0_215 = arith.constant 0 : index
    %c0_216 = arith.constant 0 : index
    %c0_217 = arith.constant 0 : index
    %320 = vector.load %arg12[%c0_214, %c0_215, %c0_216, %c0_217] : memref<1x8x8x128xf32, #tpu.memory_space<vmem>>, vector<1x8x8x128xf32>
    tpu.vector_store %arg12[%c0_214, %c0_215, %c0_216, %c0_217], %319 {strides = array<i32>} : memref<1x8x8x128xf32, #tpu.memory_space<vmem>>, vector<1x8x8x128xf32>,
    return
  }
  func.func @transform_0(%arg0: i32) -> (i32, i32, i32, i32) {
    %c0_i32 = arith.constant 0 : i32
    %c0_i32_0 = arith.constant 0 : i32
    %c0_i32_1 = arith.constant 0 : i32
    %c0_i32_2 = arith.constant 0 : i32
    return %arg0, %c0_i32, %c0_i32_0, %c0_i32_1 : i32, i32, i32, i32
  }
  func.func @transform_1(%arg0: i32) -> (i32, i32) {
    %c0_i32 = arith.constant 0 : i32
    %c0_i32_0 = arith.constant 0 : i32
    %c0_i32_1 = arith.constant 0 : i32
    return %c0_i32, %c0_i32_0 : i32, i32
  }
  func.func @transform_2(%arg0: i32) -> (i32, i32) {
    %c0_i32 = arith.constant 0 : i32
    %c0_i32_0 = arith.constant 0 : i32
    %c0_i32_1 = arith.constant 0 : i32
    return %c0_i32, %c0_i32_0 : i32, i32
  }
  func.func @transform_3(%arg0: i32) -> (i32, i32) {
    %c0_i32 = arith.constant 0 : i32
    %c0_i32_0 = arith.constant 0 : i32
    %c0_i32_1 = arith.constant 0 : i32
    return %c0_i32, %c0_i32_0 : i32, i32
  }
  func.func @transform_4(%arg0: i32) -> (i32, i32) {
    %c0_i32 = arith.constant 0 : i32
    %c0_i32_0 = arith.constant 0 : i32
    %c0_i32_1 = arith.constant 0 : i32
    return %c0_i32, %c0_i32_0 : i32, i32
  }
  func.func @transform_5(%arg0: i32) -> (i32, i32) {
    %c0_i32 = arith.constant 0 : i32
    %c0_i32_0 = arith.constant 0 : i32
    %c0_i32_1 = arith.constant 0 : i32
    return %c0_i32, %c0_i32_0 : i32, i32
  }
  func.func @transform_6(%arg0: i32) -> (i32, i32) {
    %c0_i32 = arith.constant 0 : i32
    %c0_i32_0 = arith.constant 0 : i32
    %c0_i32_1 = arith.constant 0 : i32
    return %c0_i32, %c0_i32_0 : i32, i32
  }
  func.func @transform_7(%arg0: i32) -> (i32, i32) {
    %c0_i32 = arith.constant 0 : i32
    %c0_i32_0 = arith.constant 0 : i32
    %c0_i32_1 = arith.constant 0 : i32
    return %c0_i32, %c0_i32_0 : i32, i32
  }
  func.func @transform_8(%arg0: i32) -> (i32, i32) {
    %c0_i32 = arith.constant 0 : i32
    %c0_i32_0 = arith.constant 0 : i32
    %c0_i32_1 = arith.constant 0 : i32
    return %c0_i32, %c0_i32_0 : i32, i32
  }
  func.func @transform_9(%arg0: i32) -> (i32, i32) {
    %c0_i32 = arith.constant 0 : i32
    %c0_i32_0 = arith.constant 0 : i32
    %c0_i32_1 = arith.constant 0 : i32
    return %c0_i32, %c0_i32_0 : i32, i32
  }
  func.func @transform_10(%arg0: i32) -> (i32, i32) {
    %c0_i32 = arith.constant 0 : i32
    %c0_i32_0 = arith.constant 0 : i32
    %c0_i32_1 = arith.constant 0 : i32
    return %c0_i32, %c0_i32_0 : i32, i32
  }
  func.func @transform_11(%arg0: i32) -> (i32, i32, i32, i32) {
    %c0_i32 = arith.constant 0 : i32
    %c0_i32_0 = arith.constant 0 : i32
    %c0_i32_1 = arith.constant 0 : i32
    %c0_i32_2 = arith.constant 0 : i32
    return %arg0, %c0_i32, %c0_i32_0, %c0_i32_1 : i32, i32, i32, i32
  }
}

</mosaic_0001>

<llo_original>
// kernel: pool_attn_forward.1
$region0: #{pool_attn_forward.1}
  #allocation0 [shape = 'u32[]', space=smem, size = 0x4, offset = 0x4, fixed_abs, tag = 'smem constant byte address 0x4 - core index']
  #allocation1 [shape = 'u32[144,128]{1,0:T(1,128)}', space=vmem, size = 0x12000, scoped, tag = 'internal scratch']
  #allocation2 [shape = 'f32[1,10,10,128]{3,2,1,0:T(8,128)}', space=vmem, size = 0x14000, scoped, tag = 'scratch operand']
  %s0 = inlined_call_operand.hbm [shape: f32[2,8,8,128], index: 0, kind: input, shape index: {}]
  %s1 = inlined_call_operand.hbm [shape: f32[128,512], index: 1, kind: input, shape index: {}]
  %s2 = inlined_call_operand.hbm [shape: f32[128,512], index: 2, kind: input, shape index: {}]
  %s3 = inlined_call_operand.vmem [shape: f32[9,128], index: 3, kind: input, shape index: {}]
  %s4 = inlined_call_operand.vmem [shape: f32[1,128], index: 4, kind: input, shape index: {}]
  %s5 = inlined_call_operand.hbm [shape: f32[9,128], index: 5, kind: input, shape index: {}]
  %s6 = inlined_call_operand.vmem [shape: f32[1,128], index: 6, kind: input, shape index: {}]
  %s7 = inlined_call_operand.vmem [shape: f32[9,128], index: 7, kind: input, shape index: {}]
  %s8 = inlined_call_operand.hbm [shape: f32[1,128], index: 8, kind: input, shape index: {}]
  %s9 = inlined_call_operand.hbm [shape: f32[1,128], index: 9, kind: input, shape index: {}]
  %s10 = inlined_call_operand.hbm [shape: f32[1,128], index: 10, kind: input, shape index: {}]
  %s11 = inlined_call_operand.hbm [shape: f32[2,8,8,128], index: 11, kind: output, shape index: {}]
  %s12 = sld [smem:[#allocation0]]
  $region105: #{pool_attn_forward.1} parent=0
    _
  %s14 = ssub.s32 1, %s12
  %s15 = scalar_select 0, %s14, %s12
  $region1: #{pool_attn_forward.1} parent=0
    #allocation3 [shape = 'u8[65536]{0}', space=vmem, size = 0x10000, scoped, tag = 'input window, operand 0']
    #allocation4 [shape = 's32[2]{0}', space=sflag, size = 0x8, scoped, tag = 'scoped memory for pool_attn_forward.1']
    #allocation5 [shape = 's32[2]{0}', space=sflag, size = 0x8, scoped, tag = 'scoped memory for pool_attn_forward.1']
    #allocation6 [shape = 'u8[262144]{0}', space=vmem, size = 0x40000, scoped, tag = 'input window, operand 1, single buffered']
    #allocation7 [shape = 's32[1]{0}', space=sflag, size = 0x4, scoped, tag = 'scoped memory for pool_attn_forward.1']
    #allocation8 [shape = 'u8[262144]{0}', space=vmem, size = 0x40000, scoped, tag = 'input window, operand 2, single buffered']
    #allocation9 [shape = 'u8[8192]{0}', space=vmem, size = 0x2000, scoped, tag = 'input window, operand 5, single buffered']
    #allocation10 [shape = 's32[1]{0}', space=sflag, size = 0x4, scoped, tag = 'scoped memory for pool_attn_forward.1']
    #allocation11 [shape = 'u8[512]{0}', space=vmem, size = 0x400, scoped, tag = 'input window, operand 8, single buffered']
    #allocation12 [shape = 'u8[512]{0}', space=vmem, size = 0x400, scoped, tag = 'input window, operand 9, single buffered']
    #allocation13 [shape = 's32[1]{0}', space=sflag, size = 0x4, scoped, tag = 'scoped memory for pool_attn_forward.1']
    #allocation14 [shape = 'u8[512]{0}', space=vmem, size = 0x400, scoped, tag = 'input window, operand 10, single buffered']
    #allocation15 [shape = 'u8[65536]{0}', space=vmem, size = 0x10000, scoped, tag = 'output window, operand 0']
    %16 = vsyncpa [#allocation4], 0
    %s17 = scalar_lea.sflag [#allocation4], 1
    %18 = vsyncpa %s17, 0
    %19 = vsyncpa [#allocation7], 0
    %20 = vsyncpa [#allocation10], 0
    %21 = vsyncpa [#allocation13], 0
    %22 = vsyncpa [#allocation5], 0
    %s23 = scalar_lea.sflag [#allocation5], 1
    %24 = vsyncpa %s23, 0
    loop: start=0, step=1, limit=4
    $region2: #{pool_attn_forward.1} parent=1 // loop_pre_header
      _
    $region3: #{pool_attn_forward.1} parent=1 // loop_header
      %s26 = sphi 0, %s30
      %p27 = scmp.ge.s32.totalorder %s26, 4
      %s36 = sphi 0, %s38
      %s39 = sphi 0, %s36
      %s40 = sphi 0, %s39
      %s56 = sphi 0, %s40
      %s60 = sphi 0, %s60
      %s62 = sphi 0, %s60
      %s63 = sphi 0, %s62
      %s77 = sphi 0, %s63
      %s81 = sphi 0, %s81
      %s83 = sphi 0, %s81
      %s84 = sphi 0, %s83
      %s98 = sphi 0, %s84
      %s102 = sphi 0, %s102
      %s104 = sphi 0, %s102
      %s105 = sphi 0, %s104
      %s119 = sphi 0, %s105
      %s123 = sphi 0, %s123
      %s125 = sphi 0, %s123
      %s126 = sphi 0, %s125
      %s140 = sphi 0, %s126
      %s144 = sphi 0, %s144
      %s146 = sphi 0, %s144
      %s147 = sphi 0, %s146
      %s161 = sphi 0, %s147
      %s165 = sphi 0, %s165
      %s167 = sphi 0, %s165
      %s168 = sphi 0, %s167
      %s182 = sphi 0, %s168
      %s186 = sphi 0, %s186
      %s188 = sphi 0, %s186
      %s189 = sphi 0, %s188
      %s203 = sphi 0, %s189
      %s207 = sphi 0, %s207
      %s209 = sphi 0, %s207
      %s210 = sphi 0, %s209
      %s224 = sphi 0, %s210
      %s228 = sphi 0, %s228
      %s230 = sphi 0, %s228
      %s231 = sphi 0, %s230
      %s245 = sphi 0, %s231
      %s249 = sphi 0, %s249
      %s251 = sphi 0, %s249
      %s252 = sphi 0, %s251
      %s266 = sphi 0, %s252
      %s272 = sphi 0, %s274
      %s275 = sphi 0, %s272
      %s276 = sphi 0, %s275
      %s292 = sphi 0, %s276
    $region4: #{pool_attn_forward.1} parent=1 // loop_header_branch
      %29 = sbr.rel (%p27) target = $region8
    $region5: #{pool_attn_forward.1} parent=1 // loop_body
      %s31 = ssub.s32 %s26, 1
      %s32 = ssub.s32 %s26, 2
      %s33 = sadd.s32 %s26, 1
      %s34 = ssub.s32 %s26, %s33
      %p35 = scmp.eq.s32.totalorder %s34, 0
      %s37 = sadd.s32 %s36, 1
      %s38 = scalar_select %p35, %s36, %s37
      %p41 = pneg %p35
      %p42 = scmp.eq.s32.totalorder %s26, 1
      %p43 = por %p41, %p42
      %p44 = scmp.ne.s32.totalorder %s36, %s39
      %p45 = scmp.eq.s32.totalorder %s26, 0
      %p46 = por %p44, %p45
      %p47 = scmp.ne.s32.totalorder %s36, %s39
      %p48 = scmp.eq.s32.totalorder %s31, 1
      %p49 = por %p47, %p48
      %p50 = scmp.ne.s32.totalorder %s39, %s40
      %p51 = scmp.eq.s32.totalorder %s31, 0
      %p52 = por %p50, %p51
      %p53 = scmp.ne.s32.totalorder %s39, %s40
      %p54 = scmp.eq.s32.totalorder %s32, 1
      %p55 = por %p53, %p54
      %p57 = scmp.ne.s32.totalorder %s40, %s56
      %p58 = scmp.eq.s32.totalorder %s32, 0
      %p59 = por %p57, %p58
      %s61 = sadd.s32 %s60, 1
      %p64 = scmp.eq.s32.totalorder %s26, 1
      %p65 = scmp.ne.s32.totalorder %s60, %s62
      %p66 = scmp.eq.s32.totalorder %s26, 0
      %p67 = por %p65, %p66
      %p68 = scmp.ne.s32.totalorder %s60, %s62
      %p69 = scmp.eq.s32.totalorder %s31, 1
      %p70 = por %p68, %p69
      %p71 = scmp.ne.s32.totalorder %s62, %s63
      %p72 = scmp.eq.s32.totalorder %s31, 0
      %p73 = por %p71, %p72
      %p74 = scmp.ne.s32.totalorder %s62, %s63
      %p75 = scmp.eq.s32.totalorder %s32, 1
      %p76 = por %p74, %p75
      %p78 = scmp.ne.s32.totalorder %s63, %s77
      %p79 = scmp.eq.s32.totalorder %s32, 0
      %p80 = por %p78, %p79
      %s82 = sadd.s32 %s81, 1
      %p85 = scmp.eq.s32.totalorder %s26, 1
      %p86 = scmp.ne.s32.totalorder %s81, %s83
      %p87 = scmp.eq.s32.totalorder %s26, 0
      %p88 = por %p86, %p87
      %p89 = scmp.ne.s32.totalorder %s81, %s83
      %p90 = scmp.eq.s32.totalorder %s31, 1
      %p91 = por %p89, %p90
      %p92 = scmp.ne.s32.totalorder %s83, %s84
      %p93 = scmp.eq.s32.totalorder %s31, 0
      %p94 = por %p92, %p93
      %p95 = scmp.ne.s32.totalorder %s83, %s84
      %p96 = scmp.eq.s32.totalorder %s32, 1
      %p97 = por %p95, %p96
      %p99 = scmp.ne.s32.totalorder %s84, %s98
      %p100 = scmp.eq.s32.totalorder %s32, 0
      %p101 = por %p99, %p100
      %s103 = sadd.s32 %s102, 1
      %p106 = scmp.eq.s32.totalorder %s26, 1
      %p107 = scmp.ne.s32.totalorder %s102, %s104
      %p108 = scmp.eq.s32.totalorder %s26, 0
      %p109 = por %p107, %p108
      %p110 = scmp.ne.s32.totalorder %s102, %s104
      %p111 = scmp.eq.s32.totalorder %s31, 1
      %p112 = por %p110, %p111
      %p113 = scmp.ne.s32.totalorder %s104, %s105
      %p114 = scmp.eq.s32.totalorder %s31, 0
      %p115 = por %p113, %p114
      %p116 = scmp.ne.s32.totalorder %s104, %s105
      %p117 = scmp.eq.s32.totalorder %s32, 1
      %p118 = por %p116, %p117
      %p120 = scmp.ne.s32.totalorder %s105, %s119
      %p121 = scmp.eq.s32.totalorder %s32, 0
      %p122 = por %p120, %p121
      %s124 = sadd.s32 %s123, 1
      %p127 = scmp.eq.s32.totalorder %s26, 1
      %p128 = scmp.ne.s32.totalorder %s123, %s125
      %p129 = scmp.eq.s32.totalorder %s26, 0
      %p130 = por %p128, %p129
      %p131 = scmp.ne.s32.totalorder %s123, %s125
      %p132 = scmp.eq.s32.totalorder %s31, 1
      %p133 = por %p131, %p132
      %p134 = scmp.ne.s32.totalorder %s125, %s126
      %p135 = scmp.eq.s32.totalorder %s31, 0
      %p136 = por %p134, %p135
      %p137 = scmp.ne.s32.totalorder %s125, %s126
      %p138 = scmp.eq.s32.totalorder %s32, 1
      %p139 = por %p137, %p138
      %p141 = scmp.ne.s32.totalorder %s126, %s140
      %p142 = scmp.eq.s32.totalorder %s32, 0
      %p143 = por %p141, %p142
      %s145 = sadd.s32 %s144, 1
      %p148 = scmp.eq.s32.totalorder %s26, 1
      %p149 = scmp.ne.s32.totalorder %s144, %s146
      %p150 = scmp.eq.s32.totalorder %s26, 0
      %p151 = por %p149, %p150
      %p152 = scmp.ne.s32.totalorder %s144, %s146
      %p153 = scmp.eq.s32.totalorder %s31, 1
      %p154 = por %p152, %p153
      %p155 = scmp.ne.s32.totalorder %s146, %s147
      %p156 = scmp.eq.s32.totalorder %s31, 0
      %p157 = por %p155, %p156
      %p158 = scmp.ne.s32.totalorder %s146, %s147
      %p159 = scmp.eq.s32.totalorder %s32, 1
      %p160 = por %p158, %p159
      %p162 = scmp.ne.s32.totalorder %s147, %s161
      %p163 = scmp.eq.s32.totalorder %s32, 0
      %p164 = por %p162, %p163
      %s166 = sadd.s32 %s165, 1
      %p169 = scmp.eq.s32.totalorder %s26, 1
      %p170 = scmp.ne.s32.totalorder %s165, %s167
      %p171 = scmp.eq.s32.totalorder %s26, 0
      %p172 = por %p170, %p171
      %p173 = scmp.ne.s32.totalorder %s165, %s167
      %p174 = scmp.eq.s32.totalorder %s31, 1
      %p175 = por %p173, %p174
      %p176 = scmp.ne.s32.totalorder %s167, %s168
      %p177 = scmp.eq.s32.totalorder %s31, 0
      %p178 = por %p176, %p177
      %p179 = scmp.ne.s32.totalorder %s167, %s168
      %p180 = scmp.eq.s32.totalorder %s32, 1
      %p181 = por %p179, %p180
      %p183 = scmp.ne.s32.totalorder %s168, %s182
      %p184 = scmp.eq.s32.totalorder %s32, 0
      %p185 = por %p183, %p184
      %s187 = sadd.s32 %s186, 1
      %p190 = scmp.eq.s32.totalorder %s26, 1
      %p191 = scmp.ne.s32.totalorder %s186, %s188
      %p192 = scmp.eq.s32.totalorder %s26, 0
      %p193 = por %p191, %p192
      %p194 = scmp.ne.s32.totalorder %s186, %s188
      %p195 = scmp.eq.s32.totalorder %s31, 1
      %p196 = por %p194, %p195
      %p197 = scmp.ne.s32.totalorder %s188, %s189
      %p198 = scmp.eq.s32.totalorder %s31, 0
      %p199 = por %p197, %p198
      %p200 = scmp.ne.s32.totalorder %s188, %s189
      %p201 = scmp.eq.s32.totalorder %s32, 1
      %p202 = por %p200, %p201
      %p204 = scmp.ne.s32.totalorder %s189, %s203
      %p205 = scmp.eq.s32.totalorder %s32, 0
      %p206 = por %p204, %p205
      %s208 = sadd.s32 %s207, 1
      %p211 = scmp.eq.s32.totalorder %s26, 1
      %p212 = scmp.ne.s32.totalorder %s207, %s209
      %p213 = scmp.eq.s32.totalorder %s26, 0
      %p214 = por %p212, %p213
      %p215 = scmp.ne.s32.totalorder %s207, %s209
      %p216 = scmp.eq.s32.totalorder %s31, 1
      %p217 = por %p215, %p216
      %p218 = scmp.ne.s32.totalorder %s209, %s210
      %p219 = scmp.eq.s32.totalorder %s31, 0
      %p220 = por %p218, %p219
      %p221 = scmp.ne.s32.totalorder %s209, %s210
      %p222 = scmp.eq.s32.totalorder %s32, 1
      %p223 = por %p221, %p222
      %p225 = scmp.ne.s32.totalorder %s210, %s224
      %p226 = scmp.eq.s32.totalorder %s32, 0
      %p227 = por %p225, %p226
      %s229 = sadd.s32 %s228, 1
      %p232 = scmp.eq.s32.totalorder %s26, 1
      %p233 = scmp.ne.s32.totalorder %s228, %s230
      %p234 = scmp.eq.s32.totalorder %s26, 0
      %p235 = por %p233, %p234
      %p236 = scmp.ne.s32.totalorder %s228, %s230
      %p237 = scmp.eq.s32.totalorder %s31, 1
      %p238 = por %p236, %p237
      %p239 = scmp.ne.s32.totalorder %s230, %s231
      %p240 = scmp.eq.s32.totalorder %s31, 0
      %p241 = por %p239, %p240
      %p242 = scmp.ne.s32.totalorder %s230, %s231
      %p243 = scmp.eq.s32.totalorder %s32, 1
      %p244 = por %p242, %p243
      %p246 = scmp.ne.s32.totalorder %s231, %s245
      %p247 = scmp.eq.s32.totalorder %s32, 0
      %p248 = por %p246, %p247
      %s250 = sadd.s32 %s249, 1
      %p253 = scmp.eq.s32.totalorder %s26, 1
      %p254 = scmp.ne.s32.totalorder %s249, %s251
      %p255 = scmp.eq.s32.totalorder %s26, 0
      %p256 = por %p254, %p255
      %p257 = scmp.ne.s32.totalorder %s249, %s251
      %p258 = scmp.eq.s32.totalorder %s31, 1
      %p259 = por %p257, %p258
      %p260 = scmp.ne.s32.totalorder %s251, %s252
      %p261 = scmp.eq.s32.totalorder %s31, 0
      %p262 = por %p260, %p261
      %p263 = scmp.ne.s32.totalorder %s251, %s252
      %p264 = scmp.eq.s32.totalorder %s32, 1
      %p265 = por %p263, %p264
      %p267 = scmp.ne.s32.totalorder %s252, %s266
      %p268 = scmp.eq.s32.totalorder %s32, 0
      %p269 = por %p267, %p268
      %s270 = ssub.s32 %s26, %s33
      %p271 = scmp.eq.s32.totalorder %s270, 0
      %s273 = sadd.s32 %s272, 1
      %s274 = scalar_select %p271, %s272, %s273
      %p277 = pneg %p271
      %p278 = scmp.eq.s32.totalorder %s26, 1
      %p279 = por %p277, %p278
      %p280 = scmp.ne.s32.totalorder %s272, %s275
      %p281 = scmp.eq.s32.totalorder %s26, 0
      %p282 = por %p280, %p281
      %p283 = scmp.ne.s32.totalorder %s272, %s275
      %p284 = scmp.eq.s32.totalorder %s31, 1
      %p285 = por %p283, %p284
      %p286 = scmp.ne.s32.totalorder %s275, %s276
      %p287 = scmp.eq.s32.totalorder %s31, 0
      %p288 = por %p286, %p287
      %p289 = scmp.ne.s32.totalorder %s275, %s276
      %p290 = scmp.eq.s32.totalorder %s32, 1
      %p291 = por %p289, %p290
      %p293 = scmp.ne.s32.totalorder %s276, %s292
      %p294 = scmp.eq.s32.totalorder %s32, 0
      %p295 = por %p293, %p294
      %p296 = scmp.le.s32.totalorder 1, %s26
      %p297 = scmp.lt.s32.totalorder %s26, 3
      %p298 = pnand %p296, %p297
      %p299 = pneg %p298
      // Predicated region
      $region9: #{pool_attn_forward.1} parent=5 // pred_check
        _
      $region10: #{pool_attn_forward.1} parent=5 // pred_check_branch
        %301 = sbr.rel (%p298) target = $region12
      $region11: #{pool_attn_forward.1} parent=5 // pred_region
        %s302 = ssub.s32 %s26, 1
        // Predicated region
        $region13: #{pool_attn_forward.1} parent=11 // pred_check
          %p303 = pneg %p73
        $region14: #{pool_attn_forward.1} parent=11 // pred_check_branch
          %305 = sbr.rel (%p303) target = $region16
        $region15: #{pool_attn_forward.1} parent=11 // pred_region
          %s307 = ssub.s32 8192, 8192
          %308 = vsyncadd [#allocation7], %s307
          %s309 = sshll.u32 [#allocation6], 4
          %s310 = int_to_ptr.vmem [resolvable:$true] %s309
          %315 = dma.hbm_to_vmem [thread:$0]  %s1, 8192, %s310, [#allocation7], 512, 512, 32
        $region16: #{pool_attn_forward.1} parent=11 // pred_fallthru
          _
        // Predicated region
        $region17: #{pool_attn_forward.1} parent=11 // pred_check
          %p316 = pneg %p94
        $region18: #{pool_attn_forward.1} parent=11 // pred_check_branch
          %318 = sbr.rel (%p316) target = $region20
        $region19: #{pool_attn_forward.1} parent=11 // pred_region
          %s320 = ssub.s32 8192, 8192
          %321 = vsyncadd [#allocation7], %s320
          %s322 = sshll.u32 [#allocation8], 4
          %s323 = int_to_ptr.vmem [resolvable:$true] %s322
          %328 = dma.hbm_to_vmem [thread:$0]  %s2, 8192, %s323, [#allocation7], 512, 512, 32
        $region20: #{pool_attn_forward.1} parent=11 // pred_fallthru
          _
        // Predicated region
        $region21: #{pool_attn_forward.1} parent=11 // pred_check
          %p329 = pneg %p115
        $region22: #{pool_attn_forward.1} parent=11 // pred_check_branch
          %331 = sbr.rel (%p329) target = $region24
        $region23: #{pool_attn_forward.1} parent=11 // pred_region
          _
        $region24: #{pool_attn_forward.1} parent=11 // pred_fallthru
          _
        // Predicated region
        $region25: #{pool_attn_forward.1} parent=11 // pred_check
          %p332 = pneg %p136
        $region26: #{pool_attn_forward.1} parent=11 // pred_check_branch
          %334 = sbr.rel (%p332) target = $region28
        $region27: #{pool_attn_forward.1} parent=11 // pred_region
          _
        $region28: #{pool_attn_forward.1} parent=11 // pred_fallthru
          _
        // Predicated region
        $region29: #{pool_attn_forward.1} parent=11 // pred_check
          %p335 = pneg %p157
        $region30: #{pool_attn_forward.1} parent=11 // pred_check_branch
          %337 = sbr.rel (%p335) target = $region32
        $region31: #{pool_attn_forward.1} parent=11 // pred_region
          %s339 = ssub.s32 256, 256
          %340 = vsyncadd [#allocation10], %s339
          %s341 = sshll.u32 [#allocation9], 4
          %s342 = int_to_ptr.vmem [resolvable:$true] %s341
          %347 = dma.hbm_to_vmem [thread:$0]  %s5, 256, %s342, [#allocation10], 128, 128, 8
        $region32: #{pool_attn_forward.1} parent=11 // pred_fallthru
          _
        // Predicated region
        $region33: #{pool_attn_forward.1} parent=11 // pred_check
          %p348 = pneg %p178
        $region34: #{pool_attn_forward.1} parent=11 // pred_check_branch
          %350 = sbr.rel (%p348) target = $region36
        $region35: #{pool_attn_forward.1} parent=11 // pred_region
          _
        $region36: #{pool_attn_forward.1} parent=11 // pred_fallthru
          _
        // Predicated region
        $region37: #{pool_attn_forward.1} parent=11 // pred_check
          %p351 = pneg %p199
        $region38: #{pool_attn_forward.1} parent=11 // pred_check_branch
          %353 = sbr.rel (%p351) target = $region40
        $region39: #{pool_attn_forward.1} parent=11 // pred_region
          _
        $region40: #{pool_attn_forward.1} parent=11 // pred_fallthru
          _
        // Predicated region
        $region41: #{pool_attn_forward.1} parent=11 // pred_check
          %p354 = pneg %p220
        $region42: #{pool_attn_forward.1} parent=11 // pred_check_branch
          %356 = sbr.rel (%p354) target = $region44
        $region43: #{pool_attn_forward.1} parent=11 // pred_region
          %s358 = ssub.s32 16, 16
          %359 = vsyncadd [#allocation10], %s358
          %s361 = sshll.u32 [#allocation11], 4
          %s362 = int_to_ptr.vmem [resolvable:$true] %s361
          %364 = dma.hbm_to_vmem [thread:$0]  %s8, 16, %s362, [#allocation10]
        $region44: #{pool_attn_forward.1} parent=11 // pred_fallthru
          _
        // Predicated region
        $region45: #{pool_attn_forward.1} parent=11 // pred_check
          %p365 = pneg %p241
        $region46: #{pool_attn_forward.1} parent=11 // pred_check_branch
          %367 = sbr.rel (%p365) target = $region48
        $region47: #{pool_attn_forward.1} parent=11 // pred_region
          %s369 = ssub.s32 16, 16
          %370 = vsyncadd [#allocation13], %s369
          %s372 = sshll.u32 [#allocation12], 4
          %s373 = int_to_ptr.vmem [resolvable:$true] %s372
          %375 = dma.hbm_to_vmem [thread:$0]  %s9, 16, %s373, [#allocation13]
        $region48: #{pool_attn_forward.1} parent=11 // pred_fallthru
          _
        // Predicated region
        $region49: #{pool_attn_forward.1} parent=11 // pred_check
          %p376 = pneg %p262
        $region50: #{pool_attn_forward.1} parent=11 // pred_check_branch
          %378 = sbr.rel (%p376) target = $region52
        $region51: #{pool_attn_forward.1} parent=11 // pred_region
          %s380 = ssub.s32 16, 16
          %381 = vsyncadd [#allocation13], %s380
          %s383 = sshll.u32 [#allocation14], 4
          %s384 = int_to_ptr.vmem [resolvable:$true] %s383
          %386 = dma.hbm_to_vmem [thread:$0]  %s10, 16, %s384, [#allocation13]
        $region52: #{pool_attn_forward.1} parent=11 // pred_fallthru
          _
      $region12: #{pool_attn_forward.1} parent=5 // pred_fallthru
        _
      %p387 = scmp.lt.s32.totalorder %s26, 2
      // Predicated region
      $region53: #{pool_attn_forward.1} parent=5 // pred_check
        %p388 = pneg %p387
      $region54: #{pool_attn_forward.1} parent=5 // pred_check_branch
        %390 = sbr.rel (%p388) target = $region56
      $region55: #{pool_attn_forward.1} parent=5 // pred_region
        // Predicated region
        $region57: #{pool_attn_forward.1} parent=55 // pred_check
          %p391 = pneg %p46
        $region58: #{pool_attn_forward.1} parent=55 // pred_check_branch
          %393 = sbr.rel (%p391) target = $region60
        $region59: #{pool_attn_forward.1} parent=55 // pred_region
          %s394 = sand.u32 %s36, 1
          %s395 = scalar_lea.sflag [#allocation4], %s394
          %s396 = sand.u32 %s36, 1
          %s397 = smul.addr %s396, 64
          %s398 = scalar_lea.vmem [#allocation3], %s397
          %s400 = ssub.s32 1024, 1024
          %401 = vsyncadd %s395, %s400
          %s402 = smul.addr %s26, 8
          %s403 = smul.addr %s402, 128
          %s404 = scalar_lea.hbm %s0, %s403
          %s405 = sshll.u32 %s398, 4
          %s406 = int_to_ptr.vmem [resolvable:$true] %s405
          %411 = dma.hbm_to_vmem [thread:$0]  %s404, 1024, %s406, %s395, 128, 128, 8
        $region60: #{pool_attn_forward.1} parent=55 // pred_fallthru
          _
      $region56: #{pool_attn_forward.1} parent=5 // pred_fallthru
        _
      %p412 = scmp.le.s32.totalorder 1, %s26
      %p413 = scmp.lt.s32.totalorder %s26, 3
      %p414 = pnand %p412, %p413
      %p415 = pneg %p414
      // Predicated region
      $region61: #{pool_attn_forward.1} parent=5 // pred_check
        _
      $region62: #{pool_attn_forward.1} parent=5 // pred_check_branch
        %417 = sbr.rel (%p414) target = $region64
      $region63: #{pool_attn_forward.1} parent=5 // pred_region
        %s418 = ssub.s32 %s26, 1
        %s419 = sand.u32 %s39, 1
        %s420 = scalar_lea.sflag [#allocation4], %s419
        %s421 = sand.u32 %s39, 1
        %s422 = smul.addr %s421, 64
        %s423 = scalar_lea.vmem [#allocation3], %s422
        // Predicated region
        $region65: #{pool_attn_forward.1} parent=63 // pred_check
          %p424 = pneg %p52
        $region66: #{pool_attn_forward.1} parent=63 // pred_check_branch
          %426 = sbr.rel (%p424) target = $region68
        $region67: #{pool_attn_forward.1} parent=63 // pred_region
          %427 = dma.done %s420, 1024
        $region68: #{pool_attn_forward.1} parent=63 // pred_fallthru
          _
        // Predicated region
        $region69: #{pool_attn_forward.1} parent=63 // pred_check
          %p428 = pneg %p73
        $region70: #{pool_attn_forward.1} parent=63 // pred_check_branch
          %430 = sbr.rel (%p428) target = $region72
        $region71: #{pool_attn_forward.1} parent=63 // pred_region
          %431 = dma.done [#allocation7], 8192
        $region72: #{pool_attn_forward.1} parent=63 // pred_fallthru
          _
        // Predicated region
        $region73: #{pool_attn_forward.1} parent=63 // pred_check
          %p432 = pneg %p94
        $region74: #{pool_attn_forward.1} parent=63 // pred_check_branch
          %434 = sbr.rel (%p432) target = $region76
        $region75: #{pool_attn_forward.1} parent=63 // pred_region
          %435 = dma.done [#allocation7], 8192
        $region76: #{pool_attn_forward.1} parent=63 // pred_fallthru
          _
        // Predicated region
        $region77: #{pool_attn_forward.1} parent=63 // pred_check
          %p436 = pneg %p157
        $region78: #{pool_attn_forward.1} parent=63 // pred_check_branch
          %438 = sbr.rel (%p436) target = $region80
        $region79: #{pool_attn_forward.1} parent=63 // pred_region
          %439 = dma.done [#allocation10], 256
        $region80: #{pool_attn_forward.1} parent=63 // pred_fallthru
          _
        // Predicated region
        $region81: #{pool_attn_forward.1} parent=63 // pred_check
          %p440 = pneg %p220
        $region82: #{pool_attn_forward.1} parent=63 // pred_check_branch
          %442 = sbr.rel (%p440) target = $region84
        $region83: #{pool_attn_forward.1} parent=63 // pred_region
          %443 = dma.done [#allocation10], 16
        $region84: #{pool_attn_forward.1} parent=63 // pred_fallthru
          _
        // Predicated region
        $region85: #{pool_attn_forward.1} parent=63 // pred_check
          %p444 = pneg %p241
        $region86: #{pool_attn_forward.1} parent=63 // pred_check_branch
          %446 = sbr.rel (%p444) target = $region88
        $region87: #{pool_attn_forward.1} parent=63 // pred_region
          %447 = dma.done [#allocation13], 16
        $region88: #{pool_attn_forward.1} parent=63 // pred_fallthru
          _
        // Predicated region
        $region89: #{pool_attn_forward.1} parent=63 // pred_check
          %p448 = pneg %p262
        $region90: #{pool_attn_forward.1} parent=63 // pred_check_branch
          %450 = sbr.rel (%p448) target = $region92
        $region91: #{pool_attn_forward.1} parent=63 // pred_region
          %451 = dma.done [#allocation13], 16
        $region92: #{pool_attn_forward.1} parent=63 // pred_fallthru
          _
        %s452 = sand.u32 %s39, 1
        %s453 = scalar_lea.sflag [#allocation4], %s452
        %s454 = sand.u32 %s39, 1
        %s455 = smul.addr %s454, 64
        %s456 = scalar_lea.vmem [#allocation3], %s455
        %p457 = pneg %p52
        %p458 = pneg %p49
        %p459 = pneg %p73
        %p460 = pneg %p70
        %p461 = pneg %p94
        %p462 = pneg %p91
        %p463 = pneg %p115
        %p464 = pneg %p112
        %p465 = pneg %p136
        %p466 = pneg %p133
        %p467 = pneg %p157
        %p468 = pneg %p154
        %p469 = pneg %p178
        %p470 = pneg %p175
        %p471 = pneg %p199
        %p472 = pneg %p196
        %p473 = pneg %p220
        %p474 = pneg %p217
        %p475 = pneg %p241
        %p476 = pneg %p238
        %p477 = pneg %p262
        %p478 = pneg %p259
        %p479 = pneg %p288
        %p480 = pneg %p285
        %s481 = sand.u32 %s275, 1
        %s482 = scalar_lea.sflag [#allocation5], %s481
        %s483 = sand.u32 %s275, 1
        %s484 = smul.addr %s483, 64
        %s485 = scalar_lea.vmem [#allocation15], %s484
        %v486 = vld [vmem:[%s423] sm:$0xff]
        %v487 = vld [vmem:[%s423 + $0x8] sm:$0xff]
        %v488 = vld [vmem:[%s423 + $0x10] sm:$0xff]
        %v489 = vld [vmem:[%s423 + $0x18] sm:$0xff]
        %v490 = vld [vmem:[%s423 + $0x20] sm:$0xff]
        %v491 = vld [vmem:[%s423 + $0x28] sm:$0xff]
        %v492 = vld [vmem:[%s423 + $0x30] sm:$0xff]
        %v493 = vld [vmem:[%s423 + $0x38] sm:$0xff]
        %vm494 = vcmask 1041408
        %v495 = vsel %vm494, %v486, 0.0
        %v496 = vrot.slane %v495, 4
        %v497 = vadd.f32 %v495, %v496
        %v498 = vrot.slane %v497, 2
        %v499 = vadd.f32 %v497, %v498
        %v500 = vrot.slane %v499, 1
        %v501 = vadd.f32 %v499, %v500
        %v502 = vsel %vm494, %v487, 0.0
        %v503 = vrot.slane %v502, 4
        %v504 = vadd.f32 %v502, %v503
        %v505 = vrot.slane %v504, 2
        %v506 = vadd.f32 %v504, %v505
        %v507 = vrot.slane %v506, 1
        %v508 = vadd.f32 %v506, %v507
        %v509 = vsel %vm494, %v488, 0.0
        %v510 = vrot.slane %v509, 4
        %v511 = vadd.f32 %v509, %v510
        %v512 = vrot.slane %v511, 2
        %v513 = vadd.f32 %v511, %v512
        %v514 = vrot.slane %v513, 1
        %v515 = vadd.f32 %v513, %v514
        %v516 = vsel %vm494, %v489, 0.0
        %v517 = vrot.slane %v516, 4
        %v518 = vadd.f32 %v516, %v517
        %v519 = vrot.slane %v518, 2
        %v520 = vadd.f32 %v518, %v519
        %v521 = vrot.slane %v520, 1
        %v522 = vadd.f32 %v520, %v521
        %v523 = vsel %vm494, %v490, 0.0
        %v524 = vrot.slane %v523, 4
        %v525 = vadd.f32 %v523, %v524
        %v526 = vrot.slane %v525, 2
        %v527 = vadd.f32 %v525, %v526
        %v528 = vrot.slane %v527, 1
        %v529 = vadd.f32 %v527, %v528
        %v530 = vsel %vm494, %v491, 0.0
        %v531 = vrot.slane %v530, 4
        %v532 = vadd.f32 %v530, %v531
        %v533 = vrot.slane %v532, 2
        %v534 = vadd.f32 %v532, %v533
        %v535 = vrot.slane %v534, 1
        %v536 = vadd.f32 %v534, %v535
        %v537 = vsel %vm494, %v492, 0.0
        %v538 = vrot.slane %v537, 4
        %v539 = vadd.f32 %v537, %v538
        %v540 = vrot.slane %v539, 2
        %v541 = vadd.f32 %v539, %v540
        %v542 = vrot.slane %v541, 1
        %v543 = vadd.f32 %v541, %v542
        %v544 = vsel %vm494, %v493, 0.0
        %v545 = vrot.slane %v544, 4
        %v546 = vadd.f32 %v544, %v545
        %v547 = vrot.slane %v546, 2
        %v548 = vadd.f32 %v546, %v547
        %v549 = vrot.slane %v548, 1
        %v550 = vadd.f32 %v548, %v549
        %v551 = vmul.f32 %v501, 0.5
        %v552 = vmul.f32 %v508, 0.5
        %v553 = vmul.f32 %v515, 0.5
        %v554 = vmul.f32 %v522, 0.5
        %v555 = vmul.f32 %v529, 0.5
        %v556 = vmul.f32 %v536, 0.5
        %v557 = vmul.f32 %v543, 0.5
        %v558 = vmul.f32 %v550, 0.5
        %v559 = vadd.f32 %v486, %v487
        %v560 = vmul.f32 %v559, 0.5
        %v561 = vmul.f32 %v551, %v560
        %v562 = vmul.f32 %v552, %v560
        %v563 = vmul.f32 %v553, %v560
        %v564 = vmul.f32 %v554, %v560
        %v565 = vmul.f32 %v555, %v560
        %v566 = vmul.f32 %v556, %v560
        %v567 = vmul.f32 %v557, %v560
        %v568 = vmul.f32 %v558, %v560
        %v577 = vrot.slane %v486, 2
        %v578 = vrot.slane %v487, 2
        %v579 = vrot.slane %v488, 2
        %v580 = vrot.slane %v489, 2
        %v581 = vrot.slane %v490, 2
        %v582 = vrot.slane %v491, 2
        %v583 = vrot.slane %v492, 2
        %v584 = vrot.slane %v493, 2
        %v593 = vsel %vm494, %v577, 0.0
        %v594 = vrot.slane %v593, 4
        %v595 = vadd.f32 %v593, %v594
        %v596 = vrot.slane %v595, 2
        %v597 = vadd.f32 %v595, %v596
        %v598 = vrot.slane %v597, 1
        %v599 = vadd.f32 %v597, %v598
        %v600 = vsel %vm494, %v578, 0.0
        %v601 = vrot.slane %v600, 4
        %v602 = vadd.f32 %v600, %v601
        %v603 = vrot.slane %v602, 2
        %v604 = vadd.f32 %v602, %v603
        %v605 = vrot.slane %v604, 1
        %v606 = vadd.f32 %v604, %v605
        %v607 = vsel %vm494, %v579, 0.0
        %v608 = vrot.slane %v607, 4
        %v609 = vadd.f32 %v607, %v608
        %v610 = vrot.slane %v609, 2
        %v611 = vadd.f32 %v609, %v610
        %v612 = vrot.slane %v611, 1
        %v613 = vadd.f32 %v611, %v612
        %v614 = vsel %vm494, %v580, 0.0
        %v615 = vrot.slane %v614, 4
        %v616 = vadd.f32 %v614, %v615
        %v617 = vrot.slane %v616, 2
        %v618 = vadd.f32 %v616, %v617
        %v619 = vrot.slane %v618, 1
        %v620 = vadd.f32 %v618, %v619
        %v621 = vsel %vm494, %v581, 0.0
        %v622 = vrot.slane %v621, 4
        %v623 = vadd.f32 %v621, %v622
        %v624 = vrot.slane %v623, 2
        %v625 = vadd.f32 %v623, %v624
        %v626 = vrot.slane %v625, 1
        %v627 = vadd.f32 %v625, %v626
        %v628 = vsel %vm494, %v582, 0.0
        %v629 = vrot.slane %v628, 4
        %v630 = vadd.f32 %v628, %v629
        %v631 = vrot.slane %v630, 2
        %v632 = vadd.f32 %v630, %v631
        %v633 = vrot.slane %v632, 1
        %v634 = vadd.f32 %v632, %v633
        %v635 = vsel %vm494, %v583, 0.0
        %v636 = vrot.slane %v635, 4
        %v637 = vadd.f32 %v635, %v636
        %v638 = vrot.slane %v637, 2
        %v639 = vadd.f32 %v637, %v638
        %v640 = vrot.slane %v639, 1
        %v641 = vadd.f32 %v639, %v640
        %v642 = vsel %vm494, %v584, 0.0
        %v643 = vrot.slane %v642, 4
        %v644 = vadd.f32 %v642, %v643
        %v645 = vrot.slane %v644, 2
        %v646 = vadd.f32 %v644, %v645
        %v647 = vrot.slane %v646, 1
        %v648 = vadd.f32 %v646, %v647
        %v649 = vmul.f32 %v599, 0.5
        %v650 = vmul.f32 %v606, 0.5
        %v651 = vmul.f32 %v613, 0.5
        %v652 = vmul.f32 %v620, 0.5
        %v653 = vmul.f32 %v627, 0.5
        %v654 = vmul.f32 %v634, 0.5
        %v655 = vmul.f32 %v641, 0.5
        %v656 = vmul.f32 %v648, 0.5
        %v657 = vadd.f32 %v488, %v489
        %v658 = vmul.f32 %v657, 0.5
        %v659 = vmul.f32 %v649, %v658
        %v660 = vmul.f32 %v650, %v658
        %v661 = vmul.f32 %v651, %v658
        %v662 = vmul.f32 %v652, %v658
        %v663 = vmul.f32 %v653, %v658
        %v664 = vmul.f32 %v654, %v658
        %v665 = vmul.f32 %v655, %v658
        %v666 = vmul.f32 %v656, %v658
        %v667 = vadd.f32 %v561, %v659
        %v668 = vadd.f32 %v562, %v660
        %v669 = vadd.f32 %v563, %v661
        %v670 = vadd.f32 %v564, %v662
        %v671 = vadd.f32 %v565, %v663
        %v672 = vadd.f32 %v566, %v664
        %v673 = vadd.f32 %v567, %v665
        %v674 = vadd.f32 %v568, %v666
        %v675 = vrot.slane %v486, 4
        %v676 = vrot.slane %v487, 4
        %v677 = vrot.slane %v488, 4
        %v678 = vrot.slane %v489, 4
        %v679 = vrot.slane %v490, 4
        %v680 = vrot.slane %v491, 4
        %v681 = vrot.slane %v492, 4
        %v682 = vrot.slane %v493, 4
        %v691 = vsel %vm494, %v675, 0.0
        %v692 = vrot.slane %v691, 4
        %v693 = vadd.f32 %v691, %v692
        %v694 = vrot.slane %v693, 2
        %v695 = vadd.f32 %v693, %v694
        %v696 = vrot.slane %v695, 1
        %v697 = vadd.f32 %v695, %v696
        %v698 = vsel %vm494, %v676, 0.0
        %v699 = vrot.slane %v698, 4
        %v700 = vadd.f32 %v698, %v699
        %v701 = vrot.slane %v700, 2
        %v702 = vadd.f32 %v700, %v701
        %v703 = vrot.slane %v702, 1
        %v704 = vadd.f32 %v702, %v703
        %v705 = vsel %vm494, %v677, 0.0
        %v706 = vrot.slane %v705, 4
        %v707 = vadd.f32 %v705, %v706
        %v708 = vrot.slane %v707, 2
        %v709 = vadd.f32 %v707, %v708
        %v710 = vrot.slane %v709, 1
        %v711 = vadd.f32 %v709, %v710
        %v712 = vsel %vm494, %v678, 0.0
        %v713 = vrot.slane %v712, 4
        %v714 = vadd.f32 %v712, %v713
        %v715 = vrot.slane %v714, 2
        %v716 = vadd.f32 %v714, %v715
        %v717 = vrot.slane %v716, 1
        %v718 = vadd.f32 %v716, %v717
        %v719 = vsel %vm494, %v679, 0.0
        %v720 = vrot.slane %v719, 4
        %v721 = vadd.f32 %v719, %v720
        %v722 = vrot.slane %v721, 2
        %v723 = vadd.f32 %v721, %v722
        %v724 = vrot.slane %v723, 1
        %v725 = vadd.f32 %v723, %v724
        %v726 = vsel %vm494, %v680, 0.0
        %v727 = vrot.slane %v726, 4
        %v728 = vadd.f32 %v726, %v727
        %v729 = vrot.slane %v728, 2
        %v730 = vadd.f32 %v728, %v729
        %v731 = vrot.slane %v730, 1
        %v732 = vadd.f32 %v730, %v731
        %v733 = vsel %vm494, %v681, 0.0
        %v734 = vrot.slane %v733, 4
        %v735 = vadd.f32 %v733, %v734
        %v736 = vrot.slane %v735, 2
        %v737 = vadd.f32 %v735, %v736
        %v738 = vrot.slane %v737, 1
        %v739 = vadd.f32 %v737, %v738
        %v740 = vsel %vm494, %v682, 0.0
        %v741 = vrot.slane %v740, 4
        %v742 = vadd.f32 %v740, %v741
        %v743 = vrot.slane %v742, 2
        %v744 = vadd.f32 %v742, %v743
        %v745 = vrot.slane %v744, 1
        %v746 = vadd.f32 %v744, %v745
        %v747 = vmul.f32 %v697, 0.5
        %v748 = vmul.f32 %v704, 0.5
        %v749 = vmul.f32 %v711, 0.5
        %v750 = vmul.f32 %v718, 0.5
        %v751 = vmul.f32 %v725, 0.5
        %v752 = vmul.f32 %v732, 0.5
        %v753 = vmul.f32 %v739, 0.5
        %v754 = vmul.f32 %v746, 0.5
        %v755 = vadd.f32 %v490, %v491
        %v756 = vmul.f32 %v755, 0.5
        %v757 = vmul.f32 %v747, %v756
        %v758 = vmul.f32 %v748, %v756
        %v759 = vmul.f32 %v749, %v756
        %v760 = vmul.f32 %v750, %v756
        %v761 = vmul.f32 %v751, %v756
        %v762 = vmul.f32 %v752, %v756
        %v763 = vmul.f32 %v753, %v756
        %v764 = vmul.f32 %v754, %v756
        %v765 = vadd.f32 %v667, %v757
        %v766 = vadd.f32 %v668, %v758
        %v767 = vadd.f32 %v669, %v759
        %v768 = vadd.f32 %v670, %v760
        %v769 = vadd.f32 %v671, %v761
        %v770 = vadd.f32 %v672, %v762
        %v771 = vadd.f32 %v673, %v763
        %v772 = vadd.f32 %v674, %v764
        %v773 = vrot.slane %v486, 6
        %v774 = vrot.slane %v487, 6
        %v775 = vrot.slane %v488, 6
        %v776 = vrot.slane %v489, 6
        %v777 = vrot.slane %v490, 6
        %v778 = vrot.slane %v491, 6
        %v779 = vrot.slane %v492, 6
        %v780 = vrot.slane %v493, 6
        %v789 = vsel %vm494, %v773, 0.0
        %v790 = vrot.slane %v789, 4
        %v791 = vadd.f32 %v789, %v790
        %v792 = vrot.slane %v791, 2
        %v793 = vadd.f32 %v791, %v792
        %v794 = vrot.slane %v793, 1
        %v795 = vadd.f32 %v793, %v794
        %v796 = vsel %vm494, %v774, 0.0
        %v797 = vrot.slane %v796, 4
        %v798 = vadd.f32 %v796, %v797
        %v799 = vrot.slane %v798, 2
        %v800 = vadd.f32 %v798, %v799
        %v801 = vrot.slane %v800, 1
        %v802 = vadd.f32 %v800, %v801
        %v803 = vsel %vm494, %v775, 0.0
        %v804 = vrot.slane %v803, 4
        %v805 = vadd.f32 %v803, %v804
        %v806 = vrot.slane %v805, 2
        %v807 = vadd.f32 %v805, %v806
        %v808 = vrot.slane %v807, 1
        %v809 = vadd.f32 %v807, %v808
        %v810 = vsel %vm494, %v776, 0.0
        %v811 = vrot.slane %v810, 4
        %v812 = vadd.f32 %v810, %v811
        %v813 = vrot.slane %v812, 2
        %v814 = vadd.f32 %v812, %v813
        %v815 = vrot.slane %v814, 1
        %v816 = vadd.f32 %v814, %v815
        %v817 = vsel %vm494, %v777, 0.0
        %v818 = vrot.slane %v817, 4
        %v819 = vadd.f32 %v817, %v818
        %v820 = vrot.slane %v819, 2
        %v821 = vadd.f32 %v819, %v820
        %v822 = vrot.slane %v821, 1
        %v823 = vadd.f32 %v821, %v822
        %v824 = vsel %vm494, %v778, 0.0
        %v825 = vrot.slane %v824, 4
        %v826 = vadd.f32 %v824, %v825
        %v827 = vrot.slane %v826, 2
        %v828 = vadd.f32 %v826, %v827
        %v829 = vrot.slane %v828, 1
        %v830 = vadd.f32 %v828, %v829
        %v831 = vsel %vm494, %v779, 0.0
        %v832 = vrot.slane %v831, 4
        %v833 = vadd.f32 %v831, %v832
        %v834 = vrot.slane %v833, 2
        %v835 = vadd.f32 %v833, %v834
        %v836 = vrot.slane %v835, 1
        %v837 = vadd.f32 %v835, %v836
        %v838 = vsel %vm494, %v780, 0.0
        %v839 = vrot.slane %v838, 4
        %v840 = vadd.f32 %v838, %v839
        %v841 = vrot.slane %v840, 2
        %v842 = vadd.f32 %v840, %v841
        %v843 = vrot.slane %v842, 1
        %v844 = vadd.f32 %v842, %v843
        %v845 = vmul.f32 %v795, 0.5
        %v846 = vmul.f32 %v802, 0.5
        %v847 = vmul.f32 %v809, 0.5
        %v848 = vmul.f32 %v816, 0.5
        %v849 = vmul.f32 %v823, 0.5
        %v850 = vmul.f32 %v830, 0.5
        %v851 = vmul.f32 %v837, 0.5
        %v852 = vmul.f32 %v844, 0.5
        %v853 = vadd.f32 %v492, %v493
        %v854 = vmul.f32 %v853, 0.5
        %v855 = vmul.f32 %v845, %v854
        %v856 = vmul.f32 %v846, %v854
        %v857 = vmul.f32 %v847, %v854
        %v858 = vmul.f32 %v848, %v854
        %v859 = vmul.f32 %v849, %v854
        %v860 = vmul.f32 %v850, %v854
        %v861 = vmul.f32 %v851, %v854
        %v862 = vmul.f32 %v852, %v854
        %v863 = vadd.f32 %v765, %v855
        %v864 = vadd.f32 %v766, %v856
        %v865 = vadd.f32 %v767, %v857
        %v866 = vadd.f32 %v768, %v858
        %v867 = vadd.f32 %v769, %v859
        %v868 = vadd.f32 %v770, %v860
        %v869 = vadd.f32 %v771, %v861
        %v870 = vadd.f32 %v772, %v862
        %v871 = vld [vmem:[#allocation6] sm:$0xff]
        %v872 = vld [vmem:[#allocation6 + $0x8] sm:$0xff]
        %v873 = vld [vmem:[#allocation6 + $0x10] sm:$0xff]
        %v874 = vld [vmem:[#allocation6 + $0x18] sm:$0xff]
        %v875 = vld [vmem:[#allocation6 + $0x20] sm:$0xff]
        %v876 = vld [vmem:[#allocation6 + $0x28] sm:$0xff]
        %v877 = vld [vmem:[#allocation6 + $0x30] sm:$0xff]
        %v878 = vld [vmem:[#allocation6 + $0x38] sm:$0xff]
        %v879 = vld [vmem:[#allocation6 + $0x40] sm:$0xff]
        %v880 = vld [vmem:[#allocation6 + $0x48] sm:$0xff]
        %v881 = vld [vmem:[#allocation6 + $0x50] sm:$0xff]
        %v882 = vld [vmem:[#allocation6 + $0x58] sm:$0xff]
        %v883 = vld [vmem:[#allocation6 + $0x60] sm:$0xff]
        %v884 = vld [vmem:[#allocation6 + $0x68] sm:$0xff]
        %v885 = vld [vmem:[#allocation6 + $0x70] sm:$0xff]
        %v886 = vld [vmem:[#allocation6 + $0x78] sm:$0xff]
        %v887 = vld [vmem:[#allocation6 + $0x80] sm:$0xff]
        %v888 = vld [vmem:[#allocation6 + $0x88] sm:$0xff]
        %v889 = vld [vmem:[#allocation6 + $0x90] sm:$0xff]
        %v890 = vld [vmem:[#allocation6 + $0x98] sm:$0xff]
        %v891 = vld [vmem:[#allocation6 + $0xa0] sm:$0xff]
        %v892 = vld [vmem:[#allocation6 + $0xa8] sm:$0xff]
        %v893 = vld [vmem:[#allocation6 + $0xb0] sm:$0xff]
        %v894 = vld [vmem:[#allocation6 + $0xb8] sm:$0xff]
        %v895 = vld [vmem:[#allocation6 + $0xc0] sm:$0xff]
        %v896 = vld [vmem:[#allocation6 + $0xc8] sm:$0xff]
        %v897 = vld [vmem:[#allocation6 + $0xd0] sm:$0xff]
        %v898 = vld [vmem:[#allocation6 + $0xd8] sm:$0xff]
        %v899 = vld [vmem:[#allocation6 + $0xe0] sm:$0xff]
        %v900 = vld [vmem:[#allocation6 + $0xe8] sm:$0xff]
        %v901 = vld [vmem:[#allocation6 + $0xf0] sm:$0xff]
        %v902 = vld [vmem:[#allocation6 + $0xf8] sm:$0xff]
        %v903 = vld [vmem:[#allocation6 + $0x100] sm:$0xff]
        %v904 = vld [vmem:[#allocation6 + $0x108] sm:$0xff]
        %v905 = vld [vmem:[#allocation6 + $0x110] sm:$0xff]
        %v906 = vld [vmem:[#allocation6 + $0x118] sm:$0xff]
        %v907 = vld [vmem:[#allocation6 + $0x120] sm:$0xff]
        %v908 = vld [vmem:[#allocation6 + $0x128] sm:$0xff]
        %v909 = vld [vmem:[#allocation6 + $0x130] sm:$0xff]
        %v910 = vld [vmem:[#allocation6 + $0x138] sm:$0xff]
        %v911 = vld [vmem:[#allocation6 + $0x140] sm:$0xff]
        %v912 = vld [vmem:[#allocation6 + $0x148] sm:$0xff]
        %v913 = vld [vmem:[#allocation6 + $0x150] sm:$0xff]
        %v914 = vld [vmem:[#allocation6 + $0x158] sm:$0xff]
        %v915 = vld [vmem:[#allocation6 + $0x160] sm:$0xff]
        %v916 = vld [vmem:[#allocation6 + $0x168] sm:$0xff]
        %v917 = vld [vmem:[#allocation6 + $0x170] sm:$0xff]
        %v918 = vld [vmem:[#allocation6 + $0x178] sm:$0xff]
        %v919 = vld [vmem:[#allocation6 + $0x180] sm:$0xff]
        %v920 = vld [vmem:[#allocation6 + $0x188] sm:$0xff]
        %v921 = vld [vmem:[#allocation6 + $0x190] sm:$0xff]
        %v922 = vld [vmem:[#allocation6 + $0x198] sm:$0xff]
        %v923 = vld [vmem:[#allocation6 + $0x1a0] sm:$0xff]
        %v924 = vld [vmem:[#allocation6 + $0x1a8] sm:$0xff]
        %v925 = vld [vmem:[#allocation6 + $0x1b0] sm:$0xff]
        %v926 = vld [vmem:[#allocation6 + $0x1b8] sm:$0xff]
        %v927 = vld [vmem:[#allocation6 + $0x1c0] sm:$0xff]
        %v928 = vld [vmem:[#allocation6 + $0x1c8] sm:$0xff]
        %v929 = vld [vmem:[#allocation6 + $0x1d0] sm:$0xff]
        %v930 = vld [vmem:[#allocation6 + $0x1d8] sm:$0xff]
        %v931 = vld [vmem:[#allocation6 + $0x1e0] sm:$0xff]
        %v932 = vld [vmem:[#allocation6 + $0x1e8] sm:$0xff]
        %v933 = vld [vmem:[#allocation6 + $0x1f0] sm:$0xff]
        %v934 = vld [vmem:[#allocation6 + $0x1f8] sm:$0xff]
        %935 = vmatprep.subr.mxu0 %v872
        %936 = vmatpush1.msra.mxu0 %v871
        %937 = vmatprep.subr.mxu0 %v876
        %938 = vmatpush1.msra.mxu0 %v875
        %939 = vmatprep.subr.mxu0 %v880
        %940 = vmatpush1.msra.mxu0 %v879
        %941 = vmatprep.subr.mxu0 %v884
        %942 = vmatpush1.msra.mxu0 %v883
        %943 = vmatprep.subr.mxu0 %v888
        %944 = vmatpush1.msra.mxu0 %v887
        %945 = vmatprep.subr.mxu0 %v892
        %946 = vmatpush1.msra.mxu0 %v891
        %947 = vmatprep.subr.mxu0 %v896
        %948 = vmatpush1.msra.mxu0 %v895
        %949 = vmatprep.subr.mxu0 %v900
        %950 = vmatpush1.msra.mxu0 %v899
        %951 = vmatprep.subr.mxu0 %v904
        %952 = vmatpush1.msra.mxu0 %v903
        %953 = vmatprep.subr.mxu0 %v908
        %954 = vmatpush1.msra.mxu0 %v907
        %955 = vmatprep.subr.mxu0 %v912
        %956 = vmatpush1.msra.mxu0 %v911
        %957 = vmatprep.subr.mxu0 %v916
        %958 = vmatpush1.msra.mxu0 %v915
        %959 = vmatprep.subr.mxu0 %v920
        %960 = vmatpush1.msra.mxu0 %v919
        %961 = vmatprep.subr.mxu0 %v924
        %962 = vmatpush1.msra.mxu0 %v923
        %963 = vmatprep.subr.mxu0 %v928
        %964 = vmatpush1.msra.mxu0 %v927
        %965 = vmatprep.subr.mxu0 %v932
        %966 = vmatpush1.msra.mxu0 %v931
        %967 = vmatprep.subr.mxu0 0.0
        %968 = vmatpush1.msra.mxu0 0.0
        %969 = vmatprep.subr.mxu0 0.0
        %970 = vmatpush1.msra.mxu0 0.0
        %971 = vmatprep.subr.mxu0 0.0
        %972 = vmatpush1.msra.mxu0 0.0
        %973 = vmatprep.subr.mxu0 0.0
        %974 = vmatpush1.msra.mxu0 0.0
        %975 = vmatprep.subr.mxu0 0.0
        %976 = vmatpush1.msra.mxu0 0.0
        %977 = vmatprep.subr.mxu0 0.0
        %978 = vmatpush1.msra.mxu0 0.0
        %979 = vmatprep.subr.mxu0 0.0
        %980 = vmatpush1.msra.mxu0 0.0
        %981 = vmatprep.subr.mxu0 0.0
        %982 = vmatpush1.msra.mxu0 0.0
        %983 = vmatprep.subr.mxu0 0.0
        %984 = vmatpush1.msra.mxu0 0.0
        %985 = vmatprep.subr.mxu0 0.0
        %986 = vmatpush1.msra.mxu0 0.0
        %987 = vmatprep.subr.mxu0 0.0
        %988 = vmatpush1.msra.mxu0 0.0
        %989 = vmatprep.subr.mxu0 0.0
        %990 = vmatpush1.msra.mxu0 0.0
        %991 = vmatprep.subr.mxu0 0.0
        %992 = vmatpush1.msra.mxu0 0.0
        %993 = vmatprep.subr.mxu0 0.0
        %994 = vmatpush1.msra.mxu0 0.0
        %995 = vmatprep.subr.mxu0 0.0
        %996 = vmatpush1.msra.mxu0 0.0
        %997 = vmatprep.subr.mxu0 0.0
        %998 = vmatpush1.msra.mxu0 0.0
        %999 = vmatprep.mubr.f32.mxu0 0.0
        %1000 = vmatmul.mubr.f32.gmra.mrb[0].mxu0 %v486
        %v1001 = vpop.f32.mrb[0].mxu0
        %v1002 = vadd.f32 0.0, %v1001
        %v1003 = vpop.f32.mrb[0].mxu0
        %v1004 = vadd.f32 0.0, %v1003
        %1005 = vmatprep.mubr.f32.mxu0 0.0
        %1006 = vmatmul.mubr.f32.gmra.mrb[0].mxu0 %v487
        %v1007 = vpop.f32.mrb[0].mxu0
        %v1008 = vadd.f32 0.0, %v1007
        %v1009 = vpop.f32.mrb[0].mxu0
        %v1010 = vadd.f32 0.0, %v1009
        %1011 = vmatprep.mubr.f32.mxu0 0.0
        %1012 = vmatmul.mubr.f32.gmra.mrb[0].mxu0 %v488
        %v1013 = vpop.f32.mrb[0].mxu0
        %v1014 = vadd.f32 0.0, %v1013
        %v1015 = vpop.f32.mrb[0].mxu0
        %v1016 = vadd.f32 0.0, %v1015
        %1017 = vmatprep.mubr.f32.mxu0 0.0
        %1018 = vmatmul.mubr.f32.gmra.mrb[0].mxu0 %v489
        %v1019 = vpop.f32.mrb[0].mxu0
        %v1020 = vadd.f32 0.0, %v1019
        %v1021 = vpop.f32.mrb[0].mxu0
        %v1022 = vadd.f32 0.0, %v1021
        %1023 = vmatprep.mubr.f32.mxu0 0.0
        %1024 = vmatmul.mubr.f32.gmra.mrb[0].mxu0 %v490
        %v1025 = vpop.f32.mrb[0].mxu0
        %v1026 = vadd.f32 0.0, %v1025
        %v1027 = vpop.f32.mrb[0].mxu0
        %v1028 = vadd.f32 0.0, %v1027
        %1029 = vmatprep.mubr.f32.mxu0 0.0
        %1030 = vmatmul.mubr.f32.gmra.mrb[0].mxu0 %v491
        %v1031 = vpop.f32.mrb[0].mxu0
        %v1032 = vadd.f32 0.0, %v1031
        %v1033 = vpop.f32.mrb[0].mxu0
        %v1034 = vadd.f32 0.0, %v1033
        %1035 = vmatprep.mubr.f32.mxu0 0.0
        %1036 = vmatmul.mubr.f32.gmra.mrb[0].mxu0 %v492
        %v1037 = vpop.f32.mrb[0].mxu0
        %v1038 = vadd.f32 0.0, %v1037
        %v1039 = vpop.f32.mrb[0].mxu0
        %v1040 = vadd.f32 0.0, %v1039
        %1041 = vmatprep.mubr.f32.mxu0 0.0
        %1042 = vmatmul.mubr.f32.gmra.mrb[0].mxu0 %v493
        %v1043 = vpop.f32.mrb[0].mxu0
        %v1044 = vadd.f32 0.0, %v1043
        %v1045 = vpop.f32.mrb[0].mxu0
        %v1046 = vadd.f32 0.0, %v1045
        %1047 = vdwg.mxu0
        %1048 = vmatprep.subr.mxu0 %v874
        %1049 = vmatpush1.msra.mxu0 %v873
        %1050 = vmatprep.subr.mxu0 %v878
        %1051 = vmatpush1.msra.mxu0 %v877
        %1052 = vmatprep.subr.mxu0 %v882
        %1053 = vmatpush1.msra.mxu0 %v881
        %1054 = vmatprep.subr.mxu0 %v886
        %1055 = vmatpush1.msra.mxu0 %v885
        %1056 = vmatprep.subr.mxu0 %v890
        %1057 = vmatpush1.msra.mxu0 %v889
        %1058 = vmatprep.subr.mxu0 %v894
        %1059 = vmatpush1.msra.mxu0 %v893
        %1060 = vmatprep.subr.mxu0 %v898
        %1061 = vmatpush1.msra.mxu0 %v897
        %1062 = vmatprep.subr.mxu0 %v902
        %1063 = vmatpush1.msra.mxu0 %v901
        %1064 = vmatprep.subr.mxu0 %v906
        %1065 = vmatpush1.msra.mxu0 %v905
        %1066 = vmatprep.subr.mxu0 %v910
        %1067 = vmatpush1.msra.mxu0 %v909
        %1068 = vmatprep.subr.mxu0 %v914
        %1069 = vmatpush1.msra.mxu0 %v913
        %1070 = vmatprep.subr.mxu0 %v918
        %1071 = vmatpush1.msra.mxu0 %v917
        %1072 = vmatprep.subr.mxu0 %v922
        %1073 = vmatpush1.msra.mxu0 %v921
        %1074 = vmatprep.subr.mxu0 %v926
        %1075 = vmatpush1.msra.mxu0 %v925
        %1076 = vmatprep.subr.mxu0 %v930
        %1077 = vmatpush1.msra.mxu0 %v929
        %1078 = vmatprep.subr.mxu0 %v934
        %1079 = vmatpush1.msra.mxu0 %v933
        %1080 = vmatprep.subr.mxu0 0.0
        %1081 = vmatpush1.msra.mxu0 0.0
        %1082 = vmatprep.subr.mxu0 0.0
        %1083 = vmatpush1.msra.mxu0 0.0
        %1084 = vmatprep.subr.mxu0 0.0
        %1085 = vmatpush1.msra.mxu0 0.0
        %1086 = vmatprep.subr.mxu0 0.0
        %1087 = vmatpush1.msra.mxu0 0.0
        %1088 = vmatprep.subr.mxu0 0.0
        %1089 = vmatpush1.msra.mxu0 0.0
        %1090 = vmatprep.subr.mxu0 0.0
        %1091 = vmatpush1.msra.mxu0 0.0
        %1092 = vmatprep.subr.mxu0 0.0
        %1093 = vmatpush1.msra.mxu0 0.0
        %1094 = vmatprep.subr.mxu0 0.0
        %1095 = vmatpush1.msra.mxu0 0.0
        %1096 = vmatprep.subr.mxu0 0.0
        %1097 = vmatpush1.msra.mxu0 0.0
        %1098 = vmatprep.subr.mxu0 0.0
        %1099 = vmatpush1.msra.mxu0 0.0
        %1100 = vmatprep.subr.mxu0 0.0
        %1101 = vmatpush1.msra.mxu0 0.0
        %1102 = vmatprep.subr.mxu0 0.0
        %1103 = vmatpush1.msra.mxu0 0.0
        %1104 = vmatprep.subr.mxu0 0.0
        %1105 = vmatpush1.msra.mxu0 0.0
        %1106 = vmatprep.subr.mxu0 0.0
        %1107 = vmatpush1.msra.mxu0 0.0
        %1108 = vmatprep.subr.mxu0 0.0
        %1109 = vmatpush1.msra.mxu0 0.0
        %1110 = vmatprep.subr.mxu0 0.0
        %1111 = vmatpush1.msra.mxu0 0.0
        %1112 = vmatprep.mubr.f32.mxu0 0.0
        %1113 = vmatmul.mubr.f32.gmra.mrb[0].mxu0 %v486
        %v1114 = vpop.f32.mrb[0].mxu0
        %v1115 = vadd.f32 0.0, %v1114
        %v1116 = vpop.f32.mrb[0].mxu0
        %v1117 = vadd.f32 0.0, %v1116
        %1118 = vmatprep.mubr.f32.mxu0 0.0
        %1119 = vmatmul.mubr.f32.gmra.mrb[0].mxu0 %v487
        %v1120 = vpop.f32.mrb[0].mxu0
        %v1121 = vadd.f32 0.0, %v1120
        %v1122 = vpop.f32.mrb[0].mxu0
        %v1123 = vadd.f32 0.0, %v1122
        %1124 = vmatprep.mubr.f32.mxu0 0.0
        %1125 = vmatmul.mubr.f32.gmra.mrb[0].mxu0 %v488
        %v1126 = vpop.f32.mrb[0].mxu0
        %v1127 = vadd.f32 0.0, %v1126
        %v1128 = vpop.f32.mrb[0].mxu0
        %v1129 = vadd.f32 0.0, %v1128
        %1130 = vmatprep.mubr.f32.mxu0 0.0
        %1131 = vmatmul.mubr.f32.gmra.mrb[0].mxu0 %v489
        %v1132 = vpop.f32.mrb[0].mxu0
        %v1133 = vadd.f32 0.0, %v1132
        %v1134 = vpop.f32.mrb[0].mxu0
        %v1135 = vadd.f32 0.0, %v1134
        %1136 = vmatprep.mubr.f32.mxu0 0.0
        %1137 = vmatmul.mubr.f32.gmra.mrb[0].mxu0 %v490
        %v1138 = vpop.f32.mrb[0].mxu0
        %v1139 = vadd.f32 0.0, %v1138
        %v1140 = vpop.f32.mrb[0].mxu0
        %v1141 = vadd.f32 0.0, %v1140
        %1142 = vmatprep.mubr.f32.mxu0 0.0
        %1143 = vmatmul.mubr.f32.gmra.mrb[0].mxu0 %v491
        %v1144 = vpop.f32.mrb[0].mxu0
        %v1145 = vadd.f32 0.0, %v1144
        %v1146 = vpop.f32.mrb[0].mxu0
        %v1147 = vadd.f32 0.0, %v1146
        %1148 = vmatprep.mubr.f32.mxu0 0.0
        %1149 = vmatmul.mubr.f32.gmra.mrb[0].mxu0 %v492
        %v1150 = vpop.f32.mrb[0].mxu0
        %v1151 = vadd.f32 0.0, %v1150
        %v1152 = vpop.f32.mrb[0].mxu0
        %v1153 = vadd.f32 0.0, %v1152
        %1154 = vmatprep.mubr.f32.mxu0 0.0
        %1155 = vmatmul.mubr.f32.gmra.mrb[0].mxu0 %v493
        %v1156 = vpop.f32.mrb[0].mxu0
        %v1157 = vadd.f32 0.0, %v1156
        %v1158 = vpop.f32.mrb[0].mxu0
        %v1159 = vadd.f32 0.0, %v1158
        %1160 = vdwg.mxu0
        %v1161 = vld [vmem:[#allocation8] sm:$0xff]
        %v1162 = vld [vmem:[#allocation8 + $0x8] sm:$0xff]
        %v1163 = vld [vmem:[#allocation8 + $0x10] sm:$0xff]
        %v1164 = vld [vmem:[#allocation8 + $0x18] sm:$0xff]
        %v1165 = vld [vmem:[#allocation8 + $0x20] sm:$0xff]
        %v1166 = vld [vmem:[#allocation8 + $0x28] sm:$0xff]
        %v1167 = vld [vmem:[#allocation8 + $0x30] sm:$0xff]
        %v1168 = vld [vmem:[#allocation8 + $0x38] sm:$0xff]
        %v1169 = vld [vmem:[#allocation8 + $0x40] sm:$0xff]
        %v1170 = vld [vmem:[#allocation8 + $0x48] sm:$0xff]
        %v1171 = vld [vmem:[#allocation8 + $0x50] sm:$0xff]
        %v1172 = vld [vmem:[#allocation8 + $0x58] sm:$0xff]
        %v1173 = vld [vmem:[#allocation8 + $0x60] sm:$0xff]
        %v1174 = vld [vmem:[#allocation8 + $0x68] sm:$0xff]
        %v1175 = vld [vmem:[#allocation8 + $0x70] sm:$0xff]
        %v1176 = vld [vmem:[#allocation8 + $0x78] sm:$0xff]
        %v1177 = vld [vmem:[#allocation8 + $0x80] sm:$0xff]
        %v1178 = vld [vmem:[#allocation8 + $0x88] sm:$0xff]
        %v1179 = vld [vmem:[#allocation8 + $0x90] sm:$0xff]
        %v1180 = vld [vmem:[#allocation8 + $0x98] sm:$0xff]
        %v1181 = vld [vmem:[#allocation8 + $0xa0] sm:$0xff]
        %v1182 = vld [vmem:[#allocation8 + $0xa8] sm:$0xff]
        %v1183 = vld [vmem:[#allocation8 + $0xb0] sm:$0xff]
        %v1184 = vld [vmem:[#allocation8 + $0xb8] sm:$0xff]
        %v1185 = vld [vmem:[#allocation8 + $0xc0] sm:$0xff]
        %v1186 = vld [vmem:[#allocation8 + $0xc8] sm:$0xff]
        %v1187 = vld [vmem:[#allocation8 + $0xd0] sm:$0xff]
        %v1188 = vld [vmem:[#allocation8 + $0xd8] sm:$0xff]
        %v1189 = vld [vmem:[#allocation8 + $0xe0] sm:$0xff]
        %v1190 = vld [vmem:[#allocation8 + $0xe8] sm:$0xff]
        %v1191 = vld [vmem:[#allocation8 + $0xf0] sm:$0xff]
        %v1192 = vld [vmem:[#allocation8 + $0xf8] sm:$0xff]
        %v1193 = vld [vmem:[#allocation8 + $0x100] sm:$0xff]
        %v1194 = vld [vmem:[#allocation8 + $0x108] sm:$0xff]
        %v1195 = vld [vmem:[#allocation8 + $0x110] sm:$0xff]
        %v1196 = vld [vmem:[#allocation8 + $0x118] sm:$0xff]
        %v1197 = vld [vmem:[#allocation8 + $0x120] sm:$0xff]
        %v1198 = vld [vmem:[#allocation8 + $0x128] sm:$0xff]
        %v1199 = vld [vmem:[#allocation8 + $0x130] sm:$0xff]
        %v1200 = vld [vmem:[#allocation8 + $0x138] sm:$0xff]
        %v1201 = vld [vmem:[#allocation8 + $0x140] sm:$0xff]
        %v1202 = vld [vmem:[#allocation8 + $0x148] sm:$0xff]
        %v1203 = vld [vmem:[#allocation8 + $0x150] sm:$0xff]
        %v1204 = vld [vmem:[#allocation8 + $0x158] sm:$0xff]
        %v1205 = vld [vmem:[#allocation8 + $0x160] sm:$0xff]
        %v1206 = vld [vmem:[#allocation8 + $0x168] sm:$0xff]
        %v1207 = vld [vmem:[#allocation8 + $0x170] sm:$0xff]
        %v1208 = vld [vmem:[#allocation8 + $0x178] sm:$0xff]
        %v1209 = vld [vmem:[#allocation8 + $0x180] sm:$0xff]
        %v1210 = vld [vmem:[#allocation8 + $0x188] sm:$0xff]
        %v1211 = vld [vmem:[#allocation8 + $0x190] sm:$0xff]
        %v1212 = vld [vmem:[#allocation8 + $0x198] sm:$0xff]
        %v1213 = vld [vmem:[#allocation8 + $0x1a0] sm:$0xff]
        %v1214 = vld [vmem:[#allocation8 + $0x1a8] sm:$0xff]
        %v1215 = vld [vmem:[#allocation8 + $0x1b0] sm:$0xff]
        %v1216 = vld [vmem:[#allocation8 + $0x1b8] sm:$0xff]
        %v1217 = vld [vmem:[#allocation8 + $0x1c0] sm:$0xff]
        %v1218 = vld [vmem:[#allocation8 + $0x1c8] sm:$0xff]
        %v1219 = vld [vmem:[#allocation8 + $0x1d0] sm:$0xff]
        %v1220 = vld [vmem:[#allocation8 + $0x1d8] sm:$0xff]
        %v1221 = vld [vmem:[#allocation8 + $0x1e0] sm:$0xff]
        %v1222 = vld [vmem:[#allocation8 + $0x1e8] sm:$0xff]
        %v1223 = vld [vmem:[#allocation8 + $0x1f0] sm:$0xff]
        %v1224 = vld [vmem:[#allocation8 + $0x1f8] sm:$0xff]
        %1225 = vmatprep.subr.mxu0 %v1162
        %1226 = vmatpush1.msra.mxu0 %v1161
        %1227 = vmatprep.subr.mxu0 %v1166
        %1228 = vmatpush1.msra.mxu0 %v1165
        %1229 = vmatprep.subr.mxu0 %v1170
        %1230 = vmatpush1.msra.mxu0 %v1169
        %1231 = vmatprep.subr.mxu0 %v1174
        %1232 = vmatpush1.msra.mxu0 %v1173
        %1233 = vmatprep.subr.mxu0 %v1178
        %1234 = vmatpush1.msra.mxu0 %v1177
        %1235 = vmatprep.subr.mxu0 %v1182
        %1236 = vmatpush1.msra.mxu0 %v1181
        %1237 = vmatprep.subr.mxu0 %v1186
        %1238 = vmatpush1.msra.mxu0 %v1185
        %1239 = vmatprep.subr.mxu0 %v1190
        %1240 = vmatpush1.msra.mxu0 %v1189
        %1241 = vmatprep.subr.mxu0 %v1194
        %1242 = vmatpush1.msra.mxu0 %v1193
        %1243 = vmatprep.subr.mxu0 %v1198
        %1244 = vmatpush1.msra.mxu0 %v1197
        %1245 = vmatprep.subr.mxu0 %v1202
        %1246 = vmatpush1.msra.mxu0 %v1201
        %1247 = vmatprep.subr.mxu0 %v1206
        %1248 = vmatpush1.msra.mxu0 %v1205
        %1249 = vmatprep.subr.mxu0 %v1210
        %1250 = vmatpush1.msra.mxu0 %v1209
        %1251 = vmatprep.subr.mxu0 %v1214
        %1252 = vmatpush1.msra.mxu0 %v1213
        %1253 = vmatprep.subr.mxu0 %v1218
        %1254 = vmatpush1.msra.mxu0 %v1217
        %1255 = vmatprep.subr.mxu0 %v1222
        %1256 = vmatpush1.msra.mxu0 %v1221
        %1257 = vmatprep.subr.mxu0 0.0
        %1258 = vmatpush1.msra.mxu0 0.0
        %1259 = vmatprep.subr.mxu0 0.0
        %1260 = vmatpush1.msra.mxu0 0.0
        %1261 = vmatprep.subr.mxu0 0.0
        %1262 = vmatpush1.msra.mxu0 0.0
        %1263 = vmatprep.subr.mxu0 0.0
        %1264 = vmatpush1.msra.mxu0 0.0
        %1265 = vmatprep.subr.mxu0 0.0
        %1266 = vmatpush1.msra.mxu0 0.0
        %1267 = vmatprep.subr.mxu0 0.0
        %1268 = vmatpush1.msra.mxu0 0.0
        %1269 = vmatprep.subr.mxu0 0.0
        %1270 = vmatpush1.msra.mxu0 0.0
        %1271 = vmatprep.subr.mxu0 0.0
        %1272 = vmatpush1.msra.mxu0 0.0
        %1273 = vmatprep.subr.mxu0 0.0
        %1274 = vmatpush1.msra.mxu0 0.0
        %1275 = vmatprep.subr.mxu0 0.0
        %1276 = vmatpush1.msra.mxu0 0.0
        %1277 = vmatprep.subr.mxu0 0.0
        %1278 = vmatpush1.msra.mxu0 0.0
        %1279 = vmatprep.subr.mxu0 0.0
        %1280 = vmatpush1.msra.mxu0 0.0
        %1281 = vmatprep.subr.mxu0 0.0
        %1282 = vmatpush1.msra.mxu0 0.0
        %1283 = vmatprep.subr.mxu0 0.0
        %1284 = vmatpush1.msra.mxu0 0.0
        %1285 = vmatprep.subr.mxu0 0.0
        %1286 = vmatpush1.msra.mxu0 0.0
        %1287 = vmatprep.subr.mxu0 0.0
        %1288 = vmatpush1.msra.mxu0 0.0
        %1289 = vmatprep.mubr.f32.mxu0 0.0
        %1290 = vmatmul.mubr.f32.gmra.mrb[0].mxu0 %v486
        %v1291 = vpop.f32.mrb[0].mxu0
        %v1292 = vadd.f32 0.0, %v1291
        %v1293 = vpop.f32.mrb[0].mxu0
        %v1294 = vadd.f32 0.0, %v1293
        %1295 = vmatprep.mubr.f32.mxu0 0.0
        %1296 = vmatmul.mubr.f32.gmra.mrb[0].mxu0 %v487
        %v1297 = vpop.f32.mrb[0].mxu0
        %v1298 = vadd.f32 0.0, %v1297
        %v1299 = vpop.f32.mrb[0].mxu0
        %v1300 = vadd.f32 0.0, %v1299
        %1301 = vmatprep.mubr.f32.mxu0 0.0
        %1302 = vmatmul.mubr.f32.gmra.mrb[0].mxu0 %v488
        %v1303 = vpop.f32.mrb[0].mxu0
        %v1304 = vadd.f32 0.0, %v1303
        %v1305 = vpop.f32.mrb[0].mxu0
        %v1306 = vadd.f32 0.0, %v1305
        %1307 = vmatprep.mubr.f32.mxu0 0.0
        %1308 = vmatmul.mubr.f32.gmra.mrb[0].mxu0 %v489
        %v1309 = vpop.f32.mrb[0].mxu0
        %v1310 = vadd.f32 0.0, %v1309
        %v1311 = vpop.f32.mrb[0].mxu0
        %v1312 = vadd.f32 0.0, %v1311
        %1313 = vmatprep.mubr.f32.mxu0 0.0
        %1314 = vmatmul.mubr.f32.gmra.mrb[0].mxu0 %v490
        %v1315 = vpop.f32.mrb[0].mxu0
        %v1316 = vadd.f32 0.0, %v1315
        %v1317 = vpop.f32.mrb[0].mxu0
        %v1318 = vadd.f32 0.0, %v1317
        %1319 = vmatprep.mubr.f32.mxu0 0.0
        %1320 = vmatmul.mubr.f32.gmra.mrb[0].mxu0 %v491
        %v1321 = vpop.f32.mrb[0].mxu0
        %v1322 = vadd.f32 0.0, %v1321
        %v1323 = vpop.f32.mrb[0].mxu0
        %v1324 = vadd.f32 0.0, %v1323
        %1325 = vmatprep.mubr.f32.mxu0 0.0
        %1326 = vmatmul.mubr.f32.gmra.mrb[0].mxu0 %v492
        %v1327 = vpop.f32.mrb[0].mxu0
        %v1328 = vadd.f32 0.0, %v1327
        %v1329 = vpop.f32.mrb[0].mxu0
        %v1330 = vadd.f32 0.0, %v1329
        %1331 = vmatprep.mubr.f32.mxu0 0.0
        %1332 = vmatmul.mubr.f32.gmra.mrb[0].mxu0 %v493
        %v1333 = vpop.f32.mrb[0].mxu0
        %v1334 = vadd.f32 0.0, %v1333
        %v1335 = vpop.f32.mrb[0].mxu0
        %v1336 = vadd.f32 0.0, %v1335
        %1337 = vdwg.mxu0
        %1338 = vmatprep.subr.mxu0 %v1164
        %1339 = vmatpush1.msra.mxu0 %v1163
        %1340 = vmatprep.subr.mxu0 %v1168
        %1341 = vmatpush1.msra.mxu0 %v1167
        %1342 = vmatprep.subr.mxu0 %v1172
        %1343 = vmatpush1.msra.mxu0 %v1171
        %1344 = vmatprep.subr.mxu0 %v1176
        %1345 = vmatpush1.msra.mxu0 %v1175
        %1346 = vmatprep.subr.mxu0 %v1180
        %1347 = vmatpush1.msra.mxu0 %v1179
        %1348 = vmatprep.subr.mxu0 %v1184
        %1349 = vmatpush1.msra.mxu0 %v1183
        %1350 = vmatprep.subr.mxu0 %v1188
        %1351 = vmatpush1.msra.mxu0 %v1187
        %1352 = vmatprep.subr.mxu0 %v1192
        %1353 = vmatpush1.msra.mxu0 %v1191
        %1354 = vmatprep.subr.mxu0 %v1196
        %1355 = vmatpush1.msra.mxu0 %v1195
        %1356 = vmatprep.subr.mxu0 %v1200
        %1357 = vmatpush1.msra.mxu0 %v1199
        %1358 = vmatprep.subr.mxu0 %v1204
        %1359 = vmatpush1.msra.mxu0 %v1203
        %1360 = vmatprep.subr.mxu0 %v1208
        %1361 = vmatpush1.msra.mxu0 %v1207
        %1362 = vmatprep.subr.mxu0 %v1212
        %1363 = vmatpush1.msra.mxu0 %v1211
        %1364 = vmatprep.subr.mxu0 %v1216
        %1365 = vmatpush1.msra.mxu0 %v1215
        %1366 = vmatprep.subr.mxu0 %v1220
        %1367 = vmatpush1.msra.mxu0 %v1219
        %1368 = vmatprep.subr.mxu0 %v1224
        %1369 = vmatpush1.msra.mxu0 %v1223
        %1370 = vmatprep.subr.mxu0 0.0
        %1371 = vmatpush1.msra.mxu0 0.0
        %1372 = vmatprep.subr.mxu0 0.0
        %1373 = vmatpush1.msra.mxu0 0.0
        %1374 = vmatprep.subr.mxu0 0.0
        %1375 = vmatpush1.msra.mxu0 0.0
        %1376 = vmatprep.subr.mxu0 0.0
        %1377 = vmatpush1.msra.mxu0 0.0
        %1378 = vmatprep.subr.mxu0 0.0
        %1379 = vmatpush1.msra.mxu0 0.0
        %1380 = vmatprep.subr.mxu0 0.0
        %1381 = vmatpush1.msra.mxu0 0.0
        %1382 = vmatprep.subr.mxu0 0.0
        %1383 = vmatpush1.msra.mxu0 0.0
        %1384 = vmatprep.subr.mxu0 0.0
        %1385 = vmatpush1.msra.mxu0 0.0
        %1386 = vmatprep.subr.mxu0 0.0
        %1387 = vmatpush1.msra.mxu0 0.0
        %1388 = vmatprep.subr.mxu0 0.0
        %1389 = vmatpush1.msra.mxu0 0.0
        %1390 = vmatprep.subr.mxu0 0.0
        %1391 = vmatpush1.msra.mxu0 0.0
        %1392 = vmatprep.subr.mxu0 0.0
        %1393 = vmatpush1.msra.mxu0 0.0
        %1394 = vmatprep.subr.mxu0 0.0
        %1395 = vmatpush1.msra.mxu0 0.0
        %1396 = vmatprep.subr.mxu0 0.0
        %1397 = vmatpush1.msra.mxu0 0.0
        %1398 = vmatprep.subr.mxu0 0.0
        %1399 = vmatpush1.msra.mxu0 0.0
        %1400 = vmatprep.subr.mxu0 0.0
        %1401 = vmatpush1.msra.mxu0 0.0
        %1402 = vmatprep.mubr.f32.mxu0 0.0
        %1403 = vmatmul.mubr.f32.gmra.mrb[0].mxu0 %v486
        %v1404 = vpop.f32.mrb[0].mxu0
        %v1405 = vadd.f32 0.0, %v1404
        %v1406 = vpop.f32.mrb[0].mxu0
        %v1407 = vadd.f32 0.0, %v1406
        %1408 = vmatprep.mubr.f32.mxu0 0.0
        %1409 = vmatmul.mubr.f32.gmra.mrb[0].mxu0 %v487
        %v1410 = vpop.f32.mrb[0].mxu0
        %v1411 = vadd.f32 0.0, %v1410
        %v1412 = vpop.f32.mrb[0].mxu0
        %v1413 = vadd.f32 0.0, %v1412
        %1414 = vmatprep.mubr.f32.mxu0 0.0
        %1415 = vmatmul.mubr.f32.gmra.mrb[0].mxu0 %v488
        %v1416 = vpop.f32.mrb[0].mxu0
        %v1417 = vadd.f32 0.0, %v1416
        %v1418 = vpop.f32.mrb[0].mxu0
        %v1419 = vadd.f32 0.0, %v1418
        %1420 = vmatprep.mubr.f32.mxu0 0.0
        %1421 = vmatmul.mubr.f32.gmra.mrb[0].mxu0 %v489
        %v1422 = vpop.f32.mrb[0].mxu0
        %v1423 = vadd.f32 0.0, %v1422
        %v1424 = vpop.f32.mrb[0].mxu0
        %v1425 = vadd.f32 0.0, %v1424
        %1426 = vmatprep.mubr.f32.mxu0 0.0
        %1427 = vmatmul.mubr.f32.gmra.mrb[0].mxu0 %v490
        %v1428 = vpop.f32.mrb[0].mxu0
        %v1429 = vadd.f32 0.0, %v1428
        %v1430 = vpop.f32.mrb[0].mxu0
        %v1431 = vadd.f32 0.0, %v1430
        %1432 = vmatprep.mubr.f32.mxu0 0.0
        %1433 = vmatmul.mubr.f32.gmra.mrb[0].mxu0 %v491
        %v1434 = vpop.f32.mrb[0].mxu0
        %v1435 = vadd.f32 0.0, %v1434
        %v1436 = vpop.f32.mrb[0].mxu0
        %v1437 = vadd.f32 0.0, %v1436
        %1438 = vmatprep.mubr.f32.mxu0 0.0
        %1439 = vmatmul.mubr.f32.gmra.mrb[0].mxu0 %v492
        %v1440 = vpop.f32.mrb[0].mxu0
        %v1441 = vadd.f32 0.0, %v1440
        %v1442 = vpop.f32.mrb[0].mxu0
        %v1443 = vadd.f32 0.0, %v1442
        %1444 = vmatprep.mubr.f32.mxu0 0.0
        %1445 = vmatmul.mubr.f32.gmra.mrb[0].mxu0 %v493
        %v1446 = vpop.f32.mrb[0].mxu0
        %v1447 = vadd.f32 0.0, %v1446
        %v1448 = vpop.f32.mrb[0].mxu0
        %v1449 = vadd.f32 0.0, %v1448
        %1450 = vdwg.mxu0
        %v1451 = vmul.f32 %v1002, %v1292
        %v1452 = vmul.f32 %v1008, %v1298
        %v1453 = vmul.f32 %v1014, %v1304
        %v1454 = vmul.f32 %v1020, %v1310
        %v1455 = vmul.f32 %v1026, %v1316
        %v1456 = vmul.f32 %v1032, %v1322
        %v1457 = vmul.f32 %v1038, %v1328
        %v1458 = vmul.f32 %v1044, %v1334
        %v1459 = vmul.f32 %v1004, %v1294
        %v1460 = vmul.f32 %v1010, %v1300
        %v1461 = vmul.f32 %v1016, %v1306
        %v1462 = vmul.f32 %v1022, %v1312
        %v1463 = vmul.f32 %v1028, %v1318
        %v1464 = vmul.f32 %v1034, %v1324
        %v1465 = vmul.f32 %v1040, %v1330
        %v1466 = vmul.f32 %v1046, %v1336
        %v1467 = vadd.f32 %v1451, %v1459
        %v1468 = vadd.f32 %v1452, %v1460
        %v1469 = vadd.f32 %v1453, %v1461
        %v1470 = vadd.f32 %v1454, %v1462
        %v1471 = vadd.f32 %v1455, %v1463
        %v1472 = vadd.f32 %v1456, %v1464
        %v1473 = vadd.f32 %v1457, %v1465
        %v1474 = vadd.f32 %v1458, %v1466
        %v1475 = vmul.f32 %v1115, %v1405
        %v1476 = vmul.f32 %v1121, %v1411
        %v1477 = vmul.f32 %v1127, %v1417
        %v1478 = vmul.f32 %v1133, %v1423
        %v1479 = vmul.f32 %v1139, %v1429
        %v1480 = vmul.f32 %v1145, %v1435
        %v1481 = vmul.f32 %v1151, %v1441
        %v1482 = vmul.f32 %v1157, %v1447
        %v1483 = vadd.f32 %v1467, %v1475
        %v1484 = vadd.f32 %v1468, %v1476
        %v1485 = vadd.f32 %v1469, %v1477
        %v1486 = vadd.f32 %v1470, %v1478
        %v1487 = vadd.f32 %v1471, %v1479
        %v1488 = vadd.f32 %v1472, %v1480
        %v1489 = vadd.f32 %v1473, %v1481
        %v1490 = vadd.f32 %v1474, %v1482
        %v1491 = vmul.f32 %v1117, %v1407
        %v1492 = vmul.f32 %v1123, %v1413
        %v1493 = vmul.f32 %v1129, %v1419
        %v1494 = vmul.f32 %v1135, %v1425
        %v1495 = vmul.f32 %v1141, %v1431
        %v1496 = vmul.f32 %v1147, %v1437
        %v1497 = vmul.f32 %v1153, %v1443
        %v1498 = vmul.f32 %v1159, %v1449
        %v1499 = vadd.f32 %v1483, %v1491
        %v1500 = vadd.f32 %v1484, %v1492
        %v1501 = vadd.f32 %v1485, %v1493
        %v1502 = vadd.f32 %v1486, %v1494
        %v1503 = vadd.f32 %v1487, %v1495
        %v1504 = vadd.f32 %v1488, %v1496
        %v1505 = vadd.f32 %v1489, %v1497
        %v1506 = vadd.f32 %v1490, %v1498
        %1507 = vst [vmem:[#allocation2] sm:$0xff] 0.0
        %1508 = vst [vmem:[#allocation2 + $0x8] sm:$0x3] 0.0
        %1509 = vst [vmem:[#allocation2 + $0x10] sm:$0xff] 0.0
        %1510 = vst [vmem:[#allocation2 + $0x18] sm:$0x3] 0.0
        %1511 = vst [vmem:[#allocation2 + $0x20] sm:$0xff] 0.0
        %1512 = vst [vmem:[#allocation2 + $0x28] sm:$0x3] 0.0
        %1513 = vst [vmem:[#allocation2 + $0x30] sm:$0xff] 0.0
        %1514 = vst [vmem:[#allocation2 + $0x38] sm:$0x3] 0.0
        %1515 = vst [vmem:[#allocation2 + $0x40] sm:$0xff] 0.0
        %1516 = vst [vmem:[#allocation2 + $0x48] sm:$0x3] 0.0
        %1517 = vst [vmem:[#allocation2 + $0x50] sm:$0xff] 0.0
        %1518 = vst [vmem:[#allocation2 + $0x58] sm:$0x3] 0.0
        %1519 = vst [vmem:[#allocation2 + $0x60] sm:$0xff] 0.0
        %1520 = vst [vmem:[#allocation2 + $0x68] sm:$0x3] 0.0
        %1521 = vst [vmem:[#allocation2 + $0x70] sm:$0xff] 0.0
        %1522 = vst [vmem:[#allocation2 + $0x78] sm:$0x3] 0.0
        %1523 = vst [vmem:[#allocation2 + $0x80] sm:$0xff] 0.0
        %1524 = vst [vmem:[#allocation2 + $0x88] sm:$0x3] 0.0
        %1525 = vst [vmem:[#allocation2 + $0x90] sm:$0xff] 0.0
        %1526 = vst [vmem:[#allocation2 + $0x98] sm:$0x3] 0.0
        %s1527 = scalar_lea.vmem [#allocation2], 16
        %1528 = vst [vmem:[%s1527 + $0x1] sm:$0xff] %v863
        %1529 = vst [vmem:[%s1527 + $0x11] sm:$0xff] %v864
        %1530 = vst [vmem:[%s1527 + $0x21] sm:$0xff] %v865
        %1531 = vst [vmem:[%s1527 + $0x31] sm:$0xff] %v866
        %1532 = vst [vmem:[%s1527 + $0x41] sm:$0xff] %v867
        %1533 = vst [vmem:[%s1527 + $0x51] sm:$0xff] %v868
        %1534 = vst [vmem:[%s1527 + $0x61] sm:$0xff] %v869
        %1535 = vst [vmem:[%s1527 + $0x71] sm:$0xff] %v870
        %v1536 = vld [vmem:[#allocation2] sm:$0xff]
        %v1537 = vld [vmem:[#allocation2 + $0x10] sm:$0xff]
        %v1538 = vld [vmem:[#allocation2 + $0x20] sm:$0xff]
        %v1539 = vld [vmem:[#allocation2 + $0x30] sm:$0xff]
        %v1540 = vld [vmem:[#allocation2 + $0x40] sm:$0xff]
        %v1541 = vld [vmem:[#allocation2 + $0x50] sm:$0xff]
        %v1542 = vld [vmem:[#allocation2 + $0x60] sm:$0xff]
        %v1543 = vld [vmem:[#allocation2 + $0x70] sm:$0xff]
        %v1544 = vld [vmem:[%s3] sm:$0x1]
        %v1545 = vlaneseq
        %v1546 = vshrl.u32 %v1545, 7
        %v1547 = vsub.s32 0, %v1546
        %v1548 = vrot.slane %v1544, %v1547
        %v1549 = vmul.f32 %v1536, %v1548
        %v1550 = vmul.f32 %v1537, %v1548
        %v1551 = vmul.f32 %v1538, %v1548
        %v1552 = vmul.f32 %v1539, %v1548
        %v1553 = vmul.f32 %v1540, %v1548
        %v1554 = vmul.f32 %v1541, %v1548
        %v1555 = vmul.f32 %v1542, %v1548
        %v1556 = vmul.f32 %v1543, %v1548
        %v1557 = vld [vmem:[#allocation2 + $0x1] sm:$0xff]
        %v1558 = vld [vmem:[#allocation2 + $0x11] sm:$0xff]
        %v1559 = vld [vmem:[#allocation2 + $0x21] sm:$0xff]
        %v1560 = vld [vmem:[#allocation2 + $0x31] sm:$0xff]
        %v1561 = vld [vmem:[#allocation2 + $0x41] sm:$0xff]
        %v1562 = vld [vmem:[#allocation2 + $0x51] sm:$0xff]
        %v1563 = vld [vmem:[#allocation2 + $0x61] sm:$0xff]
        %v1564 = vld [vmem:[#allocation2 + $0x71] sm:$0xff]
        %v1565 = vld [vmem:[%s3 + $0x1] sm:$0x1]
        %v1566 = vlaneseq
        %v1567 = vshrl.u32 %v1566, 7
        %v1568 = vsub.s32 0, %v1567
        %v1569 = vrot.slane %v1565, %v1568
        %v1570 = vmul.f32 %v1557, %v1569
        %v1571 = vmul.f32 %v1558, %v1569
        %v1572 = vmul.f32 %v1559, %v1569
        %v1573 = vmul.f32 %v1560, %v1569
        %v1574 = vmul.f32 %v1561, %v1569
        %v1575 = vmul.f32 %v1562, %v1569
        %v1576 = vmul.f32 %v1563, %v1569
        %v1577 = vmul.f32 %v1564, %v1569
        %v1578 = vadd.f32 %v1549, %v1570
        %v1579 = vadd.f32 %v1550, %v1571
        %v1580 = vadd.f32 %v1551, %v1572
        %v1581 = vadd.f32 %v1552, %v1573
        %v1582 = vadd.f32 %v1553, %v1574
        %v1583 = vadd.f32 %v1554, %v1575
        %v1584 = vadd.f32 %v1555, %v1576
        %v1585 = vadd.f32 %v1556, %v1577
        %v1586 = vld [vmem:[#allocation2 + $0x2] sm:$0xff]
        %v1587 = vld [vmem:[#allocation2 + $0x12] sm:$0xff]
        %v1588 = vld [vmem:[#allocation2 + $0x22] sm:$0xff]
        %v1589 = vld [vmem:[#allocation2 + $0x32] sm:$0xff]
        %v1590 = vld [vmem:[#allocation2 + $0x42] sm:$0xff]
        %v1591 = vld [vmem:[#allocation2 + $0x52] sm:$0xff]
        %v1592 = vld [vmem:[#allocation2 + $0x62] sm:$0xff]
        %v1593 = vld [vmem:[#allocation2 + $0x72] sm:$0xff]
        %v1594 = vld [vmem:[%s3 + $0x2] sm:$0x1]
        %v1595 = vlaneseq
        %v1596 = vshrl.u32 %v1595, 7
        %v1597 = vsub.s32 0, %v1596
        %v1598 = vrot.slane %v1594, %v1597
        %v1599 = vmul.f32 %v1586, %v1598
        %v1600 = vmul.f32 %v1587, %v1598
        %v1601 = vmul.f32 %v1588, %v1598
        %v1602 = vmul.f32 %v1589, %v1598
        %v1603 = vmul.f32 %v1590, %v1598
        %v1604 = vmul.f32 %v1591, %v1598
        %v1605 = vmul.f32 %v1592, %v1598
        %v1606 = vmul.f32 %v1593, %v1598
        %v1607 = vadd.f32 %v1578, %v1599
        %v1608 = vadd.f32 %v1579, %v1600
        %v1609 = vadd.f32 %v1580, %v1601
        %v1610 = vadd.f32 %v1581, %v1602
        %v1611 = vadd.f32 %v1582, %v1603
        %v1612 = vadd.f32 %v1583, %v1604
        %v1613 = vadd.f32 %v1584, %v1605
        %v1614 = vadd.f32 %v1585, %v1606
        %v1615 = vld [vmem:[%s1527] sm:$0xff]
        %v1616 = vld [vmem:[%s1527 + $0x10] sm:$0xff]
        %v1617 = vld [vmem:[%s1527 + $0x20] sm:$0xff]
        %v1618 = vld [vmem:[%s1527 + $0x30] sm:$0xff]
        %v1619 = vld [vmem:[%s1527 + $0x40] sm:$0xff]
        %v1620 = vld [vmem:[%s1527 + $0x50] sm:$0xff]
        %v1621 = vld [vmem:[%s1527 + $0x60] sm:$0xff]
        %v1622 = vld [vmem:[%s1527 + $0x70] sm:$0xff]
        %v1623 = vld [vmem:[%s3 + $0x3] sm:$0x1]
        %v1624 = vlaneseq
        %v1625 = vshrl.u32 %v1624, 7
        %v1626 = vsub.s32 0, %v1625
        %v1627 = vrot.slane %v1623, %v1626
        %v1628 = vmul.f32 %v1615, %v1627
        %v1629 = vmul.f32 %v1616, %v1627
        %v1630 = vmul.f32 %v1617, %v1627
        %v1631 = vmul.f32 %v1618, %v1627
        %v1632 = vmul.f32 %v1619, %v1627
        %v1633 = vmul.f32 %v1620, %v1627
        %v1634 = vmul.f32 %v1621, %v1627
        %v1635 = vmul.f32 %v1622, %v1627
        %v1636 = vadd.f32 %v1607, %v1628
        %v1637 = vadd.f32 %v1608, %v1629
        %v1638 = vadd.f32 %v1609, %v1630
        %v1639 = vadd.f32 %v1610, %v1631
        %v1640 = vadd.f32 %v1611, %v1632
        %v1641 = vadd.f32 %v1612, %v1633
        %v1642 = vadd.f32 %v1613, %v1634
        %v1643 = vadd.f32 %v1614, %v1635
        %v1644 = vld [vmem:[%s1527 + $0x1] sm:$0xff]
        %v1645 = vld [vmem:[%s1527 + $0x11] sm:$0xff]
        %v1646 = vld [vmem:[%s1527 + $0x21] sm:$0xff]
        %v1647 = vld [vmem:[%s1527 + $0x31] sm:$0xff]
        %v1648 = vld [vmem:[%s1527 + $0x41] sm:$0xff]
        %v1649 = vld [vmem:[%s1527 + $0x51] sm:$0xff]
        %v1650 = vld [vmem:[%s1527 + $0x61] sm:$0xff]
        %v1651 = vld [vmem:[%s1527 + $0x71] sm:$0xff]
        %v1652 = vld [vmem:[%s3 + $0x4] sm:$0x1]
        %v1653 = vlaneseq
        %v1654 = vshrl.u32 %v1653, 7
        %v1655 = vsub.s32 0, %v1654
        %v1656 = vrot.slane %v1652, %v1655
        %v1657 = vmul.f32 %v1644, %v1656
        %v1658 = vmul.f32 %v1645, %v1656
        %v1659 = vmul.f32 %v1646, %v1656
        %v1660 = vmul.f32 %v1647, %v1656
        %v1661 = vmul.f32 %v1648, %v1656
        %v1662 = vmul.f32 %v1649, %v1656
        %v1663 = vmul.f32 %v1650, %v1656
        %v1664 = vmul.f32 %v1651, %v1656
        %v1665 = vadd.f32 %v1636, %v1657
        %v1666 = vadd.f32 %v1637, %v1658
        %v1667 = vadd.f32 %v1638, %v1659
        %v1668 = vadd.f32 %v1639, %v1660
        %v1669 = vadd.f32 %v1640, %v1661
        %v1670 = vadd.f32 %v1641, %v1662
        %v1671 = vadd.f32 %v1642, %v1663
        %v1672 = vadd.f32 %v1643, %v1664
        %v1673 = vld [vmem:[%s1527 + $0x2] sm:$0xff]
        %v1674 = vld [vmem:[%s1527 + $0x12] sm:$0xff]
        %v1675 = vld [vmem:[%s1527 + $0x22] sm:$0xff]
        %v1676 = vld [vmem:[%s1527 + $0x32] sm:$0xff]
        %v1677 = vld [vmem:[%s1527 + $0x42] sm:$0xff]
        %v1678 = vld [vmem:[%s1527 + $0x52] sm:$0xff]
        %v1679 = vld [vmem:[%s1527 + $0x62] sm:$0xff]
        %v1680 = vld [vmem:[%s1527 + $0x72] sm:$0xff]
        %v1681 = vld [vmem:[%s3 + $0x5] sm:$0x1]
        %v1682 = vlaneseq
        %v1683 = vshrl.u32 %v1682, 7
        %v1684 = vsub.s32 0, %v1683
        %v1685 = vrot.slane %v1681, %v1684
        %v1686 = vmul.f32 %v1673, %v1685
        %v1687 = vmul.f32 %v1674, %v1685
        %v1688 = vmul.f32 %v1675, %v1685
        %v1689 = vmul.f32 %v1676, %v1685
        %v1690 = vmul.f32 %v1677, %v1685
        %v1691 = vmul.f32 %v1678, %v1685
        %v1692 = vmul.f32 %v1679, %v1685
        %v1693 = vmul.f32 %v1680, %v1685
        %v1694 = vadd.f32 %v1665, %v1686
        %v1695 = vadd.f32 %v1666, %v1687
        %v1696 = vadd.f32 %v1667, %v1688
        %v1697 = vadd.f32 %v1668, %v1689
        %v1698 = vadd.f32 %v1669, %v1690
        %v1699 = vadd.f32 %v1670, %v1691
        %v1700 = vadd.f32 %v1671, %v1692
        %v1701 = vadd.f32 %v1672, %v1693
        %s1702 = scalar_lea.vmem [#allocation2], 32
        %v1703 = vld [vmem:[%s1702] sm:$0xff]
        %v1704 = vld [vmem:[%s1702 + $0x10] sm:$0xff]
        %v1705 = vld [vmem:[%s1702 + $0x20] sm:$0xff]
        %v1706 = vld [vmem:[%s1702 + $0x30] sm:$0xff]
        %v1707 = vld [vmem:[%s1702 + $0x40] sm:$0xff]
        %v1708 = vld [vmem:[%s1702 + $0x50] sm:$0xff]
        %v1709 = vld [vmem:[%s1702 + $0x60] sm:$0xff]
        %v1710 = vld [vmem:[%s1702 + $0x70] sm:$0xff]
        %v1711 = vld [vmem:[%s3 + $0x6] sm:$0x1]
        %v1712 = vlaneseq
        %v1713 = vshrl.u32 %v1712, 7
        %v1714 = vsub.s32 0, %v1713
        %v1715 = vrot.slane %v1711, %v1714
        %v1716 = vmul.f32 %v1703, %v1715
        %v1717 = vmul.f32 %v1704, %v1715
        %v1718 = vmul.f32 %v1705, %v1715
        %v1719 = vmul.f32 %v1706, %v1715
        %v1720 = vmul.f32 %v1707, %v1715
        %v1721 = vmul.f32 %v1708, %v1715
        %v1722 = vmul.f32 %v1709, %v1715
        %v1723 = vmul.f32 %v1710, %v1715
        %v1724 = vadd.f32 %v1694, %v1716
        %v1725 = vadd.f32 %v1695, %v1717
        %v1726 = vadd.f32 %v1696, %v1718
        %v1727 = vadd.f32 %v1697, %v1719
        %v1728 = vadd.f32 %v1698, %v1720
        %v1729 = vadd.f32 %v1699, %v1721
        %v1730 = vadd.f32 %v1700, %v1722
        %v1731 = vadd.f32 %v1701, %v1723
        %v1732 = vld [vmem:[%s1702 + $0x1] sm:$0xff]
        %v1733 = vld [vmem:[%s1702 + $0x11] sm:$0xff]
        %v1734 = vld [vmem:[%s1702 + $0x21] sm:$0xff]
        %v1735 = vld [vmem:[%s1702 + $0x31] sm:$0xff]
        %v1736 = vld [vmem:[%s1702 + $0x41] sm:$0xff]
        %v1737 = vld [vmem:[%s1702 + $0x51] sm:$0xff]
        %v1738 = vld [vmem:[%s1702 + $0x61] sm:$0xff]
        %v1739 = vld [vmem:[%s1702 + $0x71] sm:$0xff]
        %v1740 = vld [vmem:[%s3 + $0x7] sm:$0x1]
        %v1741 = vlaneseq
        %v1742 = vshrl.u32 %v1741, 7
        %v1743 = vsub.s32 0, %v1742
        %v1744 = vrot.slane %v1740, %v1743
        %v1745 = vmul.f32 %v1732, %v1744
        %v1746 = vmul.f32 %v1733, %v1744
        %v1747 = vmul.f32 %v1734, %v1744
        %v1748 = vmul.f32 %v1735, %v1744
        %v1749 = vmul.f32 %v1736, %v1744
        %v1750 = vmul.f32 %v1737, %v1744
        %v1751 = vmul.f32 %v1738, %v1744
        %v1752 = vmul.f32 %v1739, %v1744
        %v1753 = vadd.f32 %v1724, %v1745
        %v1754 = vadd.f32 %v1725, %v1746
        %v1755 = vadd.f32 %v1726, %v1747
        %v1756 = vadd.f32 %v1727, %v1748
        %v1757 = vadd.f32 %v1728, %v1749
        %v1758 = vadd.f32 %v1729, %v1750
        %v1759 = vadd.f32 %v1730, %v1751
        %v1760 = vadd.f32 %v1731, %v1752
        %v1761 = vld [vmem:[%s1702 + $0x2] sm:$0xff]
        %v1762 = vld [vmem:[%s1702 + $0x12] sm:$0xff]
        %v1763 = vld [vmem:[%s1702 + $0x22] sm:$0xff]
        %v1764 = vld [vmem:[%s1702 + $0x32] sm:$0xff]
        %v1765 = vld [vmem:[%s1702 + $0x42] sm:$0xff]
        %v1766 = vld [vmem:[%s1702 + $0x52] sm:$0xff]
        %v1767 = vld [vmem:[%s1702 + $0x62] sm:$0xff]
        %v1768 = vld [vmem:[%s1702 + $0x72] sm:$0xff]
        %v1769 = vld [vmem:[%s3 + $0x8] sm:$0x1]
        %v1770 = vlaneseq
        %v1771 = vshrl.u32 %v1770, 7
        %v1772 = vsub.s32 0, %v1771
        %v1773 = vrot.slane %v1769, %v1772
        %v1774 = vmul.f32 %v1761, %v1773
        %v1775 = vmul.f32 %v1762, %v1773
        %v1776 = vmul.f32 %v1763, %v1773
        %v1777 = vmul.f32 %v1764, %v1773
        %v1778 = vmul.f32 %v1765, %v1773
        %v1779 = vmul.f32 %v1766, %v1773
        %v1780 = vmul.f32 %v1767, %v1773
        %v1781 = vmul.f32 %v1768, %v1773
        %v1782 = vadd.f32 %v1753, %v1774
        %v1783 = vadd.f32 %v1754, %v1775
        %v1784 = vadd.f32 %v1755, %v1776
        %v1785 = vadd.f32 %v1756, %v1777
        %v1786 = vadd.f32 %v1757, %v1778
        %v1787 = vadd.f32 %v1758, %v1779
        %v1788 = vadd.f32 %v1759, %v1780
        %v1789 = vadd.f32 %v1760, %v1781
        %v1790 = vld [vmem:[%s4] sm:$0x1]
        %v1792 = vlaneseq
        %v1793 = vshrl.u32 %v1792, 7
        %v1794 = vsub.s32 0, %v1793
        %v1795 = vrot.slane %v1790, %v1794
        %v1797 = vadd.f32 %v1782, %v1795
        %v1798 = vadd.f32 %v1783, %v1795
        %v1799 = vadd.f32 %v1784, %v1795
        %v1800 = vadd.f32 %v1785, %v1795
        %v1801 = vadd.f32 %v1786, %v1795
        %v1802 = vadd.f32 %v1787, %v1795
        %v1803 = vadd.f32 %v1788, %v1795
        %v1804 = vadd.f32 %v1789, %v1795
        %1805 = vst [vmem:[%s1527 + $0x1] sm:$0xff] %v1499
        %1806 = vst [vmem:[%s1527 + $0x11] sm:$0xff] %v1500
        %1807 = vst [vmem:[%s1527 + $0x21] sm:$0xff] %v1501
        %1808 = vst [vmem:[%s1527 + $0x31] sm:$0xff] %v1502
        %1809 = vst [vmem:[%s1527 + $0x41] sm:$0xff] %v1503
        %1810 = vst [vmem:[%s1527 + $0x51] sm:$0xff] %v1504
        %1811 = vst [vmem:[%s1527 + $0x61] sm:$0xff] %v1505
        %1812 = vst [vmem:[%s1527 + $0x71] sm:$0xff] %v1506
        %v1813 = vld [vmem:[#allocation2] sm:$0xff]
        %v1814 = vld [vmem:[#allocation2 + $0x10] sm:$0xff]
        %v1815 = vld [vmem:[#allocation2 + $0x20] sm:$0xff]
        %v1816 = vld [vmem:[#allocation2 + $0x30] sm:$0xff]
        %v1817 = vld [vmem:[#allocation2 + $0x40] sm:$0xff]
        %v1818 = vld [vmem:[#allocation2 + $0x50] sm:$0xff]
        %v1819 = vld [vmem:[#allocation2 + $0x60] sm:$0xff]
        %v1820 = vld [vmem:[#allocation2 + $0x70] sm:$0xff]
        %v1821 = vld [vmem:[#allocation9] sm:$0x1]
        %v1822 = vlaneseq
        %v1823 = vshrl.u32 %v1822, 7
        %v1824 = vsub.s32 0, %v1823
        %v1825 = vrot.slane %v1821, %v1824
        %v1826 = vmul.f32 %v1813, %v1825
        %v1827 = vmul.f32 %v1814, %v1825
        %v1828 = vmul.f32 %v1815, %v1825
        %v1829 = vmul.f32 %v1816, %v1825
        %v1830 = vmul.f32 %v1817, %v1825
        %v1831 = vmul.f32 %v1818, %v1825
        %v1832 = vmul.f32 %v1819, %v1825
        %v1833 = vmul.f32 %v1820, %v1825
        %v1834 = vld [vmem:[#allocation2 + $0x1] sm:$0xff]
        %v1835 = vld [vmem:[#allocation2 + $0x11] sm:$0xff]
        %v1836 = vld [vmem:[#allocation2 + $0x21] sm:$0xff]
        %v1837 = vld [vmem:[#allocation2 + $0x31] sm:$0xff]
        %v1838 = vld [vmem:[#allocation2 + $0x41] sm:$0xff]
        %v1839 = vld [vmem:[#allocation2 + $0x51] sm:$0xff]
        %v1840 = vld [vmem:[#allocation2 + $0x61] sm:$0xff]
        %v1841 = vld [vmem:[#allocation2 + $0x71] sm:$0xff]
        %v1842 = vld [vmem:[#allocation9 + $0x1] sm:$0x1]
        %v1843 = vlaneseq
        %v1844 = vshrl.u32 %v1843, 7
        %v1845 = vsub.s32 0, %v1844
        %v1846 = vrot.slane %v1842, %v1845
        %v1847 = vmul.f32 %v1834, %v1846
        %v1848 = vmul.f32 %v1835, %v1846
        %v1849 = vmul.f32 %v1836, %v1846
        %v1850 = vmul.f32 %v1837, %v1846
        %v1851 = vmul.f32 %v1838, %v1846
        %v1852 = vmul.f32 %v1839, %v1846
        %v1853 = vmul.f32 %v1840, %v1846
        %v1854 = vmul.f32 %v1841, %v1846
        %v1855 = vadd.f32 %v1826, %v1847
        %v1856 = vadd.f32 %v1827, %v1848
        %v1857 = vadd.f32 %v1828, %v1849
        %v1858 = vadd.f32 %v1829, %v1850
        %v1859 = vadd.f32 %v1830, %v1851
        %v1860 = vadd.f32 %v1831, %v1852
        %v1861 = vadd.f32 %v1832, %v1853
        %v1862 = vadd.f32 %v1833, %v1854
        %v1863 = vld [vmem:[#allocation2 + $0x2] sm:$0xff]
        %v1864 = vld [vmem:[#allocation2 + $0x12] sm:$0xff]
        %v1865 = vld [vmem:[#allocation2 + $0x22] sm:$0xff]
        %v1866 = vld [vmem:[#allocation2 + $0x32] sm:$0xff]
        %v1867 = vld [vmem:[#allocation2 + $0x42] sm:$0xff]
        %v1868 = vld [vmem:[#allocation2 + $0x52] sm:$0xff]
        %v1869 = vld [vmem:[#allocation2 + $0x62] sm:$0xff]
        %v1870 = vld [vmem:[#allocation2 + $0x72] sm:$0xff]
        %v1871 = vld [vmem:[#allocation9 + $0x2] sm:$0x1]
        %v1872 = vlaneseq
        %v1873 = vshrl.u32 %v1872, 7
        %v1874 = vsub.s32 0, %v1873
        %v1875 = vrot.slane %v1871, %v1874
        %v1876 = vmul.f32 %v1863, %v1875
        %v1877 = vmul.f32 %v1864, %v1875
        %v1878 = vmul.f32 %v1865, %v1875
        %v1879 = vmul.f32 %v1866, %v1875
        %v1880 = vmul.f32 %v1867, %v1875
        %v1881 = vmul.f32 %v1868, %v1875
        %v1882 = vmul.f32 %v1869, %v1875
        %v1883 = vmul.f32 %v1870, %v1875
        %v1884 = vadd.f32 %v1855, %v1876
        %v1885 = vadd.f32 %v1856, %v1877
        %v1886 = vadd.f32 %v1857, %v1878
        %v1887 = vadd.f32 %v1858, %v1879
        %v1888 = vadd.f32 %v1859, %v1880
        %v1889 = vadd.f32 %v1860, %v1881
        %v1890 = vadd.f32 %v1861, %v1882
        %v1891 = vadd.f32 %v1862, %v1883
        %v1892 = vld [vmem:[%s1527] sm:$0xff]
        %v1893 = vld [vmem:[%s1527 + $0x10] sm:$0xff]
        %v1894 = vld [vmem:[%s1527 + $0x20] sm:$0xff]
        %v1895 = vld [vmem:[%s1527 + $0x30] sm:$0xff]
        %v1896 = vld [vmem:[%s1527 + $0x40] sm:$0xff]
        %v1897 = vld [vmem:[%s1527 + $0x50] sm:$0xff]
        %v1898 = vld [vmem:[%s1527 + $0x60] sm:$0xff]
        %v1899 = vld [vmem:[%s1527 + $0x70] sm:$0xff]
        %v1900 = vld [vmem:[#allocation9 + $0x3] sm:$0x1]
        %v1901 = vlaneseq
        %v1902 = vshrl.u32 %v1901, 7
        %v1903 = vsub.s32 0, %v1902
        %v1904 = vrot.slane %v1900, %v1903
        %v1905 = vmul.f32 %v1892, %v1904
        %v1906 = vmul.f32 %v1893, %v1904
        %v1907 = vmul.f32 %v1894, %v1904
        %v1908 = vmul.f32 %v1895, %v1904
        %v1909 = vmul.f32 %v1896, %v1904
        %v1910 = vmul.f32 %v1897, %v1904
        %v1911 = vmul.f32 %v1898, %v1904
        %v1912 = vmul.f32 %v1899, %v1904
        %v1913 = vadd.f32 %v1884, %v1905
        %v1914 = vadd.f32 %v1885, %v1906
        %v1915 = vadd.f32 %v1886, %v1907
        %v1916 = vadd.f32 %v1887, %v1908
        %v1917 = vadd.f32 %v1888, %v1909
        %v1918 = vadd.f32 %v1889, %v1910
        %v1919 = vadd.f32 %v1890, %v1911
        %v1920 = vadd.f32 %v1891, %v1912
        %v1921 = vld [vmem:[%s1527 + $0x1] sm:$0xff]
        %v1922 = vld [vmem:[%s1527 + $0x11] sm:$0xff]
        %v1923 = vld [vmem:[%s1527 + $0x21] sm:$0xff]
        %v1924 = vld [vmem:[%s1527 + $0x31] sm:$0xff]
        %v1925 = vld [vmem:[%s1527 + $0x41] sm:$0xff]
        %v1926 = vld [vmem:[%s1527 + $0x51] sm:$0xff]
        %v1927 = vld [vmem:[%s1527 + $0x61] sm:$0xff]
        %v1928 = vld [vmem:[%s1527 + $0x71] sm:$0xff]
        %v1929 = vld [vmem:[#allocation9 + $0x4] sm:$0x1]
        %v1930 = vlaneseq
        %v1931 = vshrl.u32 %v1930, 7
        %v1932 = vsub.s32 0, %v1931
        %v1933 = vrot.slane %v1929, %v1932
        %v1934 = vmul.f32 %v1921, %v1933
        %v1935 = vmul.f32 %v1922, %v1933
        %v1936 = vmul.f32 %v1923, %v1933
        %v1937 = vmul.f32 %v1924, %v1933
        %v1938 = vmul.f32 %v1925, %v1933
        %v1939 = vmul.f32 %v1926, %v1933
        %v1940 = vmul.f32 %v1927, %v1933
        %v1941 = vmul.f32 %v1928, %v1933
        %v1942 = vadd.f32 %v1913, %v1934
        %v1943 = vadd.f32 %v1914, %v1935
        %v1944 = vadd.f32 %v1915, %v1936
        %v1945 = vadd.f32 %v1916, %v1937
        %v1946 = vadd.f32 %v1917, %v1938
        %v1947 = vadd.f32 %v1918, %v1939
        %v1948 = vadd.f32 %v1919, %v1940
        %v1949 = vadd.f32 %v1920, %v1941
        %v1950 = vld [vmem:[%s1527 + $0x2] sm:$0xff]
        %v1951 = vld [vmem:[%s1527 + $0x12] sm:$0xff]
        %v1952 = vld [vmem:[%s1527 + $0x22] sm:$0xff]
        %v1953 = vld [vmem:[%s1527 + $0x32] sm:$0xff]
        %v1954 = vld [vmem:[%s1527 + $0x42] sm:$0xff]
        %v1955 = vld [vmem:[%s1527 + $0x52] sm:$0xff]
        %v1956 = vld [vmem:[%s1527 + $0x62] sm:$0xff]
        %v1957 = vld [vmem:[%s1527 + $0x72] sm:$0xff]
        %v1958 = vld [vmem:[#allocation9 + $0x5] sm:$0x1]
        %v1959 = vlaneseq
        %v1960 = vshrl.u32 %v1959, 7
        %v1961 = vsub.s32 0, %v1960
        %v1962 = vrot.slane %v1958, %v1961
        %v1963 = vmul.f32 %v1950, %v1962
        %v1964 = vmul.f32 %v1951, %v1962
        %v1965 = vmul.f32 %v1952, %v1962
        %v1966 = vmul.f32 %v1953, %v1962
        %v1967 = vmul.f32 %v1954, %v1962
        %v1968 = vmul.f32 %v1955, %v1962
        %v1969 = vmul.f32 %v1956, %v1962
        %v1970 = vmul.f32 %v1957, %v1962
        %v1971 = vadd.f32 %v1942, %v1963
        %v1972 = vadd.f32 %v1943, %v1964
        %v1973 = vadd.f32 %v1944, %v1965
        %v1974 = vadd.f32 %v1945, %v1966
        %v1975 = vadd.f32 %v1946, %v1967
        %v1976 = vadd.f32 %v1947, %v1968
        %v1977 = vadd.f32 %v1948, %v1969
        %v1978 = vadd.f32 %v1949, %v1970
        %v1979 = vld [vmem:[%s1702] sm:$0xff]
        %v1980 = vld [vmem:[%s1702 + $0x10] sm:$0xff]
        %v1981 = vld [vmem:[%s1702 + $0x20] sm:$0xff]
        %v1982 = vld [vmem:[%s1702 + $0x30] sm:$0xff]
        %v1983 = vld [vmem:[%s1702 + $0x40] sm:$0xff]
        %v1984 = vld [vmem:[%s1702 + $0x50] sm:$0xff]
        %v1985 = vld [vmem:[%s1702 + $0x60] sm:$0xff]
        %v1986 = vld [vmem:[%s1702 + $0x70] sm:$0xff]
        %v1987 = vld [vmem:[#allocation9 + $0x6] sm:$0x1]
        %v1988 = vlaneseq
        %v1989 = vshrl.u32 %v1988, 7
        %v1990 = vsub.s32 0, %v1989
        %v1991 = vrot.slane %v1987, %v1990
        %v1992 = vmul.f32 %v1979, %v1991
        %v1993 = vmul.f32 %v1980, %v1991
        %v1994 = vmul.f32 %v1981, %v1991
        %v1995 = vmul.f32 %v1982, %v1991
        %v1996 = vmul.f32 %v1983, %v1991
        %v1997 = vmul.f32 %v1984, %v1991
        %v1998 = vmul.f32 %v1985, %v1991
        %v1999 = vmul.f32 %v1986, %v1991
        %v2000 = vadd.f32 %v1971, %v1992
        %v2001 = vadd.f32 %v1972, %v1993
        %v2002 = vadd.f32 %v1973, %v1994
        %v2003 = vadd.f32 %v1974, %v1995
        %v2004 = vadd.f32 %v1975, %v1996
        %v2005 = vadd.f32 %v1976, %v1997
        %v2006 = vadd.f32 %v1977, %v1998
        %v2007 = vadd.f32 %v1978, %v1999
        %v2008 = vld [vmem:[%s1702 + $0x1] sm:$0xff]
        %v2009 = vld [vmem:[%s1702 + $0x11] sm:$0xff]
        %v2010 = vld [vmem:[%s1702 + $0x21] sm:$0xff]
        %v2011 = vld [vmem:[%s1702 + $0x31] sm:$0xff]
        %v2012 = vld [vmem:[%s1702 + $0x41] sm:$0xff]
        %v2013 = vld [vmem:[%s1702 + $0x51] sm:$0xff]
        %v2014 = vld [vmem:[%s1702 + $0x61] sm:$0xff]
        %v2015 = vld [vmem:[%s1702 + $0x71] sm:$0xff]
        %v2016 = vld [vmem:[#allocation9 + $0x7] sm:$0x1]
        %v2017 = vlaneseq
        %v2018 = vshrl.u32 %v2017, 7
        %v2019 = vsub.s32 0, %v2018
        %v2020 = vrot.slane %v2016, %v2019
        %v2021 = vmul.f32 %v2008, %v2020
        %v2022 = vmul.f32 %v2009, %v2020
        %v2023 = vmul.f32 %v2010, %v2020
        %v2024 = vmul.f32 %v2011, %v2020
        %v2025 = vmul.f32 %v2012, %v2020
        %v2026 = vmul.f32 %v2013, %v2020
        %v2027 = vmul.f32 %v2014, %v2020
        %v2028 = vmul.f32 %v2015, %v2020
        %v2029 = vadd.f32 %v2000, %v2021
        %v2030 = vadd.f32 %v2001, %v2022
        %v2031 = vadd.f32 %v2002, %v2023
        %v2032 = vadd.f32 %v2003, %v2024
        %v2033 = vadd.f32 %v2004, %v2025
        %v2034 = vadd.f32 %v2005, %v2026
        %v2035 = vadd.f32 %v2006, %v2027
        %v2036 = vadd.f32 %v2007, %v2028
        %v2037 = vld [vmem:[%s1702 + $0x2] sm:$0xff]
        %v2038 = vld [vmem:[%s1702 + $0x12] sm:$0xff]
        %v2039 = vld [vmem:[%s1702 + $0x22] sm:$0xff]
        %v2040 = vld [vmem:[%s1702 + $0x32] sm:$0xff]
        %v2041 = vld [vmem:[%s1702 + $0x42] sm:$0xff]
        %v2042 = vld [vmem:[%s1702 + $0x52] sm:$0xff]
        %v2043 = vld [vmem:[%s1702 + $0x62] sm:$0xff]
        %v2044 = vld [vmem:[%s1702 + $0x72] sm:$0xff]
        %v2045 = vld [vmem:[#allocation9 + $0x8] sm:$0x1]
        %v2046 = vlaneseq
        %v2047 = vshrl.u32 %v2046, 7
        %v2048 = vsub.s32 0, %v2047
        %v2049 = vrot.slane %v2045, %v2048
        %v2050 = vmul.f32 %v2037, %v2049
        %v2051 = vmul.f32 %v2038, %v2049
        %v2052 = vmul.f32 %v2039, %v2049
        %v2053 = vmul.f32 %v2040, %v2049
        %v2054 = vmul.f32 %v2041, %v2049
        %v2055 = vmul.f32 %v2042, %v2049
        %v2056 = vmul.f32 %v2043, %v2049
        %v2057 = vmul.f32 %v2044, %v2049
        %v2058 = vadd.f32 %v2029, %v2050
        %v2059 = vadd.f32 %v2030, %v2051
        %v2060 = vadd.f32 %v2031, %v2052
        %v2061 = vadd.f32 %v2032, %v2053
        %v2062 = vadd.f32 %v2033, %v2054
        %v2063 = vadd.f32 %v2034, %v2055
        %v2064 = vadd.f32 %v2035, %v2056
        %v2065 = vadd.f32 %v2036, %v2057
        %v2066 = vld [vmem:[%s6] sm:$0x1]
        %v2068 = vlaneseq
        %v2069 = vshrl.u32 %v2068, 7
        %v2070 = vsub.s32 0, %v2069
        %v2071 = vrot.slane %v2066, %v2070
        %v2073 = vadd.f32 %v2058, %v2071
        %v2074 = vadd.f32 %v2059, %v2071
        %v2075 = vadd.f32 %v2060, %v2071
        %v2076 = vadd.f32 %v2061, %v2071
        %v2077 = vadd.f32 %v2062, %v2071
        %v2078 = vadd.f32 %v2063, %v2071
        %v2079 = vadd.f32 %v2064, %v2071
        %v2080 = vadd.f32 %v2065, %v2071
        %v2081 = vadd.f32 %v1797, %v2073
        %v2082 = vadd.f32 %v1798, %v2074
        %v2083 = vadd.f32 %v1799, %v2075
        %v2084 = vadd.f32 %v1800, %v2076
        %v2085 = vadd.f32 %v1801, %v2077
        %v2086 = vadd.f32 %v1802, %v2078
        %v2087 = vadd.f32 %v1803, %v2079
        %v2088 = vadd.f32 %v1804, %v2080
        %2089 = vadd.xlane.f32.xlu0 %v2081
        %v2090 = vpop.xlane.xlu0 %2089
        %2091 = vadd.xlane.f32.xlu0 %v2082
        %v2092 = vpop.xlane.xlu0 %2091
        %2093 = vadd.xlane.f32.xlu0 %v2083
        %v2094 = vpop.xlane.xlu0 %2093
        %2095 = vadd.xlane.f32.xlu0 %v2084
        %v2096 = vpop.xlane.xlu0 %2095
        %2097 = vadd.xlane.f32.xlu0 %v2085
        %v2098 = vpop.xlane.xlu0 %2097
        %2099 = vadd.xlane.f32.xlu0 %v2086
        %v2100 = vpop.xlane.xlu0 %2099
        %2101 = vadd.xlane.f32.xlu0 %v2087
        %v2102 = vpop.xlane.xlu0 %2101
        %2103 = vadd.xlane.f32.xlu0 %v2088
        %v2104 = vpop.xlane.xlu0 %2103
        %v2105 = vrot.slane %v2090, 4
        %v2106 = vadd.f32 %v2090, %v2105
        %v2107 = vrot.slane %v2106, 2
        %v2108 = vadd.f32 %v2106, %v2107
        %v2109 = vrot.slane %v2108, 1
        %v2110 = vadd.f32 %v2108, %v2109
        %v2111 = vrot.slane %v2092, 4
        %v2112 = vadd.f32 %v2092, %v2111
        %v2113 = vrot.slane %v2112, 2
        %v2114 = vadd.f32 %v2112, %v2113
        %v2115 = vrot.slane %v2114, 1
        %v2116 = vadd.f32 %v2114, %v2115
        %v2117 = vrot.slane %v2094, 4
        %v2118 = vadd.f32 %v2094, %v2117
        %v2119 = vrot.slane %v2118, 2
        %v2120 = vadd.f32 %v2118, %v2119
        %v2121 = vrot.slane %v2120, 1
        %v2122 = vadd.f32 %v2120, %v2121
        %v2123 = vrot.slane %v2096, 4
        %v2124 = vadd.f32 %v2096, %v2123
        %v2125 = vrot.slane %v2124, 2
        %v2126 = vadd.f32 %v2124, %v2125
        %v2127 = vrot.slane %v2126, 1
        %v2128 = vadd.f32 %v2126, %v2127
        %v2129 = vrot.slane %v2098, 4
        %v2130 = vadd.f32 %v2098, %v2129
        %v2131 = vrot.slane %v2130, 2
        %v2132 = vadd.f32 %v2130, %v2131
        %v2133 = vrot.slane %v2132, 1
        %v2134 = vadd.f32 %v2132, %v2133
        %v2135 = vrot.slane %v2100, 4
        %v2136 = vadd.f32 %v2100, %v2135
        %v2137 = vrot.slane %v2136, 2
        %v2138 = vadd.f32 %v2136, %v2137
        %v2139 = vrot.slane %v2138, 1
        %v2140 = vadd.f32 %v2138, %v2139
        %v2141 = vrot.slane %v2102, 4
        %v2142 = vadd.f32 %v2102, %v2141
        %v2143 = vrot.slane %v2142, 2
        %v2144 = vadd.f32 %v2142, %v2143
        %v2145 = vrot.slane %v2144, 1
        %v2146 = vadd.f32 %v2144, %v2145
        %v2147 = vrot.slane %v2104, 4
        %v2148 = vadd.f32 %v2104, %v2147
        %v2149 = vrot.slane %v2148, 2
        %v2150 = vadd.f32 %v2148, %v2149
        %v2151 = vrot.slane %v2150, 1
        %v2152 = vadd.f32 %v2150, %v2151
        %v2153 = vadd.f32 %v2110, %v2116
        %v2154 = vadd.f32 %v2153, %v2122
        %v2155 = vadd.f32 %v2154, %v2128
        %v2156 = vadd.f32 %v2155, %v2134
        %v2157 = vadd.f32 %v2156, %v2140
        %v2158 = vadd.f32 %v2157, %v2146
        %v2159 = vadd.f32 %v2158, %v2152
        %v2160 = vmul.f32 %v2159, 0.00012207031
        %v2161 = vmul.f32 %v2081, %v2081
        %v2162 = vmul.f32 %v2082, %v2082
        %v2163 = vmul.f32 %v2083, %v2083
        %v2164 = vmul.f32 %v2084, %v2084
        %v2165 = vmul.f32 %v2085, %v2085
        %v2166 = vmul.f32 %v2086, %v2086
        %v2167 = vmul.f32 %v2087, %v2087
        %v2168 = vmul.f32 %v2088, %v2088
        %2169 = vadd.xlane.f32.xlu0 %v2161
        %v2170 = vpop.xlane.xlu0 %2169
        %2171 = vadd.xlane.f32.xlu0 %v2162
        %v2172 = vpop.xlane.xlu0 %2171
        %2173 = vadd.xlane.f32.xlu0 %v2163
        %v2174 = vpop.xlane.xlu0 %2173
        %2175 = vadd.xlane.f32.xlu0 %v2164
        %v2176 = vpop.xlane.xlu0 %2175
        %2177 = vadd.xlane.f32.xlu0 %v2165
        %v2178 = vpop.xlane.xlu0 %2177
        %2179 = vadd.xlane.f32.xlu0 %v2166
        %v2180 = vpop.xlane.xlu0 %2179
        %2181 = vadd.xlane.f32.xlu0 %v2167
        %v2182 = vpop.xlane.xlu0 %2181
        %2183 = vadd.xlane.f32.xlu0 %v2168
        %v2184 = vpop.xlane.xlu0 %2183
        %v2185 = vrot.slane %v2170, 4
        %v2186 = vadd.f32 %v2170, %v2185
        %v2187 = vrot.slane %v2186, 2
        %v2188 = vadd.f32 %v2186, %v2187
        %v2189 = vrot.slane %v2188, 1
        %v2190 = vadd.f32 %v2188, %v2189
        %v2191 = vrot.slane %v2172, 4
        %v2192 = vadd.f32 %v2172, %v2191
        %v2193 = vrot.slane %v2192, 2
        %v2194 = vadd.f32 %v2192, %v2193
        %v2195 = vrot.slane %v2194, 1
        %v2196 = vadd.f32 %v2194, %v2195
        %v2197 = vrot.slane %v2174, 4
        %v2198 = vadd.f32 %v2174, %v2197
        %v2199 = vrot.slane %v2198, 2
        %v2200 = vadd.f32 %v2198, %v2199
        %v2201 = vrot.slane %v2200, 1
        %v2202 = vadd.f32 %v2200, %v2201
        %v2203 = vrot.slane %v2176, 4
        %v2204 = vadd.f32 %v2176, %v2203
        %v2205 = vrot.slane %v2204, 2
        %v2206 = vadd.f32 %v2204, %v2205
        %v2207 = vrot.slane %v2206, 1
        %v2208 = vadd.f32 %v2206, %v2207
        %v2209 = vrot.slane %v2178, 4
        %v2210 = vadd.f32 %v2178, %v2209
        %v2211 = vrot.slane %v2210, 2
        %v2212 = vadd.f32 %v2210, %v2211
        %v2213 = vrot.slane %v2212, 1
        %v2214 = vadd.f32 %v2212, %v2213
        %v2215 = vrot.slane %v2180, 4
        %v2216 = vadd.f32 %v2180, %v2215
        %v2217 = vrot.slane %v2216, 2
        %v2218 = vadd.f32 %v2216, %v2217
        %v2219 = vrot.slane %v2218, 1
        %v2220 = vadd.f32 %v2218, %v2219
        %v2221 = vrot.slane %v2182, 4
        %v2222 = vadd.f32 %v2182, %v2221
        %v2223 = vrot.slane %v2222, 2
        %v2224 = vadd.f32 %v2222, %v2223
        %v2225 = vrot.slane %v2224, 1
        %v2226 = vadd.f32 %v2224, %v2225
        %v2227 = vrot.slane %v2184, 4
        %v2228 = vadd.f32 %v2184, %v2227
        %v2229 = vrot.slane %v2228, 2
        %v2230 = vadd.f32 %v2228, %v2229
        %v2231 = vrot.slane %v2230, 1
        %v2232 = vadd.f32 %v2230, %v2231
        %v2233 = vadd.f32 %v2190, %v2196
        %v2234 = vadd.f32 %v2233, %v2202
        %v2235 = vadd.f32 %v2234, %v2208
        %v2236 = vadd.f32 %v2235, %v2214
        %v2237 = vadd.f32 %v2236, %v2220
        %v2238 = vadd.f32 %v2237, %v2226
        %v2239 = vadd.f32 %v2238, %v2232
        %v2240 = vmul.f32 %v2239, 0.00012207031
        %v2241 = vmul.f32 %v2160, %v2160
        %v2242 = vsub.f32 %v2240, %v2241
        %v2243 = vsub.f32 %v2081, %v2160
        %v2244 = vsub.f32 %v2082, %v2160
        %v2245 = vsub.f32 %v2083, %v2160
        %v2246 = vsub.f32 %v2084, %v2160
        %v2247 = vsub.f32 %v2085, %v2160
        %v2248 = vsub.f32 %v2086, %v2160
        %v2249 = vsub.f32 %v2087, %v2160
        %v2250 = vsub.f32 %v2088, %v2160
        %v2251 = vadd.f32 %v2242, 1e-05
        %v2252 = vrsqrt.pop %v2251
        %v2253 = vmul.f32 %v2243, %v2252
        %v2254 = vmul.f32 %v2244, %v2252
        %v2255 = vmul.f32 %v2245, %v2252
        %v2256 = vmul.f32 %v2246, %v2252
        %v2257 = vmul.f32 %v2247, %v2252
        %v2258 = vmul.f32 %v2248, %v2252
        %v2259 = vmul.f32 %v2249, %v2252
        %v2260 = vmul.f32 %v2250, %v2252
        %v2261 = vld [vmem:[#allocation12] sm:$0x1]
        %v2263 = vlaneseq
        %v2264 = vshrl.u32 %v2263, 7
        %v2265 = vsub.s32 0, %v2264
        %v2266 = vrot.slane %v2261, %v2265
        %v2268 = vmul.f32 %v2253, %v2266
        %v2269 = vmul.f32 %v2254, %v2266
        %v2270 = vmul.f32 %v2255, %v2266
        %v2271 = vmul.f32 %v2256, %v2266
        %v2272 = vmul.f32 %v2257, %v2266
        %v2273 = vmul.f32 %v2258, %v2266
        %v2274 = vmul.f32 %v2259, %v2266
        %v2275 = vmul.f32 %v2260, %v2266
        %v2276 = vld [vmem:[#allocation14] sm:$0x1]
        %v2278 = vlaneseq
        %v2279 = vshrl.u32 %v2278, 7
        %v2280 = vsub.s32 0, %v2279
        %v2281 = vrot.slane %v2276, %v2280
        %v2283 = vadd.f32 %v2268, %v2281
        %v2284 = vadd.f32 %v2269, %v2281
        %v2285 = vadd.f32 %v2270, %v2281
        %v2286 = vadd.f32 %v2271, %v2281
        %v2287 = vadd.f32 %v2272, %v2281
        %v2288 = vadd.f32 %v2273, %v2281
        %v2289 = vadd.f32 %v2274, %v2281
        %v2290 = vadd.f32 %v2275, %v2281
        %2291 = vst [vmem:[%s1527 + $0x1] sm:$0xff] %v2283
        %2292 = vst [vmem:[%s1527 + $0x11] sm:$0xff] %v2284
        %2293 = vst [vmem:[%s1527 + $0x21] sm:$0xff] %v2285
        %2294 = vst [vmem:[%s1527 + $0x31] sm:$0xff] %v2286
        %2295 = vst [vmem:[%s1527 + $0x41] sm:$0xff] %v2287
        %2296 = vst [vmem:[%s1527 + $0x51] sm:$0xff] %v2288
        %2297 = vst [vmem:[%s1527 + $0x61] sm:$0xff] %v2289
        %2298 = vst [vmem:[%s1527 + $0x71] sm:$0xff] %v2290
        %v2299 = vld [vmem:[#allocation2] sm:$0xff]
        %v2300 = vld [vmem:[#allocation2 + $0x10] sm:$0xff]
        %v2301 = vld [vmem:[#allocation2 + $0x20] sm:$0xff]
        %v2302 = vld [vmem:[#allocation2 + $0x30] sm:$0xff]
        %v2303 = vld [vmem:[#allocation2 + $0x40] sm:$0xff]
        %v2304 = vld [vmem:[#allocation2 + $0x50] sm:$0xff]
        %v2305 = vld [vmem:[#allocation2 + $0x60] sm:$0xff]
        %v2306 = vld [vmem:[#allocation2 + $0x70] sm:$0xff]
        %v2307 = vld [vmem:[%s7] sm:$0x1]
        %v2308 = vlaneseq
        %v2309 = vshrl.u32 %v2308, 7
        %v2310 = vsub.s32 0, %v2309
        %v2311 = vrot.slane %v2307, %v2310
        %v2312 = vmul.f32 %v2299, %v2311
        %v2313 = vmul.f32 %v2300, %v2311
        %v2314 = vmul.f32 %v2301, %v2311
        %v2315 = vmul.f32 %v2302, %v2311
        %v2316 = vmul.f32 %v2303, %v2311
        %v2317 = vmul.f32 %v2304, %v2311
        %v2318 = vmul.f32 %v2305, %v2311
        %v2319 = vmul.f32 %v2306, %v2311
        %v2320 = vld [vmem:[#allocation2 + $0x1] sm:$0xff]
        %v2321 = vld [vmem:[#allocation2 + $0x11] sm:$0xff]
        %v2322 = vld [vmem:[#allocation2 + $0x21] sm:$0xff]
        %v2323 = vld [vmem:[#allocation2 + $0x31] sm:$0xff]
        %v2324 = vld [vmem:[#allocation2 + $0x41] sm:$0xff]
        %v2325 = vld [vmem:[#allocation2 + $0x51] sm:$0xff]
        %v2326 = vld [vmem:[#allocation2 + $0x61] sm:$0xff]
        %v2327 = vld [vmem:[#allocation2 + $0x71] sm:$0xff]
        %v2328 = vld [vmem:[%s7 + $0x1] sm:$0x1]
        %v2329 = vlaneseq
        %v2330 = vshrl.u32 %v2329, 7
        %v2331 = vsub.s32 0, %v2330
        %v2332 = vrot.slane %v2328, %v2331
        %v2333 = vmul.f32 %v2320, %v2332
        %v2334 = vmul.f32 %v2321, %v2332
        %v2335 = vmul.f32 %v2322, %v2332
        %v2336 = vmul.f32 %v2323, %v2332
        %v2337 = vmul.f32 %v2324, %v2332
        %v2338 = vmul.f32 %v2325, %v2332
        %v2339 = vmul.f32 %v2326, %v2332
        %v2340 = vmul.f32 %v2327, %v2332
        %v2341 = vadd.f32 %v2312, %v2333
        %v2342 = vadd.f32 %v2313, %v2334
        %v2343 = vadd.f32 %v2314, %v2335
        %v2344 = vadd.f32 %v2315, %v2336
        %v2345 = vadd.f32 %v2316, %v2337
        %v2346 = vadd.f32 %v2317, %v2338
        %v2347 = vadd.f32 %v2318, %v2339
        %v2348 = vadd.f32 %v2319, %v2340
        %v2349 = vld [vmem:[#allocation2 + $0x2] sm:$0xff]
        %v2350 = vld [vmem:[#allocation2 + $0x12] sm:$0xff]
        %v2351 = vld [vmem:[#allocation2 + $0x22] sm:$0xff]
        %v2352 = vld [vmem:[#allocation2 + $0x32] sm:$0xff]
        %v2353 = vld [vmem:[#allocation2 + $0x42] sm:$0xff]
        %v2354 = vld [vmem:[#allocation2 + $0x52] sm:$0xff]
        %v2355 = vld [vmem:[#allocation2 + $0x62] sm:$0xff]
        %v2356 = vld [vmem:[#allocation2 + $0x72] sm:$0xff]
        %v2357 = vld [vmem:[%s7 + $0x2] sm:$0x1]
        %v2358 = vlaneseq
        %v2359 = vshrl.u32 %v2358, 7
        %v2360 = vsub.s32 0, %v2359
        %v2361 = vrot.slane %v2357, %v2360
        %v2362 = vmul.f32 %v2349, %v2361
        %v2363 = vmul.f32 %v2350, %v2361
        %v2364 = vmul.f32 %v2351, %v2361
        %v2365 = vmul.f32 %v2352, %v2361
        %v2366 = vmul.f32 %v2353, %v2361
        %v2367 = vmul.f32 %v2354, %v2361
        %v2368 = vmul.f32 %v2355, %v2361
        %v2369 = vmul.f32 %v2356, %v2361
        %v2370 = vadd.f32 %v2341, %v2362
        %v2371 = vadd.f32 %v2342, %v2363
        %v2372 = vadd.f32 %v2343, %v2364
        %v2373 = vadd.f32 %v2344, %v2365
        %v2374 = vadd.f32 %v2345, %v2366
        %v2375 = vadd.f32 %v2346, %v2367
        %v2376 = vadd.f32 %v2347, %v2368
        %v2377 = vadd.f32 %v2348, %v2369
        %v2378 = vld [vmem:[%s1527] sm:$0xff]
        %v2379 = vld [vmem:[%s1527 + $0x10] sm:$0xff]
        %v2380 = vld [vmem:[%s1527 + $0x20] sm:$0xff]
        %v2381 = vld [vmem:[%s1527 + $0x30] sm:$0xff]
        %v2382 = vld [vmem:[%s1527 + $0x40] sm:$0xff]
        %v2383 = vld [vmem:[%s1527 + $0x50] sm:$0xff]
        %v2384 = vld [vmem:[%s1527 + $0x60] sm:$0xff]
        %v2385 = vld [vmem:[%s1527 + $0x70] sm:$0xff]
        %v2386 = vld [vmem:[%s7 + $0x3] sm:$0x1]
        %v2387 = vlaneseq
        %v2388 = vshrl.u32 %v2387, 7
        %v2389 = vsub.s32 0, %v2388
        %v2390 = vrot.slane %v2386, %v2389
        %v2391 = vmul.f32 %v2378, %v2390
        %v2392 = vmul.f32 %v2379, %v2390
        %v2393 = vmul.f32 %v2380, %v2390
        %v2394 = vmul.f32 %v2381, %v2390
        %v2395 = vmul.f32 %v2382, %v2390
        %v2396 = vmul.f32 %v2383, %v2390
        %v2397 = vmul.f32 %v2384, %v2390
        %v2398 = vmul.f32 %v2385, %v2390
        %v2399 = vadd.f32 %v2370, %v2391
        %v2400 = vadd.f32 %v2371, %v2392
        %v2401 = vadd.f32 %v2372, %v2393
        %v2402 = vadd.f32 %v2373, %v2394
        %v2403 = vadd.f32 %v2374, %v2395
        %v2404 = vadd.f32 %v2375, %v2396
        %v2405 = vadd.f32 %v2376, %v2397
        %v2406 = vadd.f32 %v2377, %v2398
        %v2407 = vld [vmem:[%s1527 + $0x1] sm:$0xff]
        %v2408 = vld [vmem:[%s1527 + $0x11] sm:$0xff]
        %v2409 = vld [vmem:[%s1527 + $0x21] sm:$0xff]
        %v2410 = vld [vmem:[%s1527 + $0x31] sm:$0xff]
        %v2411 = vld [vmem:[%s1527 + $0x41] sm:$0xff]
        %v2412 = vld [vmem:[%s1527 + $0x51] sm:$0xff]
        %v2413 = vld [vmem:[%s1527 + $0x61] sm:$0xff]
        %v2414 = vld [vmem:[%s1527 + $0x71] sm:$0xff]
        %v2415 = vld [vmem:[%s7 + $0x4] sm:$0x1]
        %v2416 = vlaneseq
        %v2417 = vshrl.u32 %v2416, 7
        %v2418 = vsub.s32 0, %v2417
        %v2419 = vrot.slane %v2415, %v2418
        %v2420 = vmul.f32 %v2407, %v2419
        %v2421 = vmul.f32 %v2408, %v2419
        %v2422 = vmul.f32 %v2409, %v2419
        %v2423 = vmul.f32 %v2410, %v2419
        %v2424 = vmul.f32 %v2411, %v2419
        %v2425 = vmul.f32 %v2412, %v2419
        %v2426 = vmul.f32 %v2413, %v2419
        %v2427 = vmul.f32 %v2414, %v2419
        %v2428 = vadd.f32 %v2399, %v2420
        %v2429 = vadd.f32 %v2400, %v2421
        %v2430 = vadd.f32 %v2401, %v2422
        %v2431 = vadd.f32 %v2402, %v2423
        %v2432 = vadd.f32 %v2403, %v2424
        %v2433 = vadd.f32 %v2404, %v2425
        %v2434 = vadd.f32 %v2405, %v2426
        %v2435 = vadd.f32 %v2406, %v2427
        %v2436 = vld [vmem:[%s1527 + $0x2] sm:$0xff]
        %v2437 = vld [vmem:[%s1527 + $0x12] sm:$0xff]
        %v2438 = vld [vmem:[%s1527 + $0x22] sm:$0xff]
        %v2439 = vld [vmem:[%s1527 + $0x32] sm:$0xff]
        %v2440 = vld [vmem:[%s1527 + $0x42] sm:$0xff]
        %v2441 = vld [vmem:[%s1527 + $0x52] sm:$0xff]
        %v2442 = vld [vmem:[%s1527 + $0x62] sm:$0xff]
        %v2443 = vld [vmem:[%s1527 + $0x72] sm:$0xff]
        %v2444 = vld [vmem:[%s7 + $0x5] sm:$0x1]
        %v2445 = vlaneseq
        %v2446 = vshrl.u32 %v2445, 7
        %v2447 = vsub.s32 0, %v2446
        %v2448 = vrot.slane %v2444, %v2447
        %v2449 = vmul.f32 %v2436, %v2448
        %v2450 = vmul.f32 %v2437, %v2448
        %v2451 = vmul.f32 %v2438, %v2448
        %v2452 = vmul.f32 %v2439, %v2448
        %v2453 = vmul.f32 %v2440, %v2448
        %v2454 = vmul.f32 %v2441, %v2448
        %v2455 = vmul.f32 %v2442, %v2448
        %v2456 = vmul.f32 %v2443, %v2448
        %v2457 = vadd.f32 %v2428, %v2449
        %v2458 = vadd.f32 %v2429, %v2450
        %v2459 = vadd.f32 %v2430, %v2451
        %v2460 = vadd.f32 %v2431, %v2452
        %v2461 = vadd.f32 %v2432, %v2453
        %v2462 = vadd.f32 %v2433, %v2454
        %v2463 = vadd.f32 %v2434, %v2455
        %v2464 = vadd.f32 %v2435, %v2456
        %v2465 = vld [vmem:[%s1702] sm:$0xff]
        %v2466 = vld [vmem:[%s1702 + $0x10] sm:$0xff]
        %v2467 = vld [vmem:[%s1702 + $0x20] sm:$0xff]
        %v2468 = vld [vmem:[%s1702 + $0x30] sm:$0xff]
        %v2469 = vld [vmem:[%s1702 + $0x40] sm:$0xff]
        %v2470 = vld [vmem:[%s1702 + $0x50] sm:$0xff]
        %v2471 = vld [vmem:[%s1702 + $0x60] sm:$0xff]
        %v2472 = vld [vmem:[%s1702 + $0x70] sm:$0xff]
        %v2473 = vld [vmem:[%s7 + $0x6] sm:$0x1]
        %v2474 = vlaneseq
        %v2475 = vshrl.u32 %v2474, 7
        %v2476 = vsub.s32 0, %v2475
        %v2477 = vrot.slane %v2473, %v2476
        %v2478 = vmul.f32 %v2465, %v2477
        %v2479 = vmul.f32 %v2466, %v2477
        %v2480 = vmul.f32 %v2467, %v2477
        %v2481 = vmul.f32 %v2468, %v2477
        %v2482 = vmul.f32 %v2469, %v2477
        %v2483 = vmul.f32 %v2470, %v2477
        %v2484 = vmul.f32 %v2471, %v2477
        %v2485 = vmul.f32 %v2472, %v2477
        %v2486 = vadd.f32 %v2457, %v2478
        %v2487 = vadd.f32 %v2458, %v2479
        %v2488 = vadd.f32 %v2459, %v2480
        %v2489 = vadd.f32 %v2460, %v2481
        %v2490 = vadd.f32 %v2461, %v2482
        %v2491 = vadd.f32 %v2462, %v2483
        %v2492 = vadd.f32 %v2463, %v2484
        %v2493 = vadd.f32 %v2464, %v2485
        %v2494 = vld [vmem:[%s1702 + $0x1] sm:$0xff]
        %v2495 = vld [vmem:[%s1702 + $0x11] sm:$0xff]
        %v2496 = vld [vmem:[%s1702 + $0x21] sm:$0xff]
        %v2497 = vld [vmem:[%s1702 + $0x31] sm:$0xff]
        %v2498 = vld [vmem:[%s1702 + $0x41] sm:$0xff]
        %v2499 = vld [vmem:[%s1702 + $0x51] sm:$0xff]
        %v2500 = vld [vmem:[%s1702 + $0x61] sm:$0xff]
        %v2501 = vld [vmem:[%s1702 + $0x71] sm:$0xff]
        %v2502 = vld [vmem:[%s7 + $0x7] sm:$0x1]
        %v2503 = vlaneseq
        %v2504 = vshrl.u32 %v2503, 7
        %v2505 = vsub.s32 0, %v2504
        %v2506 = vrot.slane %v2502, %v2505
        %v2507 = vmul.f32 %v2494, %v2506
        %v2508 = vmul.f32 %v2495, %v2506
        %v2509 = vmul.f32 %v2496, %v2506
        %v2510 = vmul.f32 %v2497, %v2506
        %v2511 = vmul.f32 %v2498, %v2506
        %v2512 = vmul.f32 %v2499, %v2506
        %v2513 = vmul.f32 %v2500, %v2506
        %v2514 = vmul.f32 %v2501, %v2506
        %v2515 = vadd.f32 %v2486, %v2507
        %v2516 = vadd.f32 %v2487, %v2508
        %v2517 = vadd.f32 %v2488, %v2509
        %v2518 = vadd.f32 %v2489, %v2510
        %v2519 = vadd.f32 %v2490, %v2511
        %v2520 = vadd.f32 %v2491, %v2512
        %v2521 = vadd.f32 %v2492, %v2513
        %v2522 = vadd.f32 %v2493, %v2514
        %v2523 = vld [vmem:[%s1702 + $0x2] sm:$0xff]
        %v2524 = vld [vmem:[%s1702 + $0x12] sm:$0xff]
        %v2525 = vld [vmem:[%s1702 + $0x22] sm:$0xff]
        %v2526 = vld [vmem:[%s1702 + $0x32] sm:$0xff]
        %v2527 = vld [vmem:[%s1702 + $0x42] sm:$0xff]
        %v2528 = vld [vmem:[%s1702 + $0x52] sm:$0xff]
        %v2529 = vld [vmem:[%s1702 + $0x62] sm:$0xff]
        %v2530 = vld [vmem:[%s1702 + $0x72] sm:$0xff]
        %v2531 = vld [vmem:[%s7 + $0x8] sm:$0x1]
        %v2532 = vlaneseq
        %v2533 = vshrl.u32 %v2532, 7
        %v2534 = vsub.s32 0, %v2533
        %v2535 = vrot.slane %v2531, %v2534
        %v2536 = vmul.f32 %v2523, %v2535
        %v2537 = vmul.f32 %v2524, %v2535
        %v2538 = vmul.f32 %v2525, %v2535
        %v2539 = vmul.f32 %v2526, %v2535
        %v2540 = vmul.f32 %v2527, %v2535
        %v2541 = vmul.f32 %v2528, %v2535
        %v2542 = vmul.f32 %v2529, %v2535
        %v2543 = vmul.f32 %v2530, %v2535
        %v2544 = vadd.f32 %v2515, %v2536
        %v2545 = vadd.f32 %v2516, %v2537
        %v2546 = vadd.f32 %v2517, %v2538
        %v2547 = vadd.f32 %v2518, %v2539
        %v2548 = vadd.f32 %v2519, %v2540
        %v2549 = vadd.f32 %v2520, %v2541
        %v2550 = vadd.f32 %v2521, %v2542
        %v2551 = vadd.f32 %v2522, %v2543
        %v2552 = vld [vmem:[#allocation11] sm:$0x1]
        %v2554 = vlaneseq
        %v2555 = vshrl.u32 %v2554, 7
        %v2556 = vsub.s32 0, %v2555
        %v2557 = vrot.slane %v2552, %v2556
        %v2559 = vadd.f32 %v2544, %v2557
        %v2560 = vadd.f32 %v2545, %v2557
        %v2561 = vadd.f32 %v2546, %v2557
        %v2562 = vadd.f32 %v2547, %v2557
        %v2563 = vadd.f32 %v2548, %v2557
        %v2564 = vadd.f32 %v2549, %v2557
        %v2565 = vadd.f32 %v2550, %v2557
        %v2566 = vadd.f32 %v2551, %v2557
        %2567 = vst [vmem:[%s485] sm:$0xff] %v2559
        %2568 = vst [vmem:[%s485 + $0x8] sm:$0xff] %v2560
        %2569 = vst [vmem:[%s485 + $0x10] sm:$0xff] %v2561
        %2570 = vst [vmem:[%s485 + $0x18] sm:$0xff] %v2562
        %2571 = vst [vmem:[%s485 + $0x20] sm:$0xff] %v2563
        %2572 = vst [vmem:[%s485 + $0x28] sm:$0xff] %v2564
        %2573 = vst [vmem:[%s485 + $0x30] sm:$0xff] %v2565
        %2574 = vst [vmem:[%s485 + $0x38] sm:$0xff] %v2566
        %s2575 = sand.u32 %s275, 1
        %s2576 = scalar_lea.sflag [#allocation5], %s2575
        %s2577 = sand.u32 %s275, 1
        %s2578 = smul.addr %s2577, 64
        %s2579 = scalar_lea.vmem [#allocation15], %s2578
        // Predicated region
        $region93: #{pool_attn_forward.1} parent=63 // pred_check
          %p2580 = pneg %p285
        $region94: #{pool_attn_forward.1} parent=63 // pred_check_branch
          %2582 = sbr.rel (%p2580) target = $region96
        $region95: #{pool_attn_forward.1} parent=63 // pred_region
          %s2584 = ssub.s32 1024, 1024
          %2585 = vsyncadd %s2576, %s2584
          %s2586 = smul.addr %s31, 8
          %s2587 = smul.addr %s2586, 128
          %s2588 = scalar_lea.hbm %s11, %s2587
          %s2589 = sshll.u32 %s2579, 4
          %s2590 = int_to_ptr.vmem [resolvable:$true] %s2589
          %2595 = dma.vmem_to_hbm [thread:$0]  %s2590, 1024, %s2588, %s2576, 128, 128, 8
        $region96: #{pool_attn_forward.1} parent=63 // pred_fallthru
          _
      $region64: #{pool_attn_forward.1} parent=5 // pred_fallthru
        _
      %p2596 = scmp.le.s32.totalorder 2, %s26
      // Predicated region
      $region97: #{pool_attn_forward.1} parent=5 // pred_check
        %p2597 = pneg %p2596
      $region98: #{pool_attn_forward.1} parent=5 // pred_check_branch
        %2599 = sbr.rel (%p2597) target = $region100
      $region99: #{pool_attn_forward.1} parent=5 // pred_region
        %s2600 = ssub.s32 %s26, 2
        // Predicated region
        $region101: #{pool_attn_forward.1} parent=99 // pred_check
          %p2601 = pneg %p291
        $region102: #{pool_attn_forward.1} parent=99 // pred_check_branch
          %2603 = sbr.rel (%p2601) target = $region104
        $region103: #{pool_attn_forward.1} parent=99 // pred_region
          %s2604 = sand.u32 %s276, 1
          %s2605 = scalar_lea.sflag [#allocation5], %s2604
          %s2606 = sand.u32 %s276, 1
          %s2607 = smul.addr %s2606, 64
          %s2608 = scalar_lea.vmem [#allocation15], %s2607
          %2609 = dma.done %s2605, 1024
        $region104: #{pool_attn_forward.1} parent=99 // pred_fallthru
          _
      $region100: #{pool_attn_forward.1} parent=5 // pred_fallthru
        _
    $region6: #{pool_attn_forward.1} parent=1 // loop_footer
      %s30 = sadd.s32 1, %s26
    $region7: #{pool_attn_forward.1} parent=1 // loop_footer_branch
      %25 = sbr.rel target = $region3
    $region8: #{pool_attn_forward.1} parent=1 // loop_exit
      _
    %2610 = vsyncpa [#allocation4], 1
    %s2611 = scalar_lea.sflag [#allocation4], 1
    %2612 = vsyncpa %s2611, 1
    %2613 = vsyncpa [#allocation7], 1
    %2614 = vsyncpa [#allocation10], 1
    %2615 = vsyncpa [#allocation13], 1
    %2616 = vsyncpa [#allocation5], 1
    %s2617 = scalar_lea.sflag [#allocation5], 1
    %2618 = vsyncpa %s2617, 1

</llo_original>
